<compile_context>
chip_gen: v7x
topology: tpu7x:2x2x1
jax: 0.10.0
libtpu: 0.0.40
codegen_flags: <defaults>
</compile_context>

<pallas_src>
import jax
import jax.numpy as jnp
from jax import lax
from jax.experimental import pallas as pl
from jax.experimental.pallas import tpu as pltpu

INPUT_DIM = 135
K_PAD = 256          # input feature dim zero-padded to a lane-aligned multiple of 128
HIDDEN_DIM = 256
FEATURE_DIM = 256    # must equal HIDDEN_DIM for the PyTorch forward to typecheck
SEQ = 8
LN_EPS = 1e-5


def _layernorm(x, gamma, beta):
    mu = jnp.mean(x, axis=-1, keepdims=True)
    var = jnp.mean((x - mu) ** 2, axis=-1, keepdims=True)
    return (x - mu) * lax.rsqrt(var + LN_EPS) * gamma + beta


def _swish(x):
    return x * jax.nn.sigmoid(x)


# ---------------- Fused kernel: MLP front-end + bidirectional LSTM ----------------------------
def semilabel_kernel(x_ref, w1_ref, b1_ref, g1_ref, be1_ref,
                     w2_ref, b2_ref, g2_ref, be2_ref, bg_ref,
                     wih_hbm, whh_hbm,
                     out_ref,
                     wih_vmem, whh_vmem, wih_sem, whh_sem):
    S = out_ref.shape[0]
    H = HIDDEN_DIM

    # Kick off the big LSTM-weight DMAs immediately; wih overlaps the MLP front-end,
    # whh additionally overlaps the input-to-gate matmul.  Wait as late as possible.
    wih_cp = pltpu.make_async_copy(wih_hbm, wih_vmem, wih_sem)
    wih_cp.start()
    whh_cp = pltpu.make_async_copy(whh_hbm, whh_vmem, whh_sem)
    whh_cp.start()

    # ---- MLP front-end: two (Linear -> LayerNorm -> swish) stages, stays in vregs ----------
    # bf16 matmul operands, f32 accumulation; LayerNorm / swish math in f32.
    h = jnp.dot(x_ref[...].astype(jnp.bfloat16), w1_ref[...],
                preferred_element_type=jnp.float32) + b1_ref[...]
    h = _swish(_layernorm(h, g1_ref[...], be1_ref[...]))
    h = jnp.dot(h.astype(jnp.bfloat16), w2_ref[...],
                preferred_element_type=jnp.float32) + b2_ref[...]
    feat = _swish(_layernorm(h, g2_ref[...], be2_ref[...]))              # (S, 256) f32

    # ---- Input-to-gate precompute, both directions in ONE matmul, kept as a traced value ----
    # Columns [0:4H] = forward gates, [4H:8H] = backward gates; gate order [i|f|o|g].
    wih_cp.wait()
    xg = jnp.dot(feat.astype(jnp.bfloat16), wih_vmem[...],
                 preferred_element_type=jnp.float32) + bg_ref[...]       # (S, 8H) f32

    # Block-diagonal 0/1 mask (2, 2H) for the stacked recurrence LHS, hoisted out of the loop.
    row = lax.broadcasted_iota(jnp.int32, (2, 2 * H), 0)
    col = lax.broadcasted_iota(jnp.int32, (2, 2 * H), 1)
    mask = ((col < H) == (row == 0)).astype(jnp.float32)

    # W_hh of BOTH directions stacked on K: (2H, 4H).  Loop-invariant MXU RHS, read once.
    whh_cp.wait()
    whh = whh_vmem[...]

    # ---- Interleaved, fully-unrolled bidirectional recurrence (S is a compile-time const) ---
    # Row 0 of hc/cc = forward state, row 1 = backward state.  ONE matmul per step:
    #   [h_f | 0 ; 0 | h_b] (2, 2H)  @  [whh_f ; whh_b] (2H, 4H)
    hc = jnp.zeros((2, H), jnp.float32)
    cc = jnp.zeros((2, H), jnp.float32)
    fwd_rows, bwd_rows = [], []
    for t in range(S):
        tb = S - 1 - t
        xg_pair = jnp.concatenate([xg[t:t + 1, 0:4 * H],
                                   xg[tb:tb + 1, 4 * H:8 * H]], axis=0)          # (2, 4H)
        hc2 = (jnp.concatenate([hc, hc], axis=1) * mask).astype(jnp.bfloat16)    # (2, 2H)
        gates = xg_pair + jnp.dot(hc2, whh, preferred_element_type=jnp.float32)  # (2, 4H)
        sg = jax.nn.sigmoid(gates[:, 0:3 * H])        # one wide sigmoid over [i | f | o]
        i_g = sg[:, 0:H]
        f_g = sg[:, H:2 * H]
        o_g = sg[:, 2 * H:3 * H]
        g_g = jnp.tanh(gates[:, 3 * H:4 * H])
        cc = f_g * cc + i_g * g_g
        hc = o_g * jnp.tanh(cc)
        fwd_rows.append(hc[0:1, :])                   # forward output for timestep t
        bwd_rows.append(hc[1:2, :])                   # backward output for timestep S-1-t

    fwd = jnp.concatenate(fwd_rows, axis=0)           # (S, H), already in time order
    bwd = jnp.concatenate(bwd_rows[::-1], axis=0)     # (S, H), reordered to time order
    out_ref[...] = jnp.concatenate([fwd, bwd], axis=1)  # single dense (S, 2H) store


# ---------------- Parameter packing (padding / permutation / bf16 cast done once) -------------
def _permute_gates(w):
    # PyTorch gate order [i|f|g|o] -> kernel order [i|f|o|g] along the last (4H) axis.
    H = HIDDEN_DIM
    return jnp.concatenate([w[..., 0:2 * H], w[..., 3 * H:4 * H], w[..., 2 * H:3 * H]], axis=-1)


def pack_params(p):
    H = HIDDEN_DIM
    w1p = jnp.zeros((K_PAD, H // 2), jnp.float32).at[:INPUT_DIM, :].set(p['w1'])
    wih = jnp.concatenate([_permute_gates(p['wih_f']),
                           _permute_gates(p['wih_b'])], axis=1)          # (256, 2048)
    bg = jnp.concatenate([_permute_gates(p['bg_f']),
                          _permute_gates(p['bg_b'])], axis=1)            # (1, 2048) f32
    whh_cat = jnp.concatenate([_permute_gates(p['whh_f']),
                               _permute_gates(p['whh_b'])], axis=0)      # (512, 1024)
    return {
        'w1p': w1p.astype(jnp.bfloat16),                                 # (256, 128) bf16
        'b1': p['b1'], 'g1': p['g1'], 'be1': p['be1'],
        'w2': p['w2'].astype(jnp.bfloat16),                              # (128, 256) bf16
        'b2': p['b2'], 'g2': p['g2'], 'be2': p['be2'],
        'wih': wih.astype(jnp.bfloat16),                                 # (256, 2048) bf16
        'bg': bg,                                                        # (1, 2048) f32
        'whh_cat': whh_cat.astype(jnp.bfloat16),                         # (512, 1024) bf16
    }


# ---------------- Wrapper ---------------------------------------------------------------------
@jax.jit
def semilabel_forward(x, pp):
    S = x.shape[0]
    # Zero-pad the input features to K_PAD (numerically identical: padded w1 rows are zero).
    x_pad = jnp.zeros((S, K_PAD), jnp.float32).at[:, :INPUT_DIM].set(x)

    vmem = pl.BlockSpec(memory_space=pltpu.MemorySpace.VMEM)
    hbm = pl.BlockSpec(memory_space=pl.ANY)       # manual DMA inside the kernel
    out = pl.pallas_call(
        semilabel_kernel,
        out_shape=jax.ShapeDtypeStruct((S, 2 * HIDDEN_DIM), jnp.float32),
        in_specs=[vmem] * 10 + [hbm, hbm],
        out_specs=vmem,
        scratch_shapes=[
            pltpu.VMEM((FEATURE_DIM, 8 * HIDDEN_DIM), jnp.bfloat16),       # wih landing buffer
            pltpu.VMEM((2 * HIDDEN_DIM, 4 * HIDDEN_DIM), jnp.bfloat16),    # whh landing buffer
            pltpu.SemaphoreType.DMA(()),
            pltpu.SemaphoreType.DMA(()),
        ],
    )(x_pad, pp['w1p'], pp['b1'], pp['g1'], pp['be1'],
      pp['w2'], pp['b2'], pp['g2'], pp['be2'], pp['bg'],
      pp['wih'], pp['whh_cat'])

    # PyTorch returns (seq, batch=1, 2*hidden_dim)
    return out.reshape(S, 1, 2 * HIDDEN_DIM)


# ---------------- Deterministic parameter init (synthetic; PyTorch-style uniform) -------------
def init_params(key):
    ks = jax.random.split(key, 10)
    H2 = HIDDEN_DIM // 2
    H = HIDDEN_DIM

    def uni(k, shape, fan_in):
        b = 1.0 / jnp.sqrt(jnp.float32(fan_in))
        return jax.random.uniform(k, shape, jnp.float32, -b, b)

    return {
        'w1': uni(ks[0], (INPUT_DIM, H2), INPUT_DIM),
        'b1': uni(ks[1], (1, H2), INPUT_DIM),
        'g1': jnp.ones((1, H2), jnp.float32),
        'be1': jnp.zeros((1, H2), jnp.float32),
        'w2': uni(ks[2], (H2, H), H2),
        'b2': uni(ks[3], (1, H), H2),
        'g2': jnp.ones((1, H), jnp.float32),
        'be2': jnp.zeros((1, H), jnp.float32),
        # bg_* stands in for (b_ih + b_hh) of each direction; gate order [i|f|g|o] (PyTorch).
        'wih_f': uni(ks[4], (FEATURE_DIM, 4 * H), H),
        'whh_f': uni(ks[5], (H, 4 * H), H),
        'bg_f': uni(ks[6], (1, 4 * H), H) * 2.0,
        'wih_b': uni(ks[7], (FEATURE_DIM, 4 * H), H),
        'whh_b': uni(ks[8], (H, 4 * H), H),
        'bg_b': uni(ks[9], (1, 4 * H), H) * 2.0,
    }


# ---------------- Pure-JAX f32 reference for correctness check --------------------------------
def reference_forward(x, p):
    h = x @ p['w1'] + p['b1']
    h = _swish(_layernorm(h, p['g1'], p['be1']))
    h = h @ p['w2'] + p['b2']
    h = _swish(_layernorm(h, p['g2'], p['be2']))

    H = HIDDEN_DIM

    def run_dir(xs, wih, whh, b, reverse):
        xg = xs @ wih + b

        def step(carry, g_row):
            h_t, c_t = carry
            gates = g_row[None, :] + h_t @ whh
            i = jax.nn.sigmoid(gates[:, 0:H])
            f = jax.nn.sigmoid(gates[:, H:2 * H])
            g = jnp.tanh(gates[:, 2 * H:3 * H])
            o = jax.nn.sigmoid(gates[:, 3 * H:4 * H])
            c_t = f * c_t + i * g
            h_t = o * jnp.tanh(c_t)
            return (h_t, c_t), h_t[0]

        init = (jnp.zeros((1, H), jnp.float32), jnp.zeros((1, H), jnp.float32))
        _, hs = lax.scan(step, init, xg, reverse=reverse)
        return hs

    fwd = run_dir(h, p['wih_f'], p['whh_f'], p['bg_f'], False)
    bwd = run_dir(h, p['wih_b'], p['whh_b'], p['bg_b'], True)
    return jnp.concatenate([fwd, bwd], axis=-1).reshape(x.shape[0], 1, 2 * H)


if __name__ == "__main__":
    key = jax.random.PRNGKey(0)
    pkey, xkey = jax.random.split(key)
    params = init_params(pkey)
    packed = pack_params(params)
    x = jax.random.normal(xkey, (SEQ, INPUT_DIM), jnp.float32)

    out = jax.block_until_ready(semilabel_forward(x, packed))
    ref = reference_forward(x, params)

    assert out.shape == (SEQ, 1, 2 * HIDDEN_DIM), out.shape
    max_err = float(jnp.max(jnp.abs(out - ref)))
    # bf16 weights vs. f32 reference through an 8-step recurrence: allow a few e-2 absolute.
    assert max_err < 3e-2, f"max abs error vs f32 reference: {max_err}"
    print("KERNEL_OK")
</pallas_src>

<mosaic_0001>
module attributes {stable_mosaic.version = 11 : i64} {
  func.func @semilabel_kernel(%arg0: memref<8x256xf32, #tpu.memory_space<vmem>>, %arg1: memref<256x128xbf16, #tpu.memory_space<vmem>>, %arg2: memref<1x128xf32, #tpu.memory_space<vmem>>, %arg3: memref<1x128xf32, #tpu.memory_space<vmem>>, %arg4: memref<1x128xf32, #tpu.memory_space<vmem>>, %arg5: memref<128x256xbf16, #tpu.memory_space<vmem>>, %arg6: memref<1x256xf32, #tpu.memory_space<vmem>>, %arg7: memref<1x256xf32, #tpu.memory_space<vmem>>, %arg8: memref<1x256xf32, #tpu.memory_space<vmem>>, %arg9: memref<1x2048xf32, #tpu.memory_space<vmem>>, %arg10: memref<256x2048xbf16, #tpu.memory_space<any>>, %arg11: memref<512x1024xbf16, #tpu.memory_space<any>>, %arg12: memref<8x512xf32, #tpu.memory_space<vmem>>, %arg13: memref<256x2048xbf16, #tpu.memory_space<vmem>>, %arg14: memref<512x1024xbf16, #tpu.memory_space<vmem>>, %arg15: memref<!tpu.dma_semaphore, #tpu.memory_space<semaphore_mem>>, %arg16: memref<!tpu.dma_semaphore, #tpu.memory_space<semaphore_mem>>) attributes {dimension_semantics = [], scalar_prefetch = 0 : i64, scratch_operands = 4 : i64, tpu.core_type = #tpu.core_type<tc>} {
    tpu.enqueue_dma source(%arg10 : memref<256x2048xbf16, #tpu.memory_space<any>>) target(%arg13 : memref<256x2048xbf16, #tpu.memory_space<vmem>>) target_semaphore(%arg15 : memref<!tpu.dma_semaphore, #tpu.memory_space<semaphore_mem>>)
    tpu.enqueue_dma source(%arg11 : memref<512x1024xbf16, #tpu.memory_space<any>>) target(%arg14 : memref<512x1024xbf16, #tpu.memory_space<vmem>>) target_semaphore(%arg16 : memref<!tpu.dma_semaphore, #tpu.memory_space<semaphore_mem>>)
    %c0 = arith.constant 0 : index
    %c0_0 = arith.constant 0 : index
    %0 = vector.load %arg0[%c0, %c0_0] : memref<8x256xf32, #tpu.memory_space<vmem>>, vector<8x256xf32>
    %1 = arith.truncf %0 : vector<8x256xf32> to vector<8x256xbf16>
    %c0_1 = arith.constant 0 : index
    %c0_2 = arith.constant 0 : index
    %2 = vector.load %arg1[%c0_1, %c0_2] : memref<256x128xbf16, #tpu.memory_space<vmem>>, vector<256x128xbf16>
    %cst = arith.constant dense<0.000000e+00> : vector<8x128xf32>
    %3 = tpu.matmul %1, %2, %cst {dimension_numbers = #tpu.dot_dimension_numbers<[1], [0], [0], [1], [0, 0, 1, 1], [], []>} : vector<8x256xbf16>, vector<256x128xbf16>, vector<8x128xf32> -> vector<8x128xf32>
    %c0_3 = arith.constant 0 : index
    %c0_4 = arith.constant 0 : index
    %4 = vector.load %arg2[%c0_3, %c0_4] : memref<1x128xf32, #tpu.memory_space<vmem>>, vector<1x128xf32>
    %5 = vector.broadcast %4 : vector<1x128xf32> to vector<8x128xf32>
    %6 = arith.addf %3, %5 : vector<8x128xf32>
    %c0_5 = arith.constant 0 : index
    %c0_6 = arith.constant 0 : index
    %7 = vector.load %arg3[%c0_5, %c0_6] : memref<1x128xf32, #tpu.memory_space<vmem>>, vector<1x128xf32>
    %c0_7 = arith.constant 0 : index
    %c0_8 = arith.constant 0 : index
    %8 = vector.load %arg4[%c0_7, %c0_8] : memref<1x128xf32, #tpu.memory_space<vmem>>, vector<1x128xf32>
    %cst_9 = arith.constant dense<0.000000e+00> : vector<8xf32>
    %9 = vector.multi_reduction <add>, %6, %cst_9 [1] : vector<8x128xf32> to vector<8xf32>
    %10 = vector.shape_cast %9 : vector<8xf32> to vector<8x1xf32>
    %cst_10 = arith.constant 1.280000e+02 : f32
    %11 = vector.broadcast %cst_10 : f32 to vector<8x1xf32>
    %12 = arith.divf %10, %11 : vector<8x1xf32>
    %13 = vector.broadcast %12 : vector<8x1xf32> to vector<8x128xf32>
    %14 = arith.subf %6, %13 : vector<8x128xf32>
    %15 = arith.mulf %14, %14 : vector<8x128xf32>
    %cst_11 = arith.constant dense<0.000000e+00> : vector<8xf32>
    %16 = vector.multi_reduction <add>, %15, %cst_11 [1] : vector<8x128xf32> to vector<8xf32>
    %17 = vector.shape_cast %16 : vector<8xf32> to vector<8x1xf32>
    %cst_12 = arith.constant 1.280000e+02 : f32
    %18 = vector.broadcast %cst_12 : f32 to vector<8x1xf32>
    %19 = arith.divf %17, %18 : vector<8x1xf32>
    %20 = vector.broadcast %12 : vector<8x1xf32> to vector<8x128xf32>
    %21 = arith.subf %6, %20 : vector<8x128xf32>
    %cst_13 = arith.constant 9.99999974E-6 : f32
    %22 = vector.broadcast %cst_13 : f32 to vector<8x1xf32>
    %23 = arith.addf %19, %22 : vector<8x1xf32>
    %24 = math.rsqrt %23 : vector<8x1xf32>
    %25 = vector.broadcast %24 : vector<8x1xf32> to vector<8x128xf32>
    %26 = arith.mulf %21, %25 : vector<8x128xf32>
    %27 = vector.broadcast %7 : vector<1x128xf32> to vector<8x128xf32>
    %28 = arith.mulf %26, %27 : vector<8x128xf32>
    %29 = vector.broadcast %8 : vector<1x128xf32> to vector<8x128xf32>
    %30 = arith.addf %28, %29 : vector<8x128xf32>
    %31 = arith.negf %30 : vector<8x128xf32>
    %32 = math.exp %31 : vector<8x128xf32>
    %cst_14 = arith.constant 1.000000e+00 : f32
    %33 = vector.broadcast %cst_14 : f32 to vector<8x128xf32>
    %34 = arith.addf %33, %32 : vector<8x128xf32>
    %35 = arith.divf %33, %34 : vector<8x128xf32>
    %36 = arith.mulf %30, %35 : vector<8x128xf32>
    %37 = arith.truncf %36 : vector<8x128xf32> to vector<8x128xbf16>
    %c0_15 = arith.constant 0 : index
    %c0_16 = arith.constant 0 : index
    %38 = vector.load %arg5[%c0_15, %c0_16] : memref<128x256xbf16, #tpu.memory_space<vmem>>, vector<128x256xbf16>
    %cst_17 = arith.constant dense<0.000000e+00> : vector<8x256xf32>
    %39 = tpu.matmul %37, %38, %cst_17 {dimension_numbers = #tpu.dot_dimension_numbers<[1], [0], [0], [1], [0, 0, 1, 1], [], []>} : vector<8x128xbf16>, vector<128x256xbf16>, vector<8x256xf32> -> vector<8x256xf32>
    %c0_18 = arith.constant 0 : index
    %c0_19 = arith.constant 0 : index
    %40 = vector.load %arg6[%c0_18, %c0_19] : memref<1x256xf32, #tpu.memory_space<vmem>>, vector<1x256xf32>
    %41 = vector.broadcast %40 : vector<1x256xf32> to vector<8x256xf32>
    %42 = arith.addf %39, %41 : vector<8x256xf32>
    %c0_20 = arith.constant 0 : index
    %c0_21 = arith.constant 0 : index
    %43 = vector.load %arg7[%c0_20, %c0_21] : memref<1x256xf32, #tpu.memory_space<vmem>>, vector<1x256xf32>
    %c0_22 = arith.constant 0 : index
    %c0_23 = arith.constant 0 : index
    %44 = vector.load %arg8[%c0_22, %c0_23] : memref<1x256xf32, #tpu.memory_space<vmem>>, vector<1x256xf32>
    %cst_24 = arith.constant dense<0.000000e+00> : vector<8xf32>
    %45 = vector.multi_reduction <add>, %42, %cst_24 [1] : vector<8x256xf32> to vector<8xf32>
    %46 = vector.shape_cast %45 : vector<8xf32> to vector<8x1xf32>
    %cst_25 = arith.constant 2.560000e+02 : f32
    %47 = vector.broadcast %cst_25 : f32 to vector<8x1xf32>
    %48 = arith.divf %46, %47 : vector<8x1xf32>
    %49 = vector.broadcast %48 : vector<8x1xf32> to vector<8x256xf32>
    %50 = arith.subf %42, %49 : vector<8x256xf32>
    %51 = arith.mulf %50, %50 : vector<8x256xf32>
    %cst_26 = arith.constant dense<0.000000e+00> : vector<8xf32>
    %52 = vector.multi_reduction <add>, %51, %cst_26 [1] : vector<8x256xf32> to vector<8xf32>
    %53 = vector.shape_cast %52 : vector<8xf32> to vector<8x1xf32>
    %cst_27 = arith.constant 2.560000e+02 : f32
    %54 = vector.broadcast %cst_27 : f32 to vector<8x1xf32>
    %55 = arith.divf %53, %54 : vector<8x1xf32>
    %56 = vector.broadcast %48 : vector<8x1xf32> to vector<8x256xf32>
    %57 = arith.subf %42, %56 : vector<8x256xf32>
    %cst_28 = arith.constant 9.99999974E-6 : f32
    %58 = vector.broadcast %cst_28 : f32 to vector<8x1xf32>
    %59 = arith.addf %55, %58 : vector<8x1xf32>
    %60 = math.rsqrt %59 : vector<8x1xf32>
    %61 = vector.broadcast %60 : vector<8x1xf32> to vector<8x256xf32>
    %62 = arith.mulf %57, %61 : vector<8x256xf32>
    %63 = vector.broadcast %43 : vector<1x256xf32> to vector<8x256xf32>
    %64 = arith.mulf %62, %63 : vector<8x256xf32>
    %65 = vector.broadcast %44 : vector<1x256xf32> to vector<8x256xf32>
    %66 = arith.addf %64, %65 : vector<8x256xf32>
    %67 = arith.negf %66 : vector<8x256xf32>
    %68 = math.exp %67 : vector<8x256xf32>
    %cst_29 = arith.constant 1.000000e+00 : f32
    %69 = vector.broadcast %cst_29 : f32 to vector<8x256xf32>
    %70 = arith.addf %69, %68 : vector<8x256xf32>
    %71 = arith.divf %69, %70 : vector<8x256xf32>
    %72 = arith.mulf %66, %71 : vector<8x256xf32>
    tpu.wait_dma2 semaphore(%arg15 : memref<!tpu.dma_semaphore, #tpu.memory_space<semaphore_mem>>) src(%arg10 : memref<256x2048xbf16, #tpu.memory_space<any>>) dst(%arg13 : memref<256x2048xbf16, #tpu.memory_space<vmem>>)
    %73 = arith.truncf %72 : vector<8x256xf32> to vector<8x256xbf16>
    %c0_30 = arith.constant 0 : index
    %c0_31 = arith.constant 0 : index
    %74 = vector.load %arg13[%c0_30, %c0_31] : memref<256x2048xbf16, #tpu.memory_space<vmem>>, vector<256x2048xbf16>
    %cst_32 = arith.constant dense<0.000000e+00> : vector<8x2048xf32>
    %75 = tpu.matmul %73, %74, %cst_32 {dimension_numbers = #tpu.dot_dimension_numbers<[1], [0], [0], [1], [0, 0, 1, 1], [], []>} : vector<8x256xbf16>, vector<256x2048xbf16>, vector<8x2048xf32> -> vector<8x2048xf32>
    %c0_33 = arith.constant 0 : index
    %c0_34 = arith.constant 0 : index
    %76 = vector.load %arg9[%c0_33, %c0_34] : memref<1x2048xf32, #tpu.memory_space<vmem>>, vector<1x2048xf32>
    %77 = vector.broadcast %76 : vector<1x2048xf32> to vector<8x2048xf32>
    %78 = arith.addf %75, %77 : vector<8x2048xf32>
    %79 = tpu.iota {dimensions = array<i32: 0>} : vector<2x512xi32>
    %80 = tpu.iota {dimensions = array<i32: 1>} : vector<2x512xi32>
    %c256_i32 = arith.constant 256 : i32
    %81 = vector.broadcast %c256_i32 : i32 to vector<2x512xi32>
    %82 = arith.cmpi slt, %80, %81 : vector<2x512xi32>
    %c0_i32 = arith.constant 0 : i32
    %83 = vector.broadcast %c0_i32 : i32 to vector<2x512xi32>
    %84 = arith.cmpi eq, %79, %83 : vector<2x512xi32>
    %85 = arith.xori %82, %84 : vector<2x512xi1>
    %cst_35 = arith.constant dense<true> : vector<2x512xi1>
    %86 = arith.xori %85, %cst_35 : vector<2x512xi1>
    %87 = arith.extui %86 : vector<2x512xi1> to vector<2x512xi32>
    %88 = arith.sitofp %87 : vector<2x512xi32> to vector<2x512xf32>
    tpu.wait_dma2 semaphore(%arg16 : memref<!tpu.dma_semaphore, #tpu.memory_space<semaphore_mem>>) src(%arg11 : memref<512x1024xbf16, #tpu.memory_space<any>>) dst(%arg14 : memref<512x1024xbf16, #tpu.memory_space<vmem>>)
    %c0_36 = arith.constant 0 : index
    %c0_37 = arith.constant 0 : index
    %89 = vector.load %arg14[%c0_36, %c0_37] : memref<512x1024xbf16, #tpu.memory_space<vmem>>, vector<512x1024xbf16>
    %cst_38 = arith.constant 0.000000e+00 : f32
    %90 = vector.broadcast %cst_38 : f32 to vector<2x256xf32>
    %cst_39 = arith.constant 0.000000e+00 : f32
    %91 = vector.broadcast %cst_39 : f32 to vector<2x256xf32>
    %92 = vector.extract_strided_slice %78 {offsets = [0, 0], sizes = [1, 1024], strides = [1, 1]} : vector<8x2048xf32> to vector<1x1024xf32>
    %93 = vector.extract_strided_slice %78 {offsets = [7, 1024], sizes = [1, 1024], strides = [1, 1]} : vector<8x2048xf32> to vector<1x1024xf32>
    %94 = tpu.concatenate %92, %93 in 0 : vector<1x1024xf32>, vector<1x1024xf32> -> vector<2x1024xf32>
    %95 = tpu.concatenate %90, %90 in 1 : vector<2x256xf32>, vector<2x256xf32> -> vector<2x512xf32>
    %96 = arith.mulf %95, %88 : vector<2x512xf32>
    %97 = arith.truncf %96 : vector<2x512xf32> to vector<2x512xbf16>
    %cst_40 = arith.constant dense<0.000000e+00> : vector<2x1024xf32>
    %98 = tpu.matmul %97, %89, %cst_40 {dimension_numbers = #tpu.dot_dimension_numbers<[1], [0], [0], [1], [0, 0, 1, 1], [], []>} : vector<2x512xbf16>, vector<512x1024xbf16>, vector<2x1024xf32> -> vector<2x1024xf32>
    %99 = arith.addf %94, %98 : vector<2x1024xf32>
    %100 = vector.extract_strided_slice %99 {offsets = [0, 0], sizes = [2, 768], strides = [1, 1]} : vector<2x1024xf32> to vector<2x768xf32>
    %101 = arith.negf %100 : vector<2x768xf32>
    %102 = math.exp %101 : vector<2x768xf32>
    %cst_41 = arith.constant 1.000000e+00 : f32
    %103 = vector.broadcast %cst_41 : f32 to vector<2x768xf32>
    %104 = arith.addf %103, %102 : vector<2x768xf32>
    %105 = arith.divf %103, %104 : vector<2x768xf32>
    %106 = vector.extract_strided_slice %105 {offsets = [0, 0], sizes = [2, 256], strides = [1, 1]} : vector<2x768xf32> to vector<2x256xf32>
    %107 = vector.extract_strided_slice %105 {offsets = [0, 256], sizes = [2, 256], strides = [1, 1]} : vector<2x768xf32> to vector<2x256xf32>
    %108 = vector.extract_strided_slice %105 {offsets = [0, 512], sizes = [2, 256], strides = [1, 1]} : vector<2x768xf32> to vector<2x256xf32>
    %109 = vector.extract_strided_slice %99 {offsets = [0, 768], sizes = [2, 256], strides = [1, 1]} : vector<2x1024xf32> to vector<2x256xf32>
    %110 = math.tanh %109 : vector<2x256xf32>
    %111 = arith.mulf %107, %91 : vector<2x256xf32>
    %112 = arith.mulf %106, %110 : vector<2x256xf32>
    %113 = arith.addf %111, %112 : vector<2x256xf32>
    %114 = math.tanh %113 : vector<2x256xf32>
    %115 = arith.mulf %108, %114 : vector<2x256xf32>
    %116 = vector.extract_strided_slice %115 {offsets = [0, 0], sizes = [1, 256], strides = [1, 1]} : vector<2x256xf32> to vector<1x256xf32>
    %117 = vector.extract_strided_slice %115 {offsets = [1, 0], sizes = [1, 256], strides = [1, 1]} : vector<2x256xf32> to vector<1x256xf32>
    %118 = vector.extract_strided_slice %78 {offsets = [1, 0], sizes = [1, 1024], strides = [1, 1]} : vector<8x2048xf32> to vector<1x1024xf32>
    %119 = vector.extract_strided_slice %78 {offsets = [6, 1024], sizes = [1, 1024], strides = [1, 1]} : vector<8x2048xf32> to vector<1x1024xf32>
    %120 = tpu.concatenate %118, %119 in 0 : vector<1x1024xf32>, vector<1x1024xf32> -> vector<2x1024xf32>
    %121 = tpu.concatenate %115, %115 in 1 : vector<2x256xf32>, vector<2x256xf32> -> vector<2x512xf32>
    %122 = arith.mulf %121, %88 : vector<2x512xf32>
    %123 = arith.truncf %122 : vector<2x512xf32> to vector<2x512xbf16>
    %cst_42 = arith.constant dense<0.000000e+00> : vector<2x1024xf32>
    %124 = tpu.matmul %123, %89, %cst_42 {dimension_numbers = #tpu.dot_dimension_numbers<[1], [0], [0], [1], [0, 0, 1, 1], [], []>} : vector<2x512xbf16>, vector<512x1024xbf16>, vector<2x1024xf32> -> vector<2x1024xf32>
    %125 = arith.addf %120, %124 : vector<2x1024xf32>
    %126 = vector.extract_strided_slice %125 {offsets = [0, 0], sizes = [2, 768], strides = [1, 1]} : vector<2x1024xf32> to vector<2x768xf32>
    %127 = arith.negf %126 : vector<2x768xf32>
    %128 = math.exp %127 : vector<2x768xf32>
    %cst_43 = arith.constant 1.000000e+00 : f32
    %129 = vector.broadcast %cst_43 : f32 to vector<2x768xf32>
    %130 = arith.addf %129, %128 : vector<2x768xf32>
    %131 = arith.divf %129, %130 : vector<2x768xf32>
    %132 = vector.extract_strided_slice %131 {offsets = [0, 0], sizes = [2, 256], strides = [1, 1]} : vector<2x768xf32> to vector<2x256xf32>
    %133 = vector.extract_strided_slice %131 {offsets = [0, 256], sizes = [2, 256], strides = [1, 1]} : vector<2x768xf32> to vector<2x256xf32>
    %134 = vector.extract_strided_slice %131 {offsets = [0, 512], sizes = [2, 256], strides = [1, 1]} : vector<2x768xf32> to vector<2x256xf32>
    %135 = vector.extract_strided_slice %125 {offsets = [0, 768], sizes = [2, 256], strides = [1, 1]} : vector<2x1024xf32> to vector<2x256xf32>
    %136 = math.tanh %135 : vector<2x256xf32>
    %137 = arith.mulf %133, %113 : vector<2x256xf32>
    %138 = arith.mulf %132, %136 : vector<2x256xf32>
    %139 = arith.addf %137, %138 : vector<2x256xf32>
    %140 = math.tanh %139 : vector<2x256xf32>
    %141 = arith.mulf %134, %140 : vector<2x256xf32>
    %142 = vector.extract_strided_slice %141 {offsets = [0, 0], sizes = [1, 256], strides = [1, 1]} : vector<2x256xf32> to vector<1x256xf32>
    %143 = vector.extract_strided_slice %141 {offsets = [1, 0], sizes = [1, 256], strides = [1, 1]} : vector<2x256xf32> to vector<1x256xf32>
    %144 = vector.extract_strided_slice %78 {offsets = [2, 0], sizes = [1, 1024], strides = [1, 1]} : vector<8x2048xf32> to vector<1x1024xf32>
    %145 = vector.extract_strided_slice %78 {offsets = [5, 1024], sizes = [1, 1024], strides = [1, 1]} : vector<8x2048xf32> to vector<1x1024xf32>
    %146 = tpu.concatenate %144, %145 in 0 : vector<1x1024xf32>, vector<1x1024xf32> -> vector<2x1024xf32>
    %147 = tpu.concatenate %141, %141 in 1 : vector<2x256xf32>, vector<2x256xf32> -> vector<2x512xf32>
    %148 = arith.mulf %147, %88 : vector<2x512xf32>
    %149 = arith.truncf %148 : vector<2x512xf32> to vector<2x512xbf16>
    %cst_44 = arith.constant dense<0.000000e+00> : vector<2x1024xf32>
    %150 = tpu.matmul %149, %89, %cst_44 {dimension_numbers = #tpu.dot_dimension_numbers<[1], [0], [0], [1], [0, 0, 1, 1], [], []>} : vector<2x512xbf16>, vector<512x1024xbf16>, vector<2x1024xf32> -> vector<2x1024xf32>
    %151 = arith.addf %146, %150 : vector<2x1024xf32>
    %152 = vector.extract_strided_slice %151 {offsets = [0, 0], sizes = [2, 768], strides = [1, 1]} : vector<2x1024xf32> to vector<2x768xf32>
    %153 = arith.negf %152 : vector<2x768xf32>
    %154 = math.exp %153 : vector<2x768xf32>
    %cst_45 = arith.constant 1.000000e+00 : f32
    %155 = vector.broadcast %cst_45 : f32 to vector<2x768xf32>
    %156 = arith.addf %155, %154 : vector<2x768xf32>
    %157 = arith.divf %155, %156 : vector<2x768xf32>
    %158 = vector.extract_strided_slice %157 {offsets = [0, 0], sizes = [2, 256], strides = [1, 1]} : vector<2x768xf32> to vector<2x256xf32>
    %159 = vector.extract_strided_slice %157 {offsets = [0, 256], sizes = [2, 256], strides = [1, 1]} : vector<2x768xf32> to vector<2x256xf32>
    %160 = vector.extract_strided_slice %157 {offsets = [0, 512], sizes = [2, 256], strides = [1, 1]} : vector<2x768xf32> to vector<2x256xf32>
    %161 = vector.extract_strided_slice %151 {offsets = [0, 768], sizes = [2, 256], strides = [1, 1]} : vector<2x1024xf32> to vector<2x256xf32>
    %162 = math.tanh %161 : vector<2x256xf32>
    %163 = arith.mulf %159, %139 : vector<2x256xf32>
    %164 = arith.mulf %158, %162 : vector<2x256xf32>
    %165 = arith.addf %163, %164 : vector<2x256xf32>
    %166 = math.tanh %165 : vector<2x256xf32>
    %167 = arith.mulf %160, %166 : vector<2x256xf32>
    %168 = vector.extract_strided_slice %167 {offsets = [0, 0], sizes = [1, 256], strides = [1, 1]} : vector<2x256xf32> to vector<1x256xf32>
    %169 = vector.extract_strided_slice %167 {offsets = [1, 0], sizes = [1, 256], strides = [1, 1]} : vector<2x256xf32> to vector<1x256xf32>
    %170 = vector.extract_strided_slice %78 {offsets = [3, 0], sizes = [1, 1024], strides = [1, 1]} : vector<8x2048xf32> to vector<1x1024xf32>
    %171 = vector.extract_strided_slice %78 {offsets = [4, 1024], sizes = [1, 1024], strides = [1, 1]} : vector<8x2048xf32> to vector<1x1024xf32>
    %172 = tpu.concatenate %170, %171 in 0 : vector<1x1024xf32>, vector<1x1024xf32> -> vector<2x1024xf32>
    %173 = tpu.concatenate %167, %167 in 1 : vector<2x256xf32>, vector<2x256xf32> -> vector<2x512xf32>
    %174 = arith.mulf %173, %88 : vector<2x512xf32>
    %175 = arith.truncf %174 : vector<2x512xf32> to vector<2x512xbf16>
    %cst_46 = arith.constant dense<0.000000e+00> : vector<2x1024xf32>
    %176 = tpu.matmul %175, %89, %cst_46 {dimension_numbers = #tpu.dot_dimension_numbers<[1], [0], [0], [1], [0, 0, 1, 1], [], []>} : vector<2x512xbf16>, vector<512x1024xbf16>, vector<2x1024xf32> -> vector<2x1024xf32>
    %177 = arith.addf %172, %176 : vector<2x1024xf32>
    %178 = vector.extract_strided_slice %177 {offsets = [0, 0], sizes = [2, 768], strides = [1, 1]} : vector<2x1024xf32> to vector<2x768xf32>
    %179 = arith.negf %178 : vector<2x768xf32>
    %180 = math.exp %179 : vector<2x768xf32>
    %cst_47 = arith.constant 1.000000e+00 : f32
    %181 = vector.broadcast %cst_47 : f32 to vector<2x768xf32>
    %182 = arith.addf %181, %180 : vector<2x768xf32>
    %183 = arith.divf %181, %182 : vector<2x768xf32>
    %184 = vector.extract_strided_slice %183 {offsets = [0, 0], sizes = [2, 256], strides = [1, 1]} : vector<2x768xf32> to vector<2x256xf32>
    %185 = vector.extract_strided_slice %183 {offsets = [0, 256], sizes = [2, 256], strides = [1, 1]} : vector<2x768xf32> to vector<2x256xf32>
    %186 = vector.extract_strided_slice %183 {offsets = [0, 512], sizes = [2, 256], strides = [1, 1]} : vector<2x768xf32> to vector<2x256xf32>
    %187 = vector.extract_strided_slice %177 {offsets = [0, 768], sizes = [2, 256], strides = [1, 1]} : vector<2x1024xf32> to vector<2x256xf32>
    %188 = math.tanh %187 : vector<2x256xf32>
    %189 = arith.mulf %185, %165 : vector<2x256xf32>
    %190 = arith.mulf %184, %188 : vector<2x256xf32>
    %191 = arith.addf %189, %190 : vector<2x256xf32>
    %192 = math.tanh %191 : vector<2x256xf32>
    %193 = arith.mulf %186, %192 : vector<2x256xf32>
    %194 = vector.extract_strided_slice %193 {offsets = [0, 0], sizes = [1, 256], strides = [1, 1]} : vector<2x256xf32> to vector<1x256xf32>
    %195 = vector.extract_strided_slice %193 {offsets = [1, 0], sizes = [1, 256], strides = [1, 1]} : vector<2x256xf32> to vector<1x256xf32>
    %196 = vector.extract_strided_slice %78 {offsets = [4, 0], sizes = [1, 1024], strides = [1, 1]} : vector<8x2048xf32> to vector<1x1024xf32>
    %197 = vector.extract_strided_slice %78 {offsets = [3, 1024], sizes = [1, 1024], strides = [1, 1]} : vector<8x2048xf32> to vector<1x1024xf32>
    %198 = tpu.concatenate %196, %197 in 0 : vector<1x1024xf32>, vector<1x1024xf32> -> vector<2x1024xf32>
    %199 = tpu.concatenate %193, %193 in 1 : vector<2x256xf32>, vector<2x256xf32> -> vector<2x512xf32>
    %200 = arith.mulf %199, %88 : vector<2x512xf32>
    %201 = arith.truncf %200 : vector<2x512xf32> to vector<2x512xbf16>
    %cst_48 = arith.constant dense<0.000000e+00> : vector<2x1024xf32>
    %202 = tpu.matmul %201, %89, %cst_48 {dimension_numbers = #tpu.dot_dimension_numbers<[1], [0], [0], [1], [0, 0, 1, 1], [], []>} : vector<2x512xbf16>, vector<512x1024xbf16>, vector<2x1024xf32> -> vector<2x1024xf32>
    %203 = arith.addf %198, %202 : vector<2x1024xf32>
    %204 = vector.extract_strided_slice %203 {offsets = [0, 0], sizes = [2, 768], strides = [1, 1]} : vector<2x1024xf32> to vector<2x768xf32>
    %205 = arith.negf %204 : vector<2x768xf32>
    %206 = math.exp %205 : vector<2x768xf32>
    %cst_49 = arith.constant 1.000000e+00 : f32
    %207 = vector.broadcast %cst_49 : f32 to vector<2x768xf32>
    %208 = arith.addf %207, %206 : vector<2x768xf32>
    %209 = arith.divf %207, %208 : vector<2x768xf32>
    %210 = vector.extract_strided_slice %209 {offsets = [0, 0], sizes = [2, 256], strides = [1, 1]} : vector<2x768xf32> to vector<2x256xf32>
    %211 = vector.extract_strided_slice %209 {offsets = [0, 256], sizes = [2, 256], strides = [1, 1]} : vector<2x768xf32> to vector<2x256xf32>
    %212 = vector.extract_strided_slice %209 {offsets = [0, 512], sizes = [2, 256], strides = [1, 1]} : vector<2x768xf32> to vector<2x256xf32>
    %213 = vector.extract_strided_slice %203 {offsets = [0, 768], sizes = [2, 256], strides = [1, 1]} : vector<2x1024xf32> to vector<2x256xf32>
    %214 = math.tanh %213 : vector<2x256xf32>
    %215 = arith.mulf %211, %191 : vector<2x256xf32>
    %216 = arith.mulf %210, %214 : vector<2x256xf32>
    %217 = arith.addf %215, %216 : vector<2x256xf32>
    %218 = math.tanh %217 : vector<2x256xf32>
    %219 = arith.mulf %212, %218 : vector<2x256xf32>
    %220 = vector.extract_strided_slice %219 {offsets = [0, 0], sizes = [1, 256], strides = [1, 1]} : vector<2x256xf32> to vector<1x256xf32>
    %221 = vector.extract_strided_slice %219 {offsets = [1, 0], sizes = [1, 256], strides = [1, 1]} : vector<2x256xf32> to vector<1x256xf32>
    %222 = vector.extract_strided_slice %78 {offsets = [5, 0], sizes = [1, 1024], strides = [1, 1]} : vector<8x2048xf32> to vector<1x1024xf32>
    %223 = vector.extract_strided_slice %78 {offsets = [2, 1024], sizes = [1, 1024], strides = [1, 1]} : vector<8x2048xf32> to vector<1x1024xf32>
    %224 = tpu.concatenate %222, %223 in 0 : vector<1x1024xf32>, vector<1x1024xf32> -> vector<2x1024xf32>
    %225 = tpu.concatenate %219, %219 in 1 : vector<2x256xf32>, vector<2x256xf32> -> vector<2x512xf32>
    %226 = arith.mulf %225, %88 : vector<2x512xf32>
    %227 = arith.truncf %226 : vector<2x512xf32> to vector<2x512xbf16>
    %cst_50 = arith.constant dense<0.000000e+00> : vector<2x1024xf32>
    %228 = tpu.matmul %227, %89, %cst_50 {dimension_numbers = #tpu.dot_dimension_numbers<[1], [0], [0], [1], [0, 0, 1, 1], [], []>} : vector<2x512xbf16>, vector<512x1024xbf16>, vector<2x1024xf32> -> vector<2x1024xf32>
    %229 = arith.addf %224, %228 : vector<2x1024xf32>
    %230 = vector.extract_strided_slice %229 {offsets = [0, 0], sizes = [2, 768], strides = [1, 1]} : vector<2x1024xf32> to vector<2x768xf32>
    %231 = arith.negf %230 : vector<2x768xf32>
    %232 = math.exp %231 : vector<2x768xf32>
    %cst_51 = arith.constant 1.000000e+00 : f32
    %233 = vector.broadcast %cst_51 : f32 to vector<2x768xf32>
    %234 = arith.addf %233, %232 : vector<2x768xf32>
    %235 = arith.divf %233, %234 : vector<2x768xf32>
    %236 = vector.extract_strided_slice %235 {offsets = [0, 0], sizes = [2, 256], strides = [1, 1]} : vector<2x768xf32> to vector<2x256xf32>
    %237 = vector.extract_strided_slice %235 {offsets = [0, 256], sizes = [2, 256], strides = [1, 1]} : vector<2x768xf32> to vector<2x256xf32>
    %238 = vector.extract_strided_slice %235 {offsets = [0, 512], sizes = [2, 256], strides = [1, 1]} : vector<2x768xf32> to vector<2x256xf32>
    %239 = vector.extract_strided_slice %229 {offsets = [0, 768], sizes = [2, 256], strides = [1, 1]} : vector<2x1024xf32> to vector<2x256xf32>
    %240 = math.tanh %239 : vector<2x256xf32>
    %241 = arith.mulf %237, %217 : vector<2x256xf32>
    %242 = arith.mulf %236, %240 : vector<2x256xf32>
    %243 = arith.addf %241, %242 : vector<2x256xf32>
    %244 = math.tanh %243 : vector<2x256xf32>
    %245 = arith.mulf %238, %244 : vector<2x256xf32>
    %246 = vector.extract_strided_slice %245 {offsets = [0, 0], sizes = [1, 256], strides = [1, 1]} : vector<2x256xf32> to vector<1x256xf32>
    %247 = vector.extract_strided_slice %245 {offsets = [1, 0], sizes = [1, 256], strides = [1, 1]} : vector<2x256xf32> to vector<1x256xf32>
    %248 = vector.extract_strided_slice %78 {offsets = [6, 0], sizes = [1, 1024], strides = [1, 1]} : vector<8x2048xf32> to vector<1x1024xf32>
    %249 = vector.extract_strided_slice %78 {offsets = [1, 1024], sizes = [1, 1024], strides = [1, 1]} : vector<8x2048xf32> to vector<1x1024xf32>
    %250 = tpu.concatenate %248, %249 in 0 : vector<1x1024xf32>, vector<1x1024xf32> -> vector<2x1024xf32>
    %251 = tpu.concatenate %245, %245 in 1 : vector<2x256xf32>, vector<2x256xf32> -> vector<2x512xf32>
    %252 = arith.mulf %251, %88 : vector<2x512xf32>
    %253 = arith.truncf %252 : vector<2x512xf32> to vector<2x512xbf16>
    %cst_52 = arith.constant dense<0.000000e+00> : vector<2x1024xf32>
    %254 = tpu.matmul %253, %89, %cst_52 {dimension_numbers = #tpu.dot_dimension_numbers<[1], [0], [0], [1], [0, 0, 1, 1], [], []>} : vector<2x512xbf16>, vector<512x1024xbf16>, vector<2x1024xf32> -> vector<2x1024xf32>
    %255 = arith.addf %250, %254 : vector<2x1024xf32>
    %256 = vector.extract_strided_slice %255 {offsets = [0, 0], sizes = [2, 768], strides = [1, 1]} : vector<2x1024xf32> to vector<2x768xf32>
    %257 = arith.negf %256 : vector<2x768xf32>
    %258 = math.exp %257 : vector<2x768xf32>
    %cst_53 = arith.constant 1.000000e+00 : f32
    %259 = vector.broadcast %cst_53 : f32 to vector<2x768xf32>
    %260 = arith.addf %259, %258 : vector<2x768xf32>
    %261 = arith.divf %259, %260 : vector<2x768xf32>
    %262 = vector.extract_strided_slice %261 {offsets = [0, 0], sizes = [2, 256], strides = [1, 1]} : vector<2x768xf32> to vector<2x256xf32>
    %263 = vector.extract_strided_slice %261 {offsets = [0, 256], sizes = [2, 256], strides = [1, 1]} : vector<2x768xf32> to vector<2x256xf32>
    %264 = vector.extract_strided_slice %261 {offsets = [0, 512], sizes = [2, 256], strides = [1, 1]} : vector<2x768xf32> to vector<2x256xf32>
    %265 = vector.extract_strided_slice %255 {offsets = [0, 768], sizes = [2, 256], strides = [1, 1]} : vector<2x1024xf32> to vector<2x256xf32>
    %266 = math.tanh %265 : vector<2x256xf32>
    %267 = arith.mulf %263, %243 : vector<2x256xf32>
    %268 = arith.mulf %262, %266 : vector<2x256xf32>
    %269 = arith.addf %267, %268 : vector<2x256xf32>
    %270 = math.tanh %269 : vector<2x256xf32>
    %271 = arith.mulf %264, %270 : vector<2x256xf32>
    %272 = vector.extract_strided_slice %271 {offsets = [0, 0], sizes = [1, 256], strides = [1, 1]} : vector<2x256xf32> to vector<1x256xf32>
    %273 = vector.extract_strided_slice %271 {offsets = [1, 0], sizes = [1, 256], strides = [1, 1]} : vector<2x256xf32> to vector<1x256xf32>
    %274 = vector.extract_strided_slice %78 {offsets = [7, 0], sizes = [1, 1024], strides = [1, 1]} : vector<8x2048xf32> to vector<1x1024xf32>
    %275 = vector.extract_strided_slice %78 {offsets = [0, 1024], sizes = [1, 1024], strides = [1, 1]} : vector<8x2048xf32> to vector<1x1024xf32>
    %276 = tpu.concatenate %274, %275 in 0 : vector<1x1024xf32>, vector<1x1024xf32> -> vector<2x1024xf32>
    %277 = tpu.concatenate %271, %271 in 1 : vector<2x256xf32>, vector<2x256xf32> -> vector<2x512xf32>
    %278 = arith.mulf %277, %88 : vector<2x512xf32>
    %279 = arith.truncf %278 : vector<2x512xf32> to vector<2x512xbf16>
    %cst_54 = arith.constant dense<0.000000e+00> : vector<2x1024xf32>
    %280 = tpu.matmul %279, %89, %cst_54 {dimension_numbers = #tpu.dot_dimension_numbers<[1], [0], [0], [1], [0, 0, 1, 1], [], []>} : vector<2x512xbf16>, vector<512x1024xbf16>, vector<2x1024xf32> -> vector<2x1024xf32>
    %281 = arith.addf %276, %280 : vector<2x1024xf32>
    %282 = vector.extract_strided_slice %281 {offsets = [0, 0], sizes = [2, 768], strides = [1, 1]} : vector<2x1024xf32> to vector<2x768xf32>
    %283 = arith.negf %282 : vector<2x768xf32>
    %284 = math.exp %283 : vector<2x768xf32>
    %cst_55 = arith.constant 1.000000e+00 : f32
    %285 = vector.broadcast %cst_55 : f32 to vector<2x768xf32>
    %286 = arith.addf %285, %284 : vector<2x768xf32>
    %287 = arith.divf %285, %286 : vector<2x768xf32>
    %288 = vector.extract_strided_slice %287 {offsets = [0, 0], sizes = [2, 256], strides = [1, 1]} : vector<2x768xf32> to vector<2x256xf32>
    %289 = vector.extract_strided_slice %287 {offsets = [0, 256], sizes = [2, 256], strides = [1, 1]} : vector<2x768xf32> to vector<2x256xf32>
    %290 = vector.extract_strided_slice %287 {offsets = [0, 512], sizes = [2, 256], strides = [1, 1]} : vector<2x768xf32> to vector<2x256xf32>
    %291 = vector.extract_strided_slice %281 {offsets = [0, 768], sizes = [2, 256], strides = [1, 1]} : vector<2x1024xf32> to vector<2x256xf32>
    %292 = math.tanh %291 : vector<2x256xf32>
    %293 = arith.mulf %289, %269 : vector<2x256xf32>
    %294 = arith.mulf %288, %292 : vector<2x256xf32>
    %295 = arith.addf %293, %294 : vector<2x256xf32>
    %296 = math.tanh %295 : vector<2x256xf32>
    %297 = arith.mulf %290, %296 : vector<2x256xf32>
    %298 = vector.extract_strided_slice %297 {offsets = [0, 0], sizes = [1, 256], strides = [1, 1]} : vector<2x256xf32> to vector<1x256xf32>
    %299 = vector.extract_strided_slice %297 {offsets = [1, 0], sizes = [1, 256], strides = [1, 1]} : vector<2x256xf32> to vector<1x256xf32>
    %300 = tpu.concatenate %116, %142, %168, %194, %220, %246, %272, %298 in 0 : vector<1x256xf32>, vector<1x256xf32>, vector<1x256xf32>, vector<1x256xf32>, vector<1x256xf32>, vector<1x256xf32>, vector<1x256xf32>, vector<1x256xf32> -> vector<8x256xf32>
    %301 = tpu.concatenate %299, %273, %247, %221, %195, %169, %143, %117 in 0 : vector<1x256xf32>, vector<1x256xf32>, vector<1x256xf32>, vector<1x256xf32>, vector<1x256xf32>, vector<1x256xf32>, vector<1x256xf32>, vector<1x256xf32> -> vector<8x256xf32>
    %302 = tpu.concatenate %300, %301 in 1 : vector<8x256xf32>, vector<8x256xf32> -> vector<8x512xf32>
    %c0_56 = arith.constant 0 : index
    %c0_57 = arith.constant 0 : index
    %303 = vector.load %arg12[%c0_56, %c0_57] : memref<8x512xf32, #tpu.memory_space<vmem>>, vector<8x512xf32>
    tpu.vector_store %arg12[%c0_56, %c0_57], %302 {strides = array<i32>} : memref<8x512xf32, #tpu.memory_space<vmem>>, vector<8x512xf32>,
    return
  }
}

</mosaic_0001>

<llo_original>
// kernel: semilabel_forward.1
$region0: #{semilabel_forward.1}
  #allocation0 [shape = 'u32[]', space=smem, size = 0x4, offset = 0x4, fixed_abs, tag = 'smem constant byte address 0x4 - core index']
  #allocation1 [shape = 'u32[144,128]{1,0:T(1,128)}', space=vmem, size = 0x12000, scoped, tag = 'internal scratch']
  #allocation2 [shape = 'bf16[256,2048]{1,0:T(16,128)(2,1)}', space=vmem, size = 0x100000, scoped, tag = 'scratch operand']
  #allocation3 [shape = 'bf16[512,1024]{1,0:T(16,128)(2,1)}', space=vmem, size = 0x100000, scoped, tag = 'scratch operand']
  #allocation4 [shape = 's32[1]{0}', space=sflag, size = 0x4, scoped, tag = 'scratch operand']
  #allocation5 [shape = 's32[1]{0}', space=sflag, size = 0x4, scoped, tag = 'scratch operand']
  #allocation10 [shape = 's32[]', space=sflag, size = 0x4, offset = 0, fixed_abs, tag = 'sflag constant byte address 0x0 - dummy sync flag']
  #allocation12 [shape = 's32[]', space=sflag, size = 0x4, offset = 0, fixed_abs, tag = 'sflag constant byte address 0x0 - dummy sync flag']
  %s0 = inlined_call_operand.vmem [shape: f32[8,256], index: 0, kind: input, shape index: {}]
  %s1 = inlined_call_operand.hbm [shape: bf16[256,128], index: 1, kind: input, shape index: {}]
  %s2 = inlined_call_operand.vmem [shape: f32[1,128], index: 2, kind: input, shape index: {}]
  %s3 = inlined_call_operand.vmem [shape: f32[1,128], index: 3, kind: input, shape index: {}]
  %s4 = inlined_call_operand.vmem [shape: f32[1,128], index: 4, kind: input, shape index: {}]
  %s5 = inlined_call_operand.hbm [shape: bf16[128,256], index: 5, kind: input, shape index: {}]
  %s6 = inlined_call_operand.vmem [shape: f32[1,256], index: 6, kind: input, shape index: {}]
  %s7 = inlined_call_operand.vmem [shape: f32[1,256], index: 7, kind: input, shape index: {}]
  %s8 = inlined_call_operand.vmem [shape: f32[1,256], index: 8, kind: input, shape index: {}]
  %s9 = inlined_call_operand.vmem [shape: f32[1,2048], index: 9, kind: input, shape index: {}]
  %s10 = inlined_call_operand.hbm [shape: bf16[256,2048], index: 10, kind: input, shape index: {}]
  %s11 = inlined_call_operand.hbm [shape: bf16[512,1024], index: 11, kind: input, shape index: {}]
  %s12 = inlined_call_operand.vmem [shape: f32[8,512], index: 12, kind: output, shape index: {}]
  %s13 = sld [smem:[#allocation0]]
  $region58: #{semilabel_forward.1} parent=0
    _
  %s15 = ssub.s32 1, %s13
  %s16 = scalar_select 0, %s15, %s13
  $region1: #{semilabel_forward.1} parent=0
    #allocation6 [shape = 'u8[65536]{0}', space=vmem, size = 0x10000, scoped, tag = 'input window, operand 1, single buffered']
    #allocation7 [shape = 's32[1]{0}', space=sflag, size = 0x4, scoped, tag = 'scoped memory for semilabel_forward.1']
    #allocation8 [shape = 'u8[65536]{0}', space=vmem, size = 0x10000, scoped, tag = 'input window, operand 5, single buffered']
    #allocation9 [shape = 's32[1]{0}', space=sflag, size = 0x4, scoped, tag = 'scoped memory for semilabel_forward.1']
    #allocation11 [shape = 'u32[9]{0}', space=smem, size = 0x24, scoped, tag = 'DMA stride descriptor']
    #allocation13 [shape = 'u32[9]{0}', space=smem, size = 0x24, scoped, tag = 'DMA stride descriptor']
    %17 = vsyncpa [#allocation7], 0
    %18 = vsyncpa [#allocation9], 0
    // Predicated region
    $region2: #{semilabel_forward.1} parent=1 // pred_check
      _
    $region3: #{semilabel_forward.1} parent=1 // pred_check_branch
      %20 = sbr.rel (0) target = $region5
    $region4: #{semilabel_forward.1} parent=1 // pred_region
      _
    $region5: #{semilabel_forward.1} parent=1 // pred_fallthru
      _
    // Predicated region
    $region6: #{semilabel_forward.1} parent=1 // pred_check
      _
    $region7: #{semilabel_forward.1} parent=1 // pred_check_branch
      %22 = sbr.rel (0) target = $region9
    $region8: #{semilabel_forward.1} parent=1 // pred_region
      %s24 = ssub.s32 2048, 2048
      %25 = vsyncadd [#allocation7], %s24
      %s26 = sshll.u32 [#allocation6], 4
      %s27 = int_to_ptr.vmem [resolvable:$true] %s26
      %32 = dma.hbm_to_vmem [thread:$0]  %s1, 2048, %s27, [#allocation7], 64, 64, 4
    $region9: #{semilabel_forward.1} parent=1 // pred_fallthru
      _
    // Predicated region
    $region10: #{semilabel_forward.1} parent=1 // pred_check
      _
    $region11: #{semilabel_forward.1} parent=1 // pred_check_branch
      %34 = sbr.rel (0) target = $region13
    $region12: #{semilabel_forward.1} parent=1 // pred_region
      _
    $region13: #{semilabel_forward.1} parent=1 // pred_fallthru
      _
    // Predicated region
    $region14: #{semilabel_forward.1} parent=1 // pred_check
      _
    $region15: #{semilabel_forward.1} parent=1 // pred_check_branch
      %36 = sbr.rel (0) target = $region17
    $region16: #{semilabel_forward.1} parent=1 // pred_region
      _
    $region17: #{semilabel_forward.1} parent=1 // pred_fallthru
      _
    // Predicated region
    $region18: #{semilabel_forward.1} parent=1 // pred_check
      _
    $region19: #{semilabel_forward.1} parent=1 // pred_check_branch
      %38 = sbr.rel (0) target = $region21
    $region20: #{semilabel_forward.1} parent=1 // pred_region
      _
    $region21: #{semilabel_forward.1} parent=1 // pred_fallthru
      _
    // Predicated region
    $region22: #{semilabel_forward.1} parent=1 // pred_check
      _
    $region23: #{semilabel_forward.1} parent=1 // pred_check_branch
      %40 = sbr.rel (0) target = $region25
    $region24: #{semilabel_forward.1} parent=1 // pred_region
      %s42 = ssub.s32 2048, 2048
      %43 = vsyncadd [#allocation9], %s42
      %s44 = sshll.u32 [#allocation8], 4
      %s45 = int_to_ptr.vmem [resolvable:$true] %s44
      %50 = dma.hbm_to_vmem [thread:$0]  %s5, 2048, %s45, [#allocation9], 128, 128, 8
    $region25: #{semilabel_forward.1} parent=1 // pred_fallthru
      _
    // Predicated region
    $region26: #{semilabel_forward.1} parent=1 // pred_check
      _
    $region27: #{semilabel_forward.1} parent=1 // pred_check_branch
      %52 = sbr.rel (0) target = $region29
    $region28: #{semilabel_forward.1} parent=1 // pred_region
      _
    $region29: #{semilabel_forward.1} parent=1 // pred_fallthru
      _
    // Predicated region
    $region30: #{semilabel_forward.1} parent=1 // pred_check
      _
    $region31: #{semilabel_forward.1} parent=1 // pred_check_branch
      %54 = sbr.rel (0) target = $region33
    $region32: #{semilabel_forward.1} parent=1 // pred_region
      _
    $region33: #{semilabel_forward.1} parent=1 // pred_fallthru
      _
    // Predicated region
    $region34: #{semilabel_forward.1} parent=1 // pred_check
      _
    $region35: #{semilabel_forward.1} parent=1 // pred_check_branch
      %56 = sbr.rel (0) target = $region37
    $region36: #{semilabel_forward.1} parent=1 // pred_region
      _
    $region37: #{semilabel_forward.1} parent=1 // pred_fallthru
      _
    // Predicated region
    $region38: #{semilabel_forward.1} parent=1 // pred_check
      _
    $region39: #{semilabel_forward.1} parent=1 // pred_check_branch
      %58 = sbr.rel (0) target = $region41
    $region40: #{semilabel_forward.1} parent=1 // pred_region
      _
    $region41: #{semilabel_forward.1} parent=1 // pred_fallthru
      _
    // Predicated region
    $region42: #{semilabel_forward.1} parent=1 // pred_check
      _
    $region43: #{semilabel_forward.1} parent=1 // pred_check_branch
      %60 = sbr.rel (0) target = $region45
    $region44: #{semilabel_forward.1} parent=1 // pred_region
      %61 = dma.done [#allocation7], 2048
    $region45: #{semilabel_forward.1} parent=1 // pred_fallthru
      _
    // Predicated region
    $region46: #{semilabel_forward.1} parent=1 // pred_check
      _
    $region47: #{semilabel_forward.1} parent=1 // pred_check_branch
      %63 = sbr.rel (0) target = $region49
    $region48: #{semilabel_forward.1} parent=1 // pred_region
      %64 = dma.done [#allocation9], 2048
    $region49: #{semilabel_forward.1} parent=1 // pred_fallthru
      _
    %s67 = sshll.u32 1, 14
    %s68 = sxor.u32 4294967295, %s67
    %s70 = sld [smem:[#allocation0]]
    %s71 = sadd.s32 2, %s70
    %s73 = sshll.u32 7, 26
    %s74 = sxor.u32 4294967295, %s73
    %s75 = sand.u32 0, %s74
    %s76 = sshll.u32 %s71, 26
    %s77 = sor.u32 %s75, %s76
    %s78 = sshll.u32 [#allocation2], 4
    %s79 = int_to_ptr.vmem [resolvable:$true] %s78
    %82 = sst [smem:[#allocation11]] 2048
    %s83 = scalar_lea.smem [#allocation11], 1
    %84 = sst [smem:[%s83]] 2048
    %s85 = scalar_lea.smem [#allocation11], 2
    %86 = sst [smem:[%s85]] 16
    %s87 = scalar_lea.smem [#allocation11], 3
    %88 = sst [smem:[%s87]] 64
    %s89 = scalar_lea.smem [#allocation11], 4
    %90 = sst [smem:[%s89]] 128
    %s91 = scalar_lea.smem [#allocation11], 5
    %92 = sst [smem:[%s91]] 2
    %s93 = scalar_lea.smem [#allocation11], 6
    %94 = sst [smem:[%s93]] 1024
    %s95 = scalar_lea.smem [#allocation11], 7
    %96 = sst [smem:[%s95]] 64
    %s97 = scalar_lea.smem [#allocation11], 8
    %98 = sst [smem:[%s97]] 4
    %100 = dma.general %s10, 32768, %s79, [#allocation4], [#allocation10], [#allocation11], %s77, 0
    %s102 = sshll.u32 1, 14
    %s103 = sxor.u32 4294967295, %s102
    %s105 = sadd.s32 2, %s70
    %s107 = sshll.u32 7, 26
    %s108 = sxor.u32 4294967295, %s107
    %s109 = sand.u32 0, %s108
    %s110 = sshll.u32 %s105, 26
    %s111 = sor.u32 %s109, %s110
    %s112 = sshll.u32 [#allocation3], 4
    %s113 = int_to_ptr.vmem [resolvable:$true] %s112
    %116 = sst [smem:[#allocation13]] 1024
    %s117 = scalar_lea.smem [#allocation13], 1
    %118 = sst [smem:[%s117]] 1024
    %s119 = scalar_lea.smem [#allocation13], 2
    %120 = sst [smem:[%s119]] 8
    %s121 = scalar_lea.smem [#allocation13], 3
    %122 = sst [smem:[%s121]] 64
    %s123 = scalar_lea.smem [#allocation13], 4
    %124 = sst [smem:[%s123]] 128
    %s125 = scalar_lea.smem [#allocation13], 5
    %126 = sst [smem:[%s125]] 2
    %s127 = scalar_lea.smem [#allocation13], 6
    %128 = sst [smem:[%s127]] 512
    %s129 = scalar_lea.smem [#allocation13], 7
    %130 = sst [smem:[%s129]] 64
    %s131 = scalar_lea.smem [#allocation13], 8
    %132 = sst [smem:[%s131]] 4
    %134 = dma.general %s11, 32768, %s113, [#allocation5], [#allocation12], [#allocation13], %s111, 0
    %v135 = vld [vmem:[%s0] sm:$0xff]
    %v136 = vld [vmem:[%s0 + $0x8] sm:$0xff]
    %v137 = vpack.c.bf16 %v135, %v135
    %v138 = vpack.c.bf16 %v136, %v136
    %v139 = vld [vmem:[#allocation6] sm:$0xf]
    %v140 = vld [vmem:[#allocation6 + $0x4] sm:$0xf]
    %v141 = vld [vmem:[#allocation6 + $0x8] sm:$0xf]
    %v142 = vld [vmem:[#allocation6 + $0xc] sm:$0xf]
    %v143 = vld [vmem:[#allocation6 + $0x10] sm:$0xf]
    %v144 = vld [vmem:[#allocation6 + $0x14] sm:$0xf]
    %v145 = vld [vmem:[#allocation6 + $0x18] sm:$0xf]
    %v146 = vld [vmem:[#allocation6 + $0x1c] sm:$0xf]
    %v147 = vld [vmem:[#allocation6 + $0x20] sm:$0xf]
    %v148 = vld [vmem:[#allocation6 + $0x24] sm:$0xf]
    %v149 = vld [vmem:[#allocation6 + $0x28] sm:$0xf]
    %v150 = vld [vmem:[#allocation6 + $0x2c] sm:$0xf]
    %v151 = vld [vmem:[#allocation6 + $0x30] sm:$0xf]
    %v152 = vld [vmem:[#allocation6 + $0x34] sm:$0xf]
    %v153 = vld [vmem:[#allocation6 + $0x38] sm:$0xf]
    %v154 = vld [vmem:[#allocation6 + $0x3c] sm:$0xf]
    %v155 = vld [vmem:[#allocation6 + $0x40] sm:$0xf]
    %v156 = vld [vmem:[#allocation6 + $0x44] sm:$0xf]
    %v157 = vld [vmem:[#allocation6 + $0x48] sm:$0xf]
    %v158 = vld [vmem:[#allocation6 + $0x4c] sm:$0xf]
    %v159 = vld [vmem:[#allocation6 + $0x50] sm:$0xf]
    %v160 = vld [vmem:[#allocation6 + $0x54] sm:$0xf]
    %v161 = vld [vmem:[#allocation6 + $0x58] sm:$0xf]
    %v162 = vld [vmem:[#allocation6 + $0x5c] sm:$0xf]
    %v163 = vld [vmem:[#allocation6 + $0x60] sm:$0xf]
    %v164 = vld [vmem:[#allocation6 + $0x64] sm:$0xf]
    %v165 = vld [vmem:[#allocation6 + $0x68] sm:$0xf]
    %v166 = vld [vmem:[#allocation6 + $0x6c] sm:$0xf]
    %v167 = vld [vmem:[#allocation6 + $0x70] sm:$0xf]
    %v168 = vld [vmem:[#allocation6 + $0x74] sm:$0xf]
    %v169 = vld [vmem:[#allocation6 + $0x78] sm:$0xf]
    %v170 = vld [vmem:[#allocation6 + $0x7c] sm:$0xf]
    %v171 = vld [vmem:[%s2] sm:$0x1]
    %v173 = vlaneseq
    %v174 = vshrl.u32 %v173, 7
    %v175 = vsub.s32 0, %v174
    %v176 = vrot.slane %v171, %v175
    %v210 = vunpack.c.l.b16 %v139
    %v211 = vunpack.c.l.b16 %v140
    %v212 = vunpack.c.l.b16 %v141
    %v213 = vunpack.c.l.b16 %v142
    %v214 = vunpack.c.l.b16 %v143
    %v215 = vunpack.c.l.b16 %v144
    %v216 = vunpack.c.l.b16 %v145
    %v217 = vunpack.c.l.b16 %v146
    %v218 = vunpack.c.l.b16 %v147
    %v219 = vunpack.c.l.b16 %v148
    %v220 = vunpack.c.l.b16 %v149
    %v221 = vunpack.c.l.b16 %v150
    %v222 = vunpack.c.l.b16 %v151
    %v223 = vunpack.c.l.b16 %v152
    %v224 = vunpack.c.l.b16 %v153
    %v225 = vunpack.c.l.b16 %v154
    %v226 = vunpack.c.l.b16 %v155
    %v227 = vunpack.c.l.b16 %v156
    %v228 = vunpack.c.l.b16 %v157
    %v229 = vunpack.c.l.b16 %v158
    %v230 = vunpack.c.l.b16 %v159
    %v231 = vunpack.c.l.b16 %v160
    %v232 = vunpack.c.l.b16 %v161
    %v233 = vunpack.c.l.b16 %v162
    %v234 = vunpack.c.l.b16 %v163
    %v235 = vunpack.c.l.b16 %v164
    %v236 = vunpack.c.l.b16 %v165
    %v237 = vunpack.c.l.b16 %v166
    %v238 = vunpack.c.l.b16 %v167
    %v239 = vunpack.c.l.b16 %v168
    %v240 = vunpack.c.l.b16 %v169
    %v241 = vunpack.c.l.b16 %v170
    %v242 = vpack.c.b16 %v211, %v210
    %v243 = vpack.c.b16 %v213, %v212
    %v244 = vpack.c.b16 %v215, %v214
    %v245 = vpack.c.b16 %v217, %v216
    %v246 = vpack.c.b16 %v219, %v218
    %v247 = vpack.c.b16 %v221, %v220
    %v248 = vpack.c.b16 %v223, %v222
    %v249 = vpack.c.b16 %v225, %v224
    %v250 = vpack.c.b16 %v227, %v226
    %v251 = vpack.c.b16 %v229, %v228
    %v252 = vpack.c.b16 %v231, %v230
    %v253 = vpack.c.b16 %v233, %v232
    %v254 = vpack.c.b16 %v235, %v234
    %v255 = vpack.c.b16 %v237, %v236
    %v256 = vpack.c.b16 %v239, %v238
    %v257 = vpack.c.b16 %v241, %v240
    %274 = vmatprep.subr.bf16.mxu0 0
    %275 = vmatpush1.bf16.msra.mxu0 %v242
    %276 = vmatprep.subr.bf16.mxu0 0
    %277 = vmatpush1.bf16.msra.mxu0 %v243
    %278 = vmatprep.subr.bf16.mxu0 0
    %279 = vmatpush1.bf16.msra.mxu0 %v244
    %280 = vmatprep.subr.bf16.mxu0 0
    %281 = vmatpush1.bf16.msra.mxu0 %v245
    %282 = vmatprep.subr.bf16.mxu0 0
    %283 = vmatpush1.bf16.msra.mxu0 %v246
    %284 = vmatprep.subr.bf16.mxu0 0
    %285 = vmatpush1.bf16.msra.mxu0 %v247
    %286 = vmatprep.subr.bf16.mxu0 0
    %287 = vmatpush1.bf16.msra.mxu0 %v248
    %288 = vmatprep.subr.bf16.mxu0 0
    %289 = vmatpush1.bf16.msra.mxu0 %v249
    %290 = vmatprep.subr.bf16.mxu0 0
    %291 = vmatpush1.bf16.msra.mxu0 %v250
    %292 = vmatprep.subr.bf16.mxu0 0
    %293 = vmatpush1.bf16.msra.mxu0 %v251
    %294 = vmatprep.subr.bf16.mxu0 0
    %295 = vmatpush1.bf16.msra.mxu0 %v252
    %296 = vmatprep.subr.bf16.mxu0 0
    %297 = vmatpush1.bf16.msra.mxu0 %v253
    %298 = vmatprep.subr.bf16.mxu0 0
    %299 = vmatpush1.bf16.msra.mxu0 %v254
    %300 = vmatprep.subr.bf16.mxu0 0
    %301 = vmatpush1.bf16.msra.mxu0 %v255
    %302 = vmatprep.subr.bf16.mxu0 0
    %303 = vmatpush1.bf16.msra.mxu0 %v256
    %304 = vmatprep.subr.bf16.mxu0 0
    %305 = vmatpush1.bf16.msra.mxu0 %v257
    %306 = vmatprep.mubr.bf16.mxu0 %v138
    %307 = vmatmul.mubr.bf16.gmra.mrb[0].mxu0 %v137
    %v308 = vpop.f32.mrb[0].mxu0
    %v309 = vadd.f32 %v176, %v308
    %v310 = vpop.f32.mrb[0].mxu0
    %v311 = vpop.f32.mrb[0].mxu0
    %v312 = vpop.f32.mrb[0].mxu0
    %313 = vdwg.mxu0
    %v314 = vld [vmem:[%s3] sm:$0x1]
    %v315 = vld [vmem:[%s4] sm:$0x1]
    %316 = vadd.xlane.f32.xlu0 %v309
    %v317 = vpop.xlane.xlu0 %316
    %v318 = vrcp.pop 128.0
    %v319 = vmul.f32 %v317, %v318
    %v320 = vsub.f32 %v309, %v319
    %v321 = vmul.f32 %v320, %v320
    %322 = vadd.xlane.f32.xlu0 %v321
    %v323 = vpop.xlane.xlu0 %322
    %v324 = vmul.f32 %v323, %v318
    %v325 = vadd.f32 %v324, 1e-05
    %v326 = vrsqrt.pop %v325
    %v327 = vmul.f32 %v320, %v326
    %v329 = vlaneseq
    %v330 = vshrl.u32 %v329, 7
    %v331 = vsub.s32 0, %v330
    %v332 = vrot.slane %v314, %v331
    %v334 = vmul.f32 %v327, %v332
    %v336 = vlaneseq
    %v337 = vshrl.u32 %v336, 7
    %v338 = vsub.s32 0, %v337
    %v339 = vrot.slane %v315, %v338
    %v341 = vadd.f32 %v334, %v339
    %v342 = vxor.u32 %v341, 2147483648
    %v343 = vmul.f32 %v342, 1.442695
    %v344 = vpow.pop %v343
    %v345 = vadd.f32 %v344, 1.0
    %v346 = vrcp.pop %v345
    %v347 = vmul.f32 1.0, %v346
    %v348 = vmul.f32 %v341, %v347
    %v349 = vpack.c.bf16 %v348, %v348
    %v350 = vld [vmem:[#allocation8] sm:$0xff]
    %v351 = vld [vmem:[#allocation8 + $0x8] sm:$0xff]
    %v352 = vld [vmem:[#allocation8 + $0x10] sm:$0xff]
    %v353 = vld [vmem:[#allocation8 + $0x18] sm:$0xff]
    %v354 = vld [vmem:[#allocation8 + $0x20] sm:$0xff]
    %v355 = vld [vmem:[#allocation8 + $0x28] sm:$0xff]
    %v356 = vld [vmem:[#allocation8 + $0x30] sm:$0xff]
    %v357 = vld [vmem:[#allocation8 + $0x38] sm:$0xff]
    %v358 = vld [vmem:[#allocation8 + $0x40] sm:$0xff]
    %v359 = vld [vmem:[#allocation8 + $0x48] sm:$0xff]
    %v360 = vld [vmem:[#allocation8 + $0x50] sm:$0xff]
    %v361 = vld [vmem:[#allocation8 + $0x58] sm:$0xff]
    %v362 = vld [vmem:[#allocation8 + $0x60] sm:$0xff]
    %v363 = vld [vmem:[#allocation8 + $0x68] sm:$0xff]
    %v364 = vld [vmem:[#allocation8 + $0x70] sm:$0xff]
    %v365 = vld [vmem:[#allocation8 + $0x78] sm:$0xff]
    %v366 = vld [vmem:[%s6] sm:$0x3]
    %v368 = vlaneseq
    %v369 = vshrl.u32 %v368, 7
    %v370 = vsub.s32 0, %v369
    %v371 = vrot.slane %v366, %v370
    %v372 = vlaneseq
    %v373 = vshrl.u32 %v372, 7
    %v374 = vsub.s32 1, %v373
    %v375 = vrot.slane %v366, %v374
    %v394 = vunpack.c.l.b16 %v350
    %v395 = vunpack.c.h.b16 %v350
    %v396 = vunpack.c.l.b16 %v351
    %v397 = vunpack.c.h.b16 %v351
    %v398 = vunpack.c.l.b16 %v352
    %v399 = vunpack.c.h.b16 %v352
    %v400 = vunpack.c.l.b16 %v353
    %v401 = vunpack.c.h.b16 %v353
    %v402 = vunpack.c.l.b16 %v354
    %v403 = vunpack.c.h.b16 %v354
    %v404 = vunpack.c.l.b16 %v355
    %v405 = vunpack.c.h.b16 %v355
    %v406 = vunpack.c.l.b16 %v356
    %v407 = vunpack.c.h.b16 %v356
    %v408 = vunpack.c.l.b16 %v357
    %v409 = vunpack.c.h.b16 %v357
    %v410 = vunpack.c.l.b16 %v358
    %v411 = vunpack.c.h.b16 %v358
    %v412 = vunpack.c.l.b16 %v359
    %v413 = vunpack.c.h.b16 %v359
    %v414 = vunpack.c.l.b16 %v360
    %v415 = vunpack.c.h.b16 %v360
    %v416 = vunpack.c.l.b16 %v361
    %v417 = vunpack.c.h.b16 %v361
    %v418 = vunpack.c.l.b16 %v362
    %v419 = vunpack.c.h.b16 %v362
    %v420 = vunpack.c.l.b16 %v363
    %v421 = vunpack.c.h.b16 %v363
    %v422 = vunpack.c.l.b16 %v364
    %v423 = vunpack.c.h.b16 %v364
    %v424 = vunpack.c.l.b16 %v365
    %v425 = vunpack.c.h.b16 %v365
    %v426 = vpack.c.b16 %v396, %v394
    %v427 = vpack.c.b16 %v397, %v395
    %v428 = vpack.c.b16 %v400, %v398
    %v429 = vpack.c.b16 %v401, %v399
    %v430 = vpack.c.b16 %v404, %v402
    %v431 = vpack.c.b16 %v405, %v403
    %v432 = vpack.c.b16 %v408, %v406
    %v433 = vpack.c.b16 %v409, %v407
    %v434 = vpack.c.b16 %v412, %v410
    %v435 = vpack.c.b16 %v413, %v411
    %v436 = vpack.c.b16 %v416, %v414
    %v437 = vpack.c.b16 %v417, %v415
    %v438 = vpack.c.b16 %v420, %v418
    %v439 = vpack.c.b16 %v421, %v419
    %v440 = vpack.c.b16 %v424, %v422
    %v441 = vpack.c.b16 %v425, %v423
    %458 = vmatprep.subr.bf16.mxu0 %v427
    %459 = vmatpush1.bf16.msra.mxu0 %v426
    %460 = vmatprep.subr.bf16.mxu0 %v429
    %461 = vmatpush1.bf16.msra.mxu0 %v428
    %462 = vmatprep.subr.bf16.mxu0 %v431
    %463 = vmatpush1.bf16.msra.mxu0 %v430
    %464 = vmatprep.subr.bf16.mxu0 %v433
    %465 = vmatpush1.bf16.msra.mxu0 %v432
    %466 = vmatprep.subr.bf16.mxu0 %v435
    %467 = vmatpush1.bf16.msra.mxu0 %v434
    %468 = vmatprep.subr.bf16.mxu0 %v437
    %469 = vmatpush1.bf16.msra.mxu0 %v436
    %470 = vmatprep.subr.bf16.mxu0 %v439
    %471 = vmatpush1.bf16.msra.mxu0 %v438
    %472 = vmatprep.subr.bf16.mxu0 %v441
    %473 = vmatpush1.bf16.msra.mxu0 %v440
    %474 = vmatprep.subr.bf16.mxu0 0
    %475 = vmatpush1.bf16.msra.mxu0 0
    %476 = vmatprep.subr.bf16.mxu0 0
    %477 = vmatpush1.bf16.msra.mxu0 0
    %478 = vmatprep.subr.bf16.mxu0 0
    %479 = vmatpush1.bf16.msra.mxu0 0
    %480 = vmatprep.subr.bf16.mxu0 0
    %481 = vmatpush1.bf16.msra.mxu0 0
    %482 = vmatprep.subr.bf16.mxu0 0
    %483 = vmatpush1.bf16.msra.mxu0 0
    %484 = vmatprep.subr.bf16.mxu0 0
    %485 = vmatpush1.bf16.msra.mxu0 0
    %486 = vmatprep.subr.bf16.mxu0 0
    %487 = vmatpush1.bf16.msra.mxu0 0
    %488 = vmatprep.subr.bf16.mxu0 0
    %489 = vmatpush1.bf16.msra.mxu0 0
    %490 = vmatprep.mubr.bf16.mxu0 0
    %491 = vmatmul.mubr.bf16.gmra.mrb[0].mxu0 %v349
    %v492 = vpop.f32.mrb[0].mxu0
    %v493 = vadd.f32 %v371, %v492
    %v494 = vpop.f32.mrb[0].mxu0
    %v495 = vadd.f32 %v375, %v494
    %v496 = vpop.f32.mrb[0].mxu0
    %v497 = vpop.f32.mrb[0].mxu0
    %498 = vdwg.mxu0
    %v499 = vld [vmem:[%s7] sm:$0x3]
    %v500 = vld [vmem:[%s8] sm:$0x3]
    %v501 = vadd.f32 %v493, %v495
    %502 = vadd.xlane.f32.xlu0 %v501
    %v503 = vpop.xlane.xlu0 %502
    %v504 = vrcp.pop 256.0
    %v505 = vmul.f32 %v503, %v504
    %v506 = vsub.f32 %v493, %v505
    %v507 = vsub.f32 %v495, %v505
    %v508 = vmul.f32 %v506, %v506
    %v509 = vmul.f32 %v507, %v507
    %v510 = vadd.f32 %v508, %v509
    %511 = vadd.xlane.f32.xlu0 %v510
    %v512 = vpop.xlane.xlu0 %511
    %v513 = vmul.f32 %v512, %v504
    %v514 = vadd.f32 %v513, 1e-05
    %v515 = vrsqrt.pop %v514
    %v516 = vmul.f32 %v506, %v515
    %v517 = vmul.f32 %v507, %v515
    %v519 = vlaneseq
    %v520 = vshrl.u32 %v519, 7
    %v521 = vsub.s32 0, %v520
    %v522 = vrot.slane %v499, %v521
    %v523 = vlaneseq
    %v524 = vshrl.u32 %v523, 7
    %v525 = vsub.s32 1, %v524
    %v526 = vrot.slane %v499, %v525
    %v529 = vmul.f32 %v516, %v522
    %v530 = vmul.f32 %v517, %v526
    %v532 = vlaneseq
    %v533 = vshrl.u32 %v532, 7
    %v534 = vsub.s32 0, %v533
    %v535 = vrot.slane %v500, %v534
    %v536 = vlaneseq
    %v537 = vshrl.u32 %v536, 7
    %v538 = vsub.s32 1, %v537
    %v539 = vrot.slane %v500, %v538
    %v542 = vadd.f32 %v529, %v535
    %v543 = vadd.f32 %v530, %v539
    %v544 = vxor.u32 %v542, 2147483648
    %v545 = vxor.u32 %v543, 2147483648
    %v546 = vmul.f32 %v544, 1.442695
    %v547 = vpow.pop %v546
    %v548 = vmul.f32 %v545, 1.442695
    %v549 = vpow.pop %v548
    %v550 = vadd.f32 %v547, 1.0
    %v551 = vadd.f32 %v549, 1.0
    %v552 = vrcp.pop %v550
    %v553 = vmul.f32 1.0, %v552
    %v554 = vrcp.pop %v551
    %v555 = vmul.f32 1.0, %v554
    %v556 = vmul.f32 %v542, %v553
    %v557 = vmul.f32 %v543, %v555
    %s558 = smul.u32 4, 32
    %s559 = smul.u32 %s558, 16
    %s560 = sshll.u32 %s559, 4
    %561 = dma.done [#allocation4], %s560
    %v562 = vpack.c.bf16 %v556, %v556
    %v563 = vpack.c.bf16 %v557, %v557
    %v564 = vld [vmem:[#allocation2] sm:$0xff]
    %v565 = vld [vmem:[#allocation2 + $0x8] sm:$0xff]
    %v566 = vld [vmem:[#allocation2 + $0x10] sm:$0xff]
    %v567 = vld [vmem:[#allocation2 + $0x18] sm:$0xff]
    %v568 = vld [vmem:[#allocation2 + $0x20] sm:$0xff]
    %v569 = vld [vmem:[#allocation2 + $0x28] sm:$0xff]
    %v570 = vld [vmem:[#allocation2 + $0x30] sm:$0xff]
    %v571 = vld [vmem:[#allocation2 + $0x38] sm:$0xff]
    %v572 = vld [vmem:[#allocation2 + $0x40] sm:$0xff]
    %v573 = vld [vmem:[#allocation2 + $0x48] sm:$0xff]
    %v574 = vld [vmem:[#allocation2 + $0x50] sm:$0xff]
    %v575 = vld [vmem:[#allocation2 + $0x58] sm:$0xff]
    %v576 = vld [vmem:[#allocation2 + $0x60] sm:$0xff]
    %v577 = vld [vmem:[#allocation2 + $0x68] sm:$0xff]
    %v578 = vld [vmem:[#allocation2 + $0x70] sm:$0xff]
    %v579 = vld [vmem:[#allocation2 + $0x78] sm:$0xff]
    %v580 = vld [vmem:[#allocation2 + $0x80] sm:$0xff]
    %v581 = vld [vmem:[#allocation2 + $0x88] sm:$0xff]
    %v582 = vld [vmem:[#allocation2 + $0x90] sm:$0xff]
    %v583 = vld [vmem:[#allocation2 + $0x98] sm:$0xff]
    %v584 = vld [vmem:[#allocation2 + $0xa0] sm:$0xff]
    %v585 = vld [vmem:[#allocation2 + $0xa8] sm:$0xff]
    %v586 = vld [vmem:[#allocation2 + $0xb0] sm:$0xff]
    %v587 = vld [vmem:[#allocation2 + $0xb8] sm:$0xff]
    %v588 = vld [vmem:[#allocation2 + $0xc0] sm:$0xff]
    %v589 = vld [vmem:[#allocation2 + $0xc8] sm:$0xff]
    %v590 = vld [vmem:[#allocation2 + $0xd0] sm:$0xff]
    %v591 = vld [vmem:[#allocation2 + $0xd8] sm:$0xff]
    %v592 = vld [vmem:[#allocation2 + $0xe0] sm:$0xff]
    %v593 = vld [vmem:[#allocation2 + $0xe8] sm:$0xff]
    %v594 = vld [vmem:[#allocation2 + $0xf0] sm:$0xff]
    %v595 = vld [vmem:[#allocation2 + $0xf8] sm:$0xff]
    %v596 = vld [vmem:[#allocation2 + $0x100] sm:$0xff]
    %v597 = vld [vmem:[#allocation2 + $0x108] sm:$0xff]
    %v598 = vld [vmem:[#allocation2 + $0x110] sm:$0xff]
    %v599 = vld [vmem:[#allocation2 + $0x118] sm:$0xff]
    %v600 = vld [vmem:[#allocation2 + $0x120] sm:$0xff]
    %v601 = vld [vmem:[#allocation2 + $0x128] sm:$0xff]
    %v602 = vld [vmem:[#allocation2 + $0x130] sm:$0xff]
    %v603 = vld [vmem:[#allocation2 + $0x138] sm:$0xff]
    %v604 = vld [vmem:[#allocation2 + $0x140] sm:$0xff]
    %v605 = vld [vmem:[#allocation2 + $0x148] sm:$0xff]
    %v606 = vld [vmem:[#allocation2 + $0x150] sm:$0xff]
    %v607 = vld [vmem:[#allocation2 + $0x158] sm:$0xff]
    %v608 = vld [vmem:[#allocation2 + $0x160] sm:$0xff]
    %v609 = vld [vmem:[#allocation2 + $0x168] sm:$0xff]
    %v610 = vld [vmem:[#allocation2 + $0x170] sm:$0xff]
    %v611 = vld [vmem:[#allocation2 + $0x178] sm:$0xff]
    %v612 = vld [vmem:[#allocation2 + $0x180] sm:$0xff]
    %v613 = vld [vmem:[#allocation2 + $0x188] sm:$0xff]
    %v614 = vld [vmem:[#allocation2 + $0x190] sm:$0xff]
    %v615 = vld [vmem:[#allocation2 + $0x198] sm:$0xff]
    %v616 = vld [vmem:[#allocation2 + $0x1a0] sm:$0xff]
    %v617 = vld [vmem:[#allocation2 + $0x1a8] sm:$0xff]
    %v618 = vld [vmem:[#allocation2 + $0x1b0] sm:$0xff]
    %v619 = vld [vmem:[#allocation2 + $0x1b8] sm:$0xff]
    %v620 = vld [vmem:[#allocation2 + $0x1c0] sm:$0xff]
    %v621 = vld [vmem:[#allocation2 + $0x1c8] sm:$0xff]
    %v622 = vld [vmem:[#allocation2 + $0x1d0] sm:$0xff]
    %v623 = vld [vmem:[#allocation2 + $0x1d8] sm:$0xff]
    %v624 = vld [vmem:[#allocation2 + $0x1e0] sm:$0xff]
    %v625 = vld [vmem:[#allocation2 + $0x1e8] sm:$0xff]
    %v626 = vld [vmem:[#allocation2 + $0x1f0] sm:$0xff]
    %v627 = vld [vmem:[#allocation2 + $0x1f8] sm:$0xff]
    %v628 = vld [vmem:[#allocation2 + $0x200] sm:$0xff]
    %v629 = vld [vmem:[#allocation2 + $0x208] sm:$0xff]
    %v630 = vld [vmem:[#allocation2 + $0x210] sm:$0xff]
    %v631 = vld [vmem:[#allocation2 + $0x218] sm:$0xff]
    %v632 = vld [vmem:[#allocation2 + $0x220] sm:$0xff]
    %v633 = vld [vmem:[#allocation2 + $0x228] sm:$0xff]
    %v634 = vld [vmem:[#allocation2 + $0x230] sm:$0xff]
    %v635 = vld [vmem:[#allocation2 + $0x238] sm:$0xff]
    %v636 = vld [vmem:[#allocation2 + $0x240] sm:$0xff]
    %v637 = vld [vmem:[#allocation2 + $0x248] sm:$0xff]
    %v638 = vld [vmem:[#allocation2 + $0x250] sm:$0xff]
    %v639 = vld [vmem:[#allocation2 + $0x258] sm:$0xff]
    %v640 = vld [vmem:[#allocation2 + $0x260] sm:$0xff]
    %v641 = vld [vmem:[#allocation2 + $0x268] sm:$0xff]
    %v642 = vld [vmem:[#allocation2 + $0x270] sm:$0xff]
    %v643 = vld [vmem:[#allocation2 + $0x278] sm:$0xff]
    %v644 = vld [vmem:[#allocation2 + $0x280] sm:$0xff]
    %v645 = vld [vmem:[#allocation2 + $0x288] sm:$0xff]
    %v646 = vld [vmem:[#allocation2 + $0x290] sm:$0xff]
    %v647 = vld [vmem:[#allocation2 + $0x298] sm:$0xff]
    %v648 = vld [vmem:[#allocation2 + $0x2a0] sm:$0xff]
    %v649 = vld [vmem:[#allocation2 + $0x2a8] sm:$0xff]
    %v650 = vld [vmem:[#allocation2 + $0x2b0] sm:$0xff]
    %v651 = vld [vmem:[#allocation2 + $0x2b8] sm:$0xff]
    %v652 = vld [vmem:[#allocation2 + $0x2c0] sm:$0xff]
    %v653 = vld [vmem:[#allocation2 + $0x2c8] sm:$0xff]
    %v654 = vld [vmem:[#allocation2 + $0x2d0] sm:$0xff]
    %v655 = vld [vmem:[#allocation2 + $0x2d8] sm:$0xff]
    %v656 = vld [vmem:[#allocation2 + $0x2e0] sm:$0xff]
    %v657 = vld [vmem:[#allocation2 + $0x2e8] sm:$0xff]
    %v658 = vld [vmem:[#allocation2 + $0x2f0] sm:$0xff]
    %v659 = vld [vmem:[#allocation2 + $0x2f8] sm:$0xff]
    %v660 = vld [vmem:[#allocation2 + $0x300] sm:$0xff]
    %v661 = vld [vmem:[#allocation2 + $0x308] sm:$0xff]
    %v662 = vld [vmem:[#allocation2 + $0x310] sm:$0xff]
    %v663 = vld [vmem:[#allocation2 + $0x318] sm:$0xff]
    %v664 = vld [vmem:[#allocation2 + $0x320] sm:$0xff]
    %v665 = vld [vmem:[#allocation2 + $0x328] sm:$0xff]
    %v666 = vld [vmem:[#allocation2 + $0x330] sm:$0xff]
    %v667 = vld [vmem:[#allocation2 + $0x338] sm:$0xff]
    %v668 = vld [vmem:[#allocation2 + $0x340] sm:$0xff]
    %v669 = vld [vmem:[#allocation2 + $0x348] sm:$0xff]
    %v670 = vld [vmem:[#allocation2 + $0x350] sm:$0xff]
    %v671 = vld [vmem:[#allocation2 + $0x358] sm:$0xff]
    %v672 = vld [vmem:[#allocation2 + $0x360] sm:$0xff]
    %v673 = vld [vmem:[#allocation2 + $0x368] sm:$0xff]
    %v674 = vld [vmem:[#allocation2 + $0x370] sm:$0xff]
    %v675 = vld [vmem:[#allocation2 + $0x378] sm:$0xff]
    %v676 = vld [vmem:[#allocation2 + $0x380] sm:$0xff]
    %v677 = vld [vmem:[#allocation2 + $0x388] sm:$0xff]
    %v678 = vld [vmem:[#allocation2 + $0x390] sm:$0xff]
    %v679 = vld [vmem:[#allocation2 + $0x398] sm:$0xff]
    %v680 = vld [vmem:[#allocation2 + $0x3a0] sm:$0xff]
    %v681 = vld [vmem:[#allocation2 + $0x3a8] sm:$0xff]
    %v682 = vld [vmem:[#allocation2 + $0x3b0] sm:$0xff]
    %v683 = vld [vmem:[#allocation2 + $0x3b8] sm:$0xff]
    %v684 = vld [vmem:[#allocation2 + $0x3c0] sm:$0xff]
    %v685 = vld [vmem:[#allocation2 + $0x3c8] sm:$0xff]
    %v686 = vld [vmem:[#allocation2 + $0x3d0] sm:$0xff]
    %v687 = vld [vmem:[#allocation2 + $0x3d8] sm:$0xff]
    %v688 = vld [vmem:[#allocation2 + $0x3e0] sm:$0xff]
    %v689 = vld [vmem:[#allocation2 + $0x3e8] sm:$0xff]
    %v690 = vld [vmem:[#allocation2 + $0x3f0] sm:$0xff]
    %v691 = vld [vmem:[#allocation2 + $0x3f8] sm:$0xff]
    %v692 = vld [vmem:[#allocation2 + $0x400] sm:$0xff]
    %v693 = vld [vmem:[#allocation2 + $0x408] sm:$0xff]
    %v694 = vld [vmem:[#allocation2 + $0x410] sm:$0xff]
    %v695 = vld [vmem:[#allocation2 + $0x418] sm:$0xff]
    %v696 = vld [vmem:[#allocation2 + $0x420] sm:$0xff]
    %v697 = vld [vmem:[#allocation2 + $0x428] sm:$0xff]
    %v698 = vld [vmem:[#allocation2 + $0x430] sm:$0xff]
    %v699 = vld [vmem:[#allocation2 + $0x438] sm:$0xff]
    %v700 = vld [vmem:[#allocation2 + $0x440] sm:$0xff]
    %v701 = vld [vmem:[#allocation2 + $0x448] sm:$0xff]
    %v702 = vld [vmem:[#allocation2 + $0x450] sm:$0xff]
    %v703 = vld [vmem:[#allocation2 + $0x458] sm:$0xff]
    %v704 = vld [vmem:[#allocation2 + $0x460] sm:$0xff]
    %v705 = vld [vmem:[#allocation2 + $0x468] sm:$0xff]
    %v706 = vld [vmem:[#allocation2 + $0x470] sm:$0xff]
    %v707 = vld [vmem:[#allocation2 + $0x478] sm:$0xff]
    %v708 = vld [vmem:[#allocation2 + $0x480] sm:$0xff]
    %v709 = vld [vmem:[#allocation2 + $0x488] sm:$0xff]
    %v710 = vld [vmem:[#allocation2 + $0x490] sm:$0xff]
    %v711 = vld [vmem:[#allocation2 + $0x498] sm:$0xff]
    %v712 = vld [vmem:[#allocation2 + $0x4a0] sm:$0xff]
    %v713 = vld [vmem:[#allocation2 + $0x4a8] sm:$0xff]
    %v714 = vld [vmem:[#allocation2 + $0x4b0] sm:$0xff]
    %v715 = vld [vmem:[#allocation2 + $0x4b8] sm:$0xff]
    %v716 = vld [vmem:[#allocation2 + $0x4c0] sm:$0xff]
    %v717 = vld [vmem:[#allocation2 + $0x4c8] sm:$0xff]
    %v718 = vld [vmem:[#allocation2 + $0x4d0] sm:$0xff]
    %v719 = vld [vmem:[#allocation2 + $0x4d8] sm:$0xff]
    %v720 = vld [vmem:[#allocation2 + $0x4e0] sm:$0xff]
    %v721 = vld [vmem:[#allocation2 + $0x4e8] sm:$0xff]
    %v722 = vld [vmem:[#allocation2 + $0x4f0] sm:$0xff]
    %v723 = vld [vmem:[#allocation2 + $0x4f8] sm:$0xff]
    %v724 = vld [vmem:[#allocation2 + $0x500] sm:$0xff]
    %v725 = vld [vmem:[#allocation2 + $0x508] sm:$0xff]
    %v726 = vld [vmem:[#allocation2 + $0x510] sm:$0xff]
    %v727 = vld [vmem:[#allocation2 + $0x518] sm:$0xff]
    %v728 = vld [vmem:[#allocation2 + $0x520] sm:$0xff]
    %v729 = vld [vmem:[#allocation2 + $0x528] sm:$0xff]
    %v730 = vld [vmem:[#allocation2 + $0x530] sm:$0xff]
    %v731 = vld [vmem:[#allocation2 + $0x538] sm:$0xff]
    %v732 = vld [vmem:[#allocation2 + $0x540] sm:$0xff]
    %v733 = vld [vmem:[#allocation2 + $0x548] sm:$0xff]
    %v734 = vld [vmem:[#allocation2 + $0x550] sm:$0xff]
    %v735 = vld [vmem:[#allocation2 + $0x558] sm:$0xff]
    %v736 = vld [vmem:[#allocation2 + $0x560] sm:$0xff]
    %v737 = vld [vmem:[#allocation2 + $0x568] sm:$0xff]
    %v738 = vld [vmem:[#allocation2 + $0x570] sm:$0xff]
    %v739 = vld [vmem:[#allocation2 + $0x578] sm:$0xff]
    %v740 = vld [vmem:[#allocation2 + $0x580] sm:$0xff]
    %v741 = vld [vmem:[#allocation2 + $0x588] sm:$0xff]
    %v742 = vld [vmem:[#allocation2 + $0x590] sm:$0xff]
    %v743 = vld [vmem:[#allocation2 + $0x598] sm:$0xff]
    %v744 = vld [vmem:[#allocation2 + $0x5a0] sm:$0xff]
    %v745 = vld [vmem:[#allocation2 + $0x5a8] sm:$0xff]
    %v746 = vld [vmem:[#allocation2 + $0x5b0] sm:$0xff]
    %v747 = vld [vmem:[#allocation2 + $0x5b8] sm:$0xff]
    %v748 = vld [vmem:[#allocation2 + $0x5c0] sm:$0xff]
    %v749 = vld [vmem:[#allocation2 + $0x5c8] sm:$0xff]
    %v750 = vld [vmem:[#allocation2 + $0x5d0] sm:$0xff]
    %v751 = vld [vmem:[#allocation2 + $0x5d8] sm:$0xff]
    %v752 = vld [vmem:[#allocation2 + $0x5e0] sm:$0xff]
    %v753 = vld [vmem:[#allocation2 + $0x5e8] sm:$0xff]
    %v754 = vld [vmem:[#allocation2 + $0x5f0] sm:$0xff]
    %v755 = vld [vmem:[#allocation2 + $0x5f8] sm:$0xff]
    %v756 = vld [vmem:[#allocation2 + $0x600] sm:$0xff]
    %v757 = vld [vmem:[#allocation2 + $0x608] sm:$0xff]
    %v758 = vld [vmem:[#allocation2 + $0x610] sm:$0xff]
    %v759 = vld [vmem:[#allocation2 + $0x618] sm:$0xff]
    %v760 = vld [vmem:[#allocation2 + $0x620] sm:$0xff]
    %v761 = vld [vmem:[#allocation2 + $0x628] sm:$0xff]
    %v762 = vld [vmem:[#allocation2 + $0x630] sm:$0xff]
    %v763 = vld [vmem:[#allocation2 + $0x638] sm:$0xff]
    %v764 = vld [vmem:[#allocation2 + $0x640] sm:$0xff]
    %v765 = vld [vmem:[#allocation2 + $0x648] sm:$0xff]
    %v766 = vld [vmem:[#allocation2 + $0x650] sm:$0xff]
    %v767 = vld [vmem:[#allocation2 + $0x658] sm:$0xff]
    %v768 = vld [vmem:[#allocation2 + $0x660] sm:$0xff]
    %v769 = vld [vmem:[#allocation2 + $0x668] sm:$0xff]
    %v770 = vld [vmem:[#allocation2 + $0x670] sm:$0xff]
    %v771 = vld [vmem:[#allocation2 + $0x678] sm:$0xff]
    %v772 = vld [vmem:[#allocation2 + $0x680] sm:$0xff]
    %v773 = vld [vmem:[#allocation2 + $0x688] sm:$0xff]
    %v774 = vld [vmem:[#allocation2 + $0x690] sm:$0xff]
    %v775 = vld [vmem:[#allocation2 + $0x698] sm:$0xff]
    %v776 = vld [vmem:[#allocation2 + $0x6a0] sm:$0xff]
    %v777 = vld [vmem:[#allocation2 + $0x6a8] sm:$0xff]
    %v778 = vld [vmem:[#allocation2 + $0x6b0] sm:$0xff]
    %v779 = vld [vmem:[#allocation2 + $0x6b8] sm:$0xff]
    %v780 = vld [vmem:[#allocation2 + $0x6c0] sm:$0xff]
    %v781 = vld [vmem:[#allocation2 + $0x6c8] sm:$0xff]
    %v782 = vld [vmem:[#allocation2 + $0x6d0] sm:$0xff]
    %v783 = vld [vmem:[#allocation2 + $0x6d8] sm:$0xff]
    %v784 = vld [vmem:[#allocation2 + $0x6e0] sm:$0xff]
    %v785 = vld [vmem:[#allocation2 + $0x6e8] sm:$0xff]
    %v786 = vld [vmem:[#allocation2 + $0x6f0] sm:$0xff]
    %v787 = vld [vmem:[#allocation2 + $0x6f8] sm:$0xff]
    %v788 = vld [vmem:[#allocation2 + $0x700] sm:$0xff]
    %v789 = vld [vmem:[#allocation2 + $0x708] sm:$0xff]
    %v790 = vld [vmem:[#allocation2 + $0x710] sm:$0xff]
    %v791 = vld [vmem:[#allocation2 + $0x718] sm:$0xff]
    %v792 = vld [vmem:[#allocation2 + $0x720] sm:$0xff]
    %v793 = vld [vmem:[#allocation2 + $0x728] sm:$0xff]
    %v794 = vld [vmem:[#allocation2 + $0x730] sm:$0xff]
    %v795 = vld [vmem:[#allocation2 + $0x738] sm:$0xff]
    %v796 = vld [vmem:[#allocation2 + $0x740] sm:$0xff]
    %v797 = vld [vmem:[#allocation2 + $0x748] sm:$0xff]
    %v798 = vld [vmem:[#allocation2 + $0x750] sm:$0xff]
    %v799 = vld [vmem:[#allocation2 + $0x758] sm:$0xff]
    %v800 = vld [vmem:[#allocation2 + $0x760] sm:$0xff]
    %v801 = vld [vmem:[#allocation2 + $0x768] sm:$0xff]
    %v802 = vld [vmem:[#allocation2 + $0x770] sm:$0xff]
    %v803 = vld [vmem:[#allocation2 + $0x778] sm:$0xff]
    %v804 = vld [vmem:[#allocation2 + $0x780] sm:$0xff]
    %v805 = vld [vmem:[#allocation2 + $0x788] sm:$0xff]
    %v806 = vld [vmem:[#allocation2 + $0x790] sm:$0xff]
    %v807 = vld [vmem:[#allocation2 + $0x798] sm:$0xff]
    %v808 = vld [vmem:[#allocation2 + $0x7a0] sm:$0xff]
    %v809 = vld [vmem:[#allocation2 + $0x7a8] sm:$0xff]
    %v810 = vld [vmem:[#allocation2 + $0x7b0] sm:$0xff]
    %v811 = vld [vmem:[#allocation2 + $0x7b8] sm:$0xff]
    %v812 = vld [vmem:[#allocation2 + $0x7c0] sm:$0xff]
    %v813 = vld [vmem:[#allocation2 + $0x7c8] sm:$0xff]
    %v814 = vld [vmem:[#allocation2 + $0x7d0] sm:$0xff]
    %v815 = vld [vmem:[#allocation2 + $0x7d8] sm:$0xff]
    %v816 = vld [vmem:[#allocation2 + $0x7e0] sm:$0xff]
    %v817 = vld [vmem:[#allocation2 + $0x7e8] sm:$0xff]
    %v818 = vld [vmem:[#allocation2 + $0x7f0] sm:$0xff]
    %v819 = vld [vmem:[#allocation2 + $0x7f8] sm:$0xff]
    %v820 = vld [vmem:[%s9] sm:$0xff]
    %v821 = vld [vmem:[%s9 + $0x8] sm:$0xff]
    %v824 = vlaneseq
    %v825 = vshrl.u32 %v824, 7
    %v826 = vsub.s32 0, %v825
    %v827 = vrot.slane %v820, %v826
    %v828 = vlaneseq
    %v829 = vshrl.u32 %v828, 7
    %v830 = vsub.s32 1, %v829
    %v831 = vrot.slane %v820, %v830
    %v832 = vlaneseq
    %v833 = vshrl.u32 %v832, 7
    %v834 = vsub.s32 2, %v833
    %v835 = vrot.slane %v820, %v834
    %v836 = vlaneseq
    %v837 = vshrl.u32 %v836, 7
    %v838 = vsub.s32 3, %v837
    %v839 = vrot.slane %v820, %v838
    %v840 = vlaneseq
    %v841 = vshrl.u32 %v840, 7
    %v842 = vsub.s32 4, %v841
    %v843 = vrot.slane %v820, %v842
    %v844 = vlaneseq
    %v845 = vshrl.u32 %v844, 7
    %v846 = vsub.s32 5, %v845
    %v847 = vrot.slane %v820, %v846
    %v848 = vlaneseq
    %v849 = vshrl.u32 %v848, 7
    %v850 = vsub.s32 6, %v849
    %v851 = vrot.slane %v820, %v850
    %v852 = vlaneseq
    %v853 = vshrl.u32 %v852, 7
    %v854 = vsub.s32 7, %v853
    %v855 = vrot.slane %v820, %v854
    %v856 = vlaneseq
    %v857 = vshrl.u32 %v856, 7
    %v858 = vsub.s32 0, %v857
    %v859 = vrot.slane %v821, %v858
    %v860 = vlaneseq
    %v861 = vshrl.u32 %v860, 7
    %v862 = vsub.s32 1, %v861
    %v863 = vrot.slane %v821, %v862
    %v864 = vlaneseq
    %v865 = vshrl.u32 %v864, 7
    %v866 = vsub.s32 2, %v865
    %v867 = vrot.slane %v821, %v866
    %v868 = vlaneseq
    %v869 = vshrl.u32 %v868, 7
    %v870 = vsub.s32 3, %v869
    %v871 = vrot.slane %v821, %v870
    %v872 = vlaneseq
    %v873 = vshrl.u32 %v872, 7
    %v874 = vsub.s32 4, %v873
    %v875 = vrot.slane %v821, %v874
    %v876 = vlaneseq
    %v877 = vshrl.u32 %v876, 7
    %v878 = vsub.s32 5, %v877
    %v879 = vrot.slane %v821, %v878
    %v880 = vlaneseq
    %v881 = vshrl.u32 %v880, 7
    %v882 = vsub.s32 6, %v881
    %v883 = vrot.slane %v821, %v882
    %v884 = vlaneseq
    %v885 = vshrl.u32 %v884, 7
    %v886 = vsub.s32 7, %v885
    %v887 = vrot.slane %v821, %v886
    %904 = vmatprep.subr.bf16.mxu0 %v565
    %905 = vmatpush1.bf16.msra.mxu0 %v564
    %906 = vmatprep.subr.bf16.mxu0 %v581
    %907 = vmatpush1.bf16.msra.mxu0 %v580
    %908 = vmatprep.subr.bf16.mxu0 %v597
    %909 = vmatpush1.bf16.msra.mxu0 %v596
    %910 = vmatprep.subr.bf16.mxu0 %v613
    %911 = vmatpush1.bf16.msra.mxu0 %v612
    %912 = vmatprep.subr.bf16.mxu0 %v629
    %913 = vmatpush1.bf16.msra.mxu0 %v628
    %914 = vmatprep.subr.bf16.mxu0 %v645
    %915 = vmatpush1.bf16.msra.mxu0 %v644
    %916 = vmatprep.subr.bf16.mxu0 %v661
    %917 = vmatpush1.bf16.msra.mxu0 %v660
    %918 = vmatprep.subr.bf16.mxu0 %v677
    %919 = vmatpush1.bf16.msra.mxu0 %v676
    %920 = vmatprep.subr.bf16.mxu0 %v693
    %921 = vmatpush1.bf16.msra.mxu0 %v692
    %922 = vmatprep.subr.bf16.mxu0 %v709
    %923 = vmatpush1.bf16.msra.mxu0 %v708
    %924 = vmatprep.subr.bf16.mxu0 %v725
    %925 = vmatpush1.bf16.msra.mxu0 %v724
    %926 = vmatprep.subr.bf16.mxu0 %v741
    %927 = vmatpush1.bf16.msra.mxu0 %v740
    %928 = vmatprep.subr.bf16.mxu0 %v757
    %929 = vmatpush1.bf16.msra.mxu0 %v756
    %930 = vmatprep.subr.bf16.mxu0 %v773
    %931 = vmatpush1.bf16.msra.mxu0 %v772
    %932 = vmatprep.subr.bf16.mxu0 %v789
    %933 = vmatpush1.bf16.msra.mxu0 %v788
    %934 = vmatprep.subr.bf16.mxu0 %v805
    %935 = vmatpush1.bf16.msra.mxu0 %v804
    %936 = vmatprep.mubr.bf16.mxu0 %v563
    %937 = vmatmul.mubr.bf16.gmra.mrb[0].mxu0 %v562
    %v938 = vpop.f32.mrb[0].mxu0
    %v939 = vadd.f32 %v827, %v938
    %v940 = vpop.f32.mrb[0].mxu0
    %v941 = vadd.f32 %v831, %v940
    %v942 = vpop.f32.mrb[0].mxu0
    %v943 = vpop.f32.mrb[0].mxu0
    %944 = vdwg.mxu0
    %945 = vmatprep.subr.bf16.mxu0 %v567
    %946 = vmatpush1.bf16.msra.mxu0 %v566
    %947 = vmatprep.subr.bf16.mxu0 %v583
    %948 = vmatpush1.bf16.msra.mxu0 %v582
    %949 = vmatprep.subr.bf16.mxu0 %v599
    %950 = vmatpush1.bf16.msra.mxu0 %v598
    %951 = vmatprep.subr.bf16.mxu0 %v615
    %952 = vmatpush1.bf16.msra.mxu0 %v614
    %953 = vmatprep.subr.bf16.mxu0 %v631
    %954 = vmatpush1.bf16.msra.mxu0 %v630
    %955 = vmatprep.subr.bf16.mxu0 %v647
    %956 = vmatpush1.bf16.msra.mxu0 %v646
    %957 = vmatprep.subr.bf16.mxu0 %v663
    %958 = vmatpush1.bf16.msra.mxu0 %v662
    %959 = vmatprep.subr.bf16.mxu0 %v679
    %960 = vmatpush1.bf16.msra.mxu0 %v678
    %961 = vmatprep.subr.bf16.mxu0 %v695
    %962 = vmatpush1.bf16.msra.mxu0 %v694
    %963 = vmatprep.subr.bf16.mxu0 %v711
    %964 = vmatpush1.bf16.msra.mxu0 %v710
    %965 = vmatprep.subr.bf16.mxu0 %v727
    %966 = vmatpush1.bf16.msra.mxu0 %v726
    %967 = vmatprep.subr.bf16.mxu0 %v743
    %968 = vmatpush1.bf16.msra.mxu0 %v742
    %969 = vmatprep.subr.bf16.mxu0 %v759
    %970 = vmatpush1.bf16.msra.mxu0 %v758
    %971 = vmatprep.subr.bf16.mxu0 %v775
    %972 = vmatpush1.bf16.msra.mxu0 %v774
    %973 = vmatprep.subr.bf16.mxu0 %v791
    %974 = vmatpush1.bf16.msra.mxu0 %v790
    %975 = vmatprep.subr.bf16.mxu0 %v807
    %976 = vmatpush1.bf16.msra.mxu0 %v806
    %977 = vmatprep.mubr.bf16.mxu0 %v563
    %978 = vmatmul.mubr.bf16.gmra.mrb[0].mxu0 %v562
    %v979 = vpop.f32.mrb[0].mxu0
    %v980 = vadd.f32 %v835, %v979
    %v981 = vpop.f32.mrb[0].mxu0
    %v982 = vadd.f32 %v839, %v981
    %v983 = vpop.f32.mrb[0].mxu0
    %v984 = vpop.f32.mrb[0].mxu0
    %985 = vdwg.mxu0
    %986 = vmatprep.subr.bf16.mxu0 %v569
    %987 = vmatpush1.bf16.msra.mxu0 %v568
    %988 = vmatprep.subr.bf16.mxu0 %v585
    %989 = vmatpush1.bf16.msra.mxu0 %v584
    %990 = vmatprep.subr.bf16.mxu0 %v601
    %991 = vmatpush1.bf16.msra.mxu0 %v600
    %992 = vmatprep.subr.bf16.mxu0 %v617
    %993 = vmatpush1.bf16.msra.mxu0 %v616
    %994 = vmatprep.subr.bf16.mxu0 %v633
    %995 = vmatpush1.bf16.msra.mxu0 %v632
    %996 = vmatprep.subr.bf16.mxu0 %v649
    %997 = vmatpush1.bf16.msra.mxu0 %v648
    %998 = vmatprep.subr.bf16.mxu0 %v665
    %999 = vmatpush1.bf16.msra.mxu0 %v664
    %1000 = vmatprep.subr.bf16.mxu0 %v681
    %1001 = vmatpush1.bf16.msra.mxu0 %v680
    %1002 = vmatprep.subr.bf16.mxu0 %v697
    %1003 = vmatpush1.bf16.msra.mxu0 %v696
    %1004 = vmatprep.subr.bf16.mxu0 %v713
    %1005 = vmatpush1.bf16.msra.mxu0 %v712
    %1006 = vmatprep.subr.bf16.mxu0 %v729
    %1007 = vmatpush1.bf16.msra.mxu0 %v728
    %1008 = vmatprep.subr.bf16.mxu0 %v745
    %1009 = vmatpush1.bf16.msra.mxu0 %v744
    %1010 = vmatprep.subr.bf16.mxu0 %v761
    %1011 = vmatpush1.bf16.msra.mxu0 %v760
    %1012 = vmatprep.subr.bf16.mxu0 %v777
    %1013 = vmatpush1.bf16.msra.mxu0 %v776
    %1014 = vmatprep.subr.bf16.mxu0 %v793
    %1015 = vmatpush1.bf16.msra.mxu0 %v792
    %1016 = vmatprep.subr.bf16.mxu0 %v809
    %1017 = vmatpush1.bf16.msra.mxu0 %v808
    %1018 = vmatprep.mubr.bf16.mxu0 %v563
    %1019 = vmatmul.mubr.bf16.gmra.mrb[0].mxu0 %v562
    %v1020 = vpop.f32.mrb[0].mxu0
    %v1021 = vadd.f32 %v843, %v1020
    %v1022 = vpop.f32.mrb[0].mxu0
    %v1023 = vadd.f32 %v847, %v1022
    %v1024 = vpop.f32.mrb[0].mxu0
    %v1025 = vpop.f32.mrb[0].mxu0
    %1026 = vdwg.mxu0
    %1027 = vmatprep.subr.bf16.mxu0 %v571
    %1028 = vmatpush1.bf16.msra.mxu0 %v570
    %1029 = vmatprep.subr.bf16.mxu0 %v587
    %1030 = vmatpush1.bf16.msra.mxu0 %v586
    %1031 = vmatprep.subr.bf16.mxu0 %v603
    %1032 = vmatpush1.bf16.msra.mxu0 %v602
    %1033 = vmatprep.subr.bf16.mxu0 %v619
    %1034 = vmatpush1.bf16.msra.mxu0 %v618
    %1035 = vmatprep.subr.bf16.mxu0 %v635
    %1036 = vmatpush1.bf16.msra.mxu0 %v634
    %1037 = vmatprep.subr.bf16.mxu0 %v651
    %1038 = vmatpush1.bf16.msra.mxu0 %v650
    %1039 = vmatprep.subr.bf16.mxu0 %v667
    %1040 = vmatpush1.bf16.msra.mxu0 %v666
    %1041 = vmatprep.subr.bf16.mxu0 %v683
    %1042 = vmatpush1.bf16.msra.mxu0 %v682
    %1043 = vmatprep.subr.bf16.mxu0 %v699
    %1044 = vmatpush1.bf16.msra.mxu0 %v698
    %1045 = vmatprep.subr.bf16.mxu0 %v715
    %1046 = vmatpush1.bf16.msra.mxu0 %v714
    %1047 = vmatprep.subr.bf16.mxu0 %v731
    %1048 = vmatpush1.bf16.msra.mxu0 %v730
    %1049 = vmatprep.subr.bf16.mxu0 %v747
    %1050 = vmatpush1.bf16.msra.mxu0 %v746
    %1051 = vmatprep.subr.bf16.mxu0 %v763
    %1052 = vmatpush1.bf16.msra.mxu0 %v762
    %1053 = vmatprep.subr.bf16.mxu0 %v779
    %1054 = vmatpush1.bf16.msra.mxu0 %v778
    %1055 = vmatprep.subr.bf16.mxu0 %v795
    %1056 = vmatpush1.bf16.msra.mxu0 %v794
    %1057 = vmatprep.subr.bf16.mxu0 %v811
    %1058 = vmatpush1.bf16.msra.mxu0 %v810
    %1059 = vmatprep.mubr.bf16.mxu0 %v563
    %1060 = vmatmul.mubr.bf16.gmra.mrb[0].mxu0 %v562
    %v1061 = vpop.f32.mrb[0].mxu0
    %v1062 = vadd.f32 %v851, %v1061
    %v1063 = vpop.f32.mrb[0].mxu0
    %v1064 = vadd.f32 %v855, %v1063
    %v1065 = vpop.f32.mrb[0].mxu0
    %v1066 = vpop.f32.mrb[0].mxu0
    %1067 = vdwg.mxu0
    %1068 = vmatprep.subr.bf16.mxu0 %v573
    %1069 = vmatpush1.bf16.msra.mxu0 %v572
    %1070 = vmatprep.subr.bf16.mxu0 %v589
    %1071 = vmatpush1.bf16.msra.mxu0 %v588
    %1072 = vmatprep.subr.bf16.mxu0 %v605
    %1073 = vmatpush1.bf16.msra.mxu0 %v604
    %1074 = vmatprep.subr.bf16.mxu0 %v621
    %1075 = vmatpush1.bf16.msra.mxu0 %v620
    %1076 = vmatprep.subr.bf16.mxu0 %v637
    %1077 = vmatpush1.bf16.msra.mxu0 %v636
    %1078 = vmatprep.subr.bf16.mxu0 %v653
    %1079 = vmatpush1.bf16.msra.mxu0 %v652
    %1080 = vmatprep.subr.bf16.mxu0 %v669
    %1081 = vmatpush1.bf16.msra.mxu0 %v668
    %1082 = vmatprep.subr.bf16.mxu0 %v685
    %1083 = vmatpush1.bf16.msra.mxu0 %v684
    %1084 = vmatprep.subr.bf16.mxu0 %v701
    %1085 = vmatpush1.bf16.msra.mxu0 %v700
    %1086 = vmatprep.subr.bf16.mxu0 %v717
    %1087 = vmatpush1.bf16.msra.mxu0 %v716
    %1088 = vmatprep.subr.bf16.mxu0 %v733
    %1089 = vmatpush1.bf16.msra.mxu0 %v732
    %1090 = vmatprep.subr.bf16.mxu0 %v749
    %1091 = vmatpush1.bf16.msra.mxu0 %v748
    %1092 = vmatprep.subr.bf16.mxu0 %v765
    %1093 = vmatpush1.bf16.msra.mxu0 %v764
    %1094 = vmatprep.subr.bf16.mxu0 %v781
    %1095 = vmatpush1.bf16.msra.mxu0 %v780
    %1096 = vmatprep.subr.bf16.mxu0 %v797
    %1097 = vmatpush1.bf16.msra.mxu0 %v796
    %1098 = vmatprep.subr.bf16.mxu0 %v813
    %1099 = vmatpush1.bf16.msra.mxu0 %v812
    %1100 = vmatprep.mubr.bf16.mxu0 %v563
    %1101 = vmatmul.mubr.bf16.gmra.mrb[0].mxu0 %v562
    %v1102 = vpop.f32.mrb[0].mxu0
    %v1103 = vadd.f32 %v859, %v1102
    %v1104 = vpop.f32.mrb[0].mxu0
    %v1105 = vadd.f32 %v863, %v1104
    %v1106 = vpop.f32.mrb[0].mxu0
    %v1107 = vpop.f32.mrb[0].mxu0
    %1108 = vdwg.mxu0
    %1109 = vmatprep.subr.bf16.mxu0 %v575
    %1110 = vmatpush1.bf16.msra.mxu0 %v574
    %1111 = vmatprep.subr.bf16.mxu0 %v591
    %1112 = vmatpush1.bf16.msra.mxu0 %v590
    %1113 = vmatprep.subr.bf16.mxu0 %v607
    %1114 = vmatpush1.bf16.msra.mxu0 %v606
    %1115 = vmatprep.subr.bf16.mxu0 %v623
    %1116 = vmatpush1.bf16.msra.mxu0 %v622
    %1117 = vmatprep.subr.bf16.mxu0 %v639
    %1118 = vmatpush1.bf16.msra.mxu0 %v638
    %1119 = vmatprep.subr.bf16.mxu0 %v655
    %1120 = vmatpush1.bf16.msra.mxu0 %v654
    %1121 = vmatprep.subr.bf16.mxu0 %v671
    %1122 = vmatpush1.bf16.msra.mxu0 %v670
    %1123 = vmatprep.subr.bf16.mxu0 %v687
    %1124 = vmatpush1.bf16.msra.mxu0 %v686
    %1125 = vmatprep.subr.bf16.mxu0 %v703
    %1126 = vmatpush1.bf16.msra.mxu0 %v702
    %1127 = vmatprep.subr.bf16.mxu0 %v719
    %1128 = vmatpush1.bf16.msra.mxu0 %v718
    %1129 = vmatprep.subr.bf16.mxu0 %v735
    %1130 = vmatpush1.bf16.msra.mxu0 %v734
    %1131 = vmatprep.subr.bf16.mxu0 %v751
    %1132 = vmatpush1.bf16.msra.mxu0 %v750
    %1133 = vmatprep.subr.bf16.mxu0 %v767
    %1134 = vmatpush1.bf16.msra.mxu0 %v766
    %1135 = vmatprep.subr.bf16.mxu0 %v783
    %1136 = vmatpush1.bf16.msra.mxu0 %v782
    %1137 = vmatprep.subr.bf16.mxu0 %v799
    %1138 = vmatpush1.bf16.msra.mxu0 %v798
    %1139 = vmatprep.subr.bf16.mxu0 %v815
    %1140 = vmatpush1.bf16.msra.mxu0 %v814
    %1141 = vmatprep.mubr.bf16.mxu0 %v563
    %1142 = vmatmul.mubr.bf16.gmra.mrb[0].mxu0 %v562
    %v1143 = vpop.f32.mrb[0].mxu0
    %v1144 = vadd.f32 %v867, %v1143
    %v1145 = vpop.f32.mrb[0].mxu0
    %v1146 = vadd.f32 %v871, %v1145
    %v1147 = vpop.f32.mrb[0].mxu0
    %v1148 = vpop.f32.mrb[0].mxu0
    %1149 = vdwg.mxu0
    %1150 = vmatprep.subr.bf16.mxu0 %v577
    %1151 = vmatpush1.bf16.msra.mxu0 %v576
    %1152 = vmatprep.subr.bf16.mxu0 %v593
    %1153 = vmatpush1.bf16.msra.mxu0 %v592
    %1154 = vmatprep.subr.bf16.mxu0 %v609
    %1155 = vmatpush1.bf16.msra.mxu0 %v608
    %1156 = vmatprep.subr.bf16.mxu0 %v625
    %1157 = vmatpush1.bf16.msra.mxu0 %v624
    %1158 = vmatprep.subr.bf16.mxu0 %v641
    %1159 = vmatpush1.bf16.msra.mxu0 %v640
    %1160 = vmatprep.subr.bf16.mxu0 %v657
    %1161 = vmatpush1.bf16.msra.mxu0 %v656
    %1162 = vmatprep.subr.bf16.mxu0 %v673
    %1163 = vmatpush1.bf16.msra.mxu0 %v672
    %1164 = vmatprep.subr.bf16.mxu0 %v689
    %1165 = vmatpush1.bf16.msra.mxu0 %v688
    %1166 = vmatprep.subr.bf16.mxu0 %v705
    %1167 = vmatpush1.bf16.msra.mxu0 %v704
    %1168 = vmatprep.subr.bf16.mxu0 %v721
    %1169 = vmatpush1.bf16.msra.mxu0 %v720
    %1170 = vmatprep.subr.bf16.mxu0 %v737
    %1171 = vmatpush1.bf16.msra.mxu0 %v736
    %1172 = vmatprep.subr.bf16.mxu0 %v753
    %1173 = vmatpush1.bf16.msra.mxu0 %v752
    %1174 = vmatprep.subr.bf16.mxu0 %v769
    %1175 = vmatpush1.bf16.msra.mxu0 %v768
    %1176 = vmatprep.subr.bf16.mxu0 %v785
    %1177 = vmatpush1.bf16.msra.mxu0 %v784
    %1178 = vmatprep.subr.bf16.mxu0 %v801
    %1179 = vmatpush1.bf16.msra.mxu0 %v800
    %1180 = vmatprep.subr.bf16.mxu0 %v817
    %1181 = vmatpush1.bf16.msra.mxu0 %v816
    %1182 = vmatprep.mubr.bf16.mxu0 %v563
    %1183 = vmatmul.mubr.bf16.gmra.mrb[0].mxu0 %v562
    %v1184 = vpop.f32.mrb[0].mxu0
    %v1185 = vadd.f32 %v875, %v1184
    %v1186 = vpop.f32.mrb[0].mxu0
    %v1187 = vadd.f32 %v879, %v1186
    %v1188 = vpop.f32.mrb[0].mxu0
    %v1189 = vpop.f32.mrb[0].mxu0
    %1190 = vdwg.mxu0
    %1191 = vmatprep.subr.bf16.mxu0 %v579
    %1192 = vmatpush1.bf16.msra.mxu0 %v578
    %1193 = vmatprep.subr.bf16.mxu0 %v595
    %1194 = vmatpush1.bf16.msra.mxu0 %v594
    %1195 = vmatprep.subr.bf16.mxu0 %v611
    %1196 = vmatpush1.bf16.msra.mxu0 %v610
    %1197 = vmatprep.subr.bf16.mxu0 %v627
    %1198 = vmatpush1.bf16.msra.mxu0 %v626
    %1199 = vmatprep.subr.bf16.mxu0 %v643
    %1200 = vmatpush1.bf16.msra.mxu0 %v642
    %1201 = vmatprep.subr.bf16.mxu0 %v659
    %1202 = vmatpush1.bf16.msra.mxu0 %v658
    %1203 = vmatprep.subr.bf16.mxu0 %v675
    %1204 = vmatpush1.bf16.msra.mxu0 %v674
    %1205 = vmatprep.subr.bf16.mxu0 %v691
    %1206 = vmatpush1.bf16.msra.mxu0 %v690
    %1207 = vmatprep.subr.bf16.mxu0 %v707
    %1208 = vmatpush1.bf16.msra.mxu0 %v706
    %1209 = vmatprep.subr.bf16.mxu0 %v723
    %1210 = vmatpush1.bf16.msra.mxu0 %v722
    %1211 = vmatprep.subr.bf16.mxu0 %v739
    %1212 = vmatpush1.bf16.msra.mxu0 %v738
    %1213 = vmatprep.subr.bf16.mxu0 %v755
    %1214 = vmatpush1.bf16.msra.mxu0 %v754
    %1215 = vmatprep.subr.bf16.mxu0 %v771
    %1216 = vmatpush1.bf16.msra.mxu0 %v770
    %1217 = vmatprep.subr.bf16.mxu0 %v787
    %1218 = vmatpush1.bf16.msra.mxu0 %v786
    %1219 = vmatprep.subr.bf16.mxu0 %v803
    %1220 = vmatpush1.bf16.msra.mxu0 %v802
    %1221 = vmatprep.subr.bf16.mxu0 %v819
    %1222 = vmatpush1.bf16.msra.mxu0 %v818
    %1223 = vmatprep.mubr.bf16.mxu0 %v563
    %1224 = vmatmul.mubr.bf16.gmra.mrb[0].mxu0 %v562
    %v1225 = vpop.f32.mrb[0].mxu0
    %v1226 = vadd.f32 %v883, %v1225
    %v1227 = vpop.f32.mrb[0].mxu0
    %v1228 = vadd.f32 %v887, %v1227
    %v1229 = vpop.f32.mrb[0].mxu0
    %v1230 = vpop.f32.mrb[0].mxu0
    %1231 = vdwg.mxu0
    %v1232 = vlaneseq
    %v1233 = vshrl.u32 %v1232, 7
    %v1234 = vlaneseq
    %v1235 = vand.u32 %v1234, 127
    %v1236 = vadd.s32 %v1235, 128
    %v1237 = vadd.s32 %v1235, 256
    %v1238 = vadd.s32 %v1235, 384
    %vm1239 = vcmp.lt.s32.totalorder %v1235, 256
    %vm1240 = vcmp.lt.s32.totalorder %v1236, 256
    %vm1241 = vcmp.lt.s32.totalorder %v1237, 256
    %vm1242 = vcmp.lt.s32.totalorder %v1238, 256
    %vm1243 = vcmp.eq.s32.totalorder %v1233, 0
    %vm1244 = vmxor %vm1239, %vm1243
    %vm1245 = vmxor %vm1240, %vm1243
    %vm1246 = vmxor %vm1241, %vm1243
    %vm1247 = vmxor %vm1242, %vm1243
    %vm1248 = vmxor %vm1244, 1
    %vm1249 = vmxor %vm1245, 1
    %vm1250 = vmxor %vm1246, 1
    %vm1251 = vmxor %vm1247, 1
    %v1252 = vsel %vm1248, 1, 0
    %v1253 = vsel %vm1249, 1, 0
    %v1254 = vsel %vm1250, 1, 0
    %v1255 = vsel %vm1251, 1, 0
    %v1256 = vcvt.s32.f32 %v1252
    %v1257 = vcvt.s32.f32 %v1253
    %v1258 = vcvt.s32.f32 %v1254
    %v1259 = vcvt.s32.f32 %v1255
    %s1260 = smul.u32 4, 64
    %s1261 = smul.u32 %s1260, 8
    %s1262 = sshll.u32 %s1261, 4
    %1263 = dma.done [#allocation5], %s1262
    %v1264 = vld [vmem:[#allocation3] sm:$0xff]
    %v1265 = vld [vmem:[#allocation3 + $0x8] sm:$0xff]
    %v1266 = vld [vmem:[#allocation3 + $0x10] sm:$0xff]
    %v1267 = vld [vmem:[#allocation3 + $0x18] sm:$0xff]
    %v1268 = vld [vmem:[#allocation3 + $0x20] sm:$0xff]
    %v1269 = vld [vmem:[#allocation3 + $0x28] sm:$0xff]
    %v1270 = vld [vmem:[#allocation3 + $0x30] sm:$0xff]
    %v1271 = vld [vmem:[#allocation3 + $0x38] sm:$0xff]
    %v1272 = vld [vmem:[#allocation3 + $0x40] sm:$0xff]
    %v1273 = vld [vmem:[#allocation3 + $0x48] sm:$0xff]
    %v1274 = vld [vmem:[#allocation3 + $0x50] sm:$0xff]
    %v1275 = vld [vmem:[#allocation3 + $0x58] sm:$0xff]
    %v1276 = vld [vmem:[#allocation3 + $0x60] sm:$0xff]
    %v1277 = vld [vmem:[#allocation3 + $0x68] sm:$0xff]
    %v1278 = vld [vmem:[#allocation3 + $0x70] sm:$0xff]
    %v1279 = vld [vmem:[#allocation3 + $0x78] sm:$0xff]
    %v1280 = vld [vmem:[#allocation3 + $0x80] sm:$0xff]
    %v1281 = vld [vmem:[#allocation3 + $0x88] sm:$0xff]
    %v1282 = vld [vmem:[#allocation3 + $0x90] sm:$0xff]
    %v1283 = vld [vmem:[#allocation3 + $0x98] sm:$0xff]
    %v1284 = vld [vmem:[#allocation3 + $0xa0] sm:$0xff]
    %v1285 = vld [vmem:[#allocation3 + $0xa8] sm:$0xff]
    %v1286 = vld [vmem:[#allocation3 + $0xb0] sm:$0xff]
    %v1287 = vld [vmem:[#allocation3 + $0xb8] sm:$0xff]
    %v1288 = vld [vmem:[#allocation3 + $0xc0] sm:$0xff]
    %v1289 = vld [vmem:[#allocation3 + $0xc8] sm:$0xff]
    %v1290 = vld [vmem:[#allocation3 + $0xd0] sm:$0xff]
    %v1291 = vld [vmem:[#allocation3 + $0xd8] sm:$0xff]
    %v1292 = vld [vmem:[#allocation3 + $0xe0] sm:$0xff]
    %v1293 = vld [vmem:[#allocation3 + $0xe8] sm:$0xff]
    %v1294 = vld [vmem:[#allocation3 + $0xf0] sm:$0xff]
    %v1295 = vld [vmem:[#allocation3 + $0xf8] sm:$0xff]
    %v1296 = vld [vmem:[#allocation3 + $0x100] sm:$0xff]
    %v1297 = vld [vmem:[#allocation3 + $0x108] sm:$0xff]
    %v1298 = vld [vmem:[#allocation3 + $0x110] sm:$0xff]
    %v1299 = vld [vmem:[#allocation3 + $0x118] sm:$0xff]
    %v1300 = vld [vmem:[#allocation3 + $0x120] sm:$0xff]
    %v1301 = vld [vmem:[#allocation3 + $0x128] sm:$0xff]
    %v1302 = vld [vmem:[#allocation3 + $0x130] sm:$0xff]
    %v1303 = vld [vmem:[#allocation3 + $0x138] sm:$0xff]
    %v1304 = vld [vmem:[#allocation3 + $0x140] sm:$0xff]
    %v1305 = vld [vmem:[#allocation3 + $0x148] sm:$0xff]
    %v1306 = vld [vmem:[#allocation3 + $0x150] sm:$0xff]
    %v1307 = vld [vmem:[#allocation3 + $0x158] sm:$0xff]
    %v1308 = vld [vmem:[#allocation3 + $0x160] sm:$0xff]
    %v1309 = vld [vmem:[#allocation3 + $0x168] sm:$0xff]
    %v1310 = vld [vmem:[#allocation3 + $0x170] sm:$0xff]
    %v1311 = vld [vmem:[#allocation3 + $0x178] sm:$0xff]
    %v1312 = vld [vmem:[#allocation3 + $0x180] sm:$0xff]
    %v1313 = vld [vmem:[#allocation3 + $0x188] sm:$0xff]
    %v1314 = vld [vmem:[#allocation3 + $0x190] sm:$0xff]
    %v1315 = vld [vmem:[#allocation3 + $0x198] sm:$0xff]
    %v1316 = vld [vmem:[#allocation3 + $0x1a0] sm:$0xff]
    %v1317 = vld [vmem:[#allocation3 + $0x1a8] sm:$0xff]
    %v1318 = vld [vmem:[#allocation3 + $0x1b0] sm:$0xff]
    %v1319 = vld [vmem:[#allocation3 + $0x1b8] sm:$0xff]
    %v1320 = vld [vmem:[#allocation3 + $0x1c0] sm:$0xff]
    %v1321 = vld [vmem:[#allocation3 + $0x1c8] sm:$0xff]
    %v1322 = vld [vmem:[#allocation3 + $0x1d0] sm:$0xff]
    %v1323 = vld [vmem:[#allocation3 + $0x1d8] sm:$0xff]
    %v1324 = vld [vmem:[#allocation3 + $0x1e0] sm:$0xff]
    %v1325 = vld [vmem:[#allocation3 + $0x1e8] sm:$0xff]
    %v1326 = vld [vmem:[#allocation3 + $0x1f0] sm:$0xff]
    %v1327 = vld [vmem:[#allocation3 + $0x1f8] sm:$0xff]
    %v1328 = vld [vmem:[#allocation3 + $0x200] sm:$0xff]
    %v1329 = vld [vmem:[#allocation3 + $0x208] sm:$0xff]
    %v1330 = vld [vmem:[#allocation3 + $0x210] sm:$0xff]
    %v1331 = vld [vmem:[#allocation3 + $0x218] sm:$0xff]
    %v1332 = vld [vmem:[#allocation3 + $0x220] sm:$0xff]
    %v1333 = vld [vmem:[#allocation3 + $0x228] sm:$0xff]
    %v1334 = vld [vmem:[#allocation3 + $0x230] sm:$0xff]
    %v1335 = vld [vmem:[#allocation3 + $0x238] sm:$0xff]
    %v1336 = vld [vmem:[#allocation3 + $0x240] sm:$0xff]
    %v1337 = vld [vmem:[#allocation3 + $0x248] sm:$0xff]
    %v1338 = vld [vmem:[#allocation3 + $0x250] sm:$0xff]
    %v1339 = vld [vmem:[#allocation3 + $0x258] sm:$0xff]
    %v1340 = vld [vmem:[#allocation3 + $0x260] sm:$0xff]
    %v1341 = vld [vmem:[#allocation3 + $0x268] sm:$0xff]
    %v1342 = vld [vmem:[#allocation3 + $0x270] sm:$0xff]
    %v1343 = vld [vmem:[#allocation3 + $0x278] sm:$0xff]
    %v1344 = vld [vmem:[#allocation3 + $0x280] sm:$0xff]
    %v1345 = vld [vmem:[#allocation3 + $0x288] sm:$0xff]
    %v1346 = vld [vmem:[#allocation3 + $0x290] sm:$0xff]
    %v1347 = vld [vmem:[#allocation3 + $0x298] sm:$0xff]
    %v1348 = vld [vmem:[#allocation3 + $0x2a0] sm:$0xff]
    %v1349 = vld [vmem:[#allocation3 + $0x2a8] sm:$0xff]
    %v1350 = vld [vmem:[#allocation3 + $0x2b0] sm:$0xff]
    %v1351 = vld [vmem:[#allocation3 + $0x2b8] sm:$0xff]
    %v1352 = vld [vmem:[#allocation3 + $0x2c0] sm:$0xff]
    %v1353 = vld [vmem:[#allocation3 + $0x2c8] sm:$0xff]
    %v1354 = vld [vmem:[#allocation3 + $0x2d0] sm:$0xff]
    %v1355 = vld [vmem:[#allocation3 + $0x2d8] sm:$0xff]
    %v1356 = vld [vmem:[#allocation3 + $0x2e0] sm:$0xff]
    %v1357 = vld [vmem:[#allocation3 + $0x2e8] sm:$0xff]
    %v1358 = vld [vmem:[#allocation3 + $0x2f0] sm:$0xff]
    %v1359 = vld [vmem:[#allocation3 + $0x2f8] sm:$0xff]
    %v1360 = vld [vmem:[#allocation3 + $0x300] sm:$0xff]
    %v1361 = vld [vmem:[#allocation3 + $0x308] sm:$0xff]
    %v1362 = vld [vmem:[#allocation3 + $0x310] sm:$0xff]
    %v1363 = vld [vmem:[#allocation3 + $0x318] sm:$0xff]
    %v1364 = vld [vmem:[#allocation3 + $0x320] sm:$0xff]
    %v1365 = vld [vmem:[#allocation3 + $0x328] sm:$0xff]
    %v1366 = vld [vmem:[#allocation3 + $0x330] sm:$0xff]
    %v1367 = vld [vmem:[#allocation3 + $0x338] sm:$0xff]
    %v1368 = vld [vmem:[#allocation3 + $0x340] sm:$0xff]
    %v1369 = vld [vmem:[#allocation3 + $0x348] sm:$0xff]
    %v1370 = vld [vmem:[#allocation3 + $0x350] sm:$0xff]
    %v1371 = vld [vmem:[#allocation3 + $0x358] sm:$0xff]
    %v1372 = vld [vmem:[#allocation3 + $0x360] sm:$0xff]
    %v1373 = vld [vmem:[#allocation3 + $0x368] sm:$0xff]
    %v1374 = vld [vmem:[#allocation3 + $0x370] sm:$0xff]
    %v1375 = vld [vmem:[#allocation3 + $0x378] sm:$0xff]
    %v1376 = vld [vmem:[#allocation3 + $0x380] sm:$0xff]
    %v1377 = vld [vmem:[#allocation3 + $0x388] sm:$0xff]
    %v1378 = vld [vmem:[#allocation3 + $0x390] sm:$0xff]
    %v1379 = vld [vmem:[#allocation3 + $0x398] sm:$0xff]
    %v1380 = vld [vmem:[#allocation3 + $0x3a0] sm:$0xff]
    %v1381 = vld [vmem:[#allocation3 + $0x3a8] sm:$0xff]
    %v1382 = vld [vmem:[#allocation3 + $0x3b0] sm:$0xff]
    %v1383 = vld [vmem:[#allocation3 + $0x3b8] sm:$0xff]
    %v1384 = vld [vmem:[#allocation3 + $0x3c0] sm:$0xff]
    %v1385 = vld [vmem:[#allocation3 + $0x3c8] sm:$0xff]
    %v1386 = vld [vmem:[#allocation3 + $0x3d0] sm:$0xff]
    %v1387 = vld [vmem:[#allocation3 + $0x3d8] sm:$0xff]
    %v1388 = vld [vmem:[#allocation3 + $0x3e0] sm:$0xff]
    %v1389 = vld [vmem:[#allocation3 + $0x3e8] sm:$0xff]
    %v1390 = vld [vmem:[#allocation3 + $0x3f0] sm:$0xff]
    %v1391 = vld [vmem:[#allocation3 + $0x3f8] sm:$0xff]
    %v1392 = vld [vmem:[#allocation3 + $0x400] sm:$0xff]
    %v1393 = vld [vmem:[#allocation3 + $0x408] sm:$0xff]
    %v1394 = vld [vmem:[#allocation3 + $0x410] sm:$0xff]
    %v1395 = vld [vmem:[#allocation3 + $0x418] sm:$0xff]
    %v1396 = vld [vmem:[#allocation3 + $0x420] sm:$0xff]
    %v1397 = vld [vmem:[#allocation3 + $0x428] sm:$0xff]
    %v1398 = vld [vmem:[#allocation3 + $0x430] sm:$0xff]
    %v1399 = vld [vmem:[#allocation3 + $0x438] sm:$0xff]
    %v1400 = vld [vmem:[#allocation3 + $0x440] sm:$0xff]
    %v1401 = vld [vmem:[#allocation3 + $0x448] sm:$0xff]
    %v1402 = vld [vmem:[#allocation3 + $0x450] sm:$0xff]
    %v1403 = vld [vmem:[#allocation3 + $0x458] sm:$0xff]
    %v1404 = vld [vmem:[#allocation3 + $0x460] sm:$0xff]
    %v1405 = vld [vmem:[#allocation3 + $0x468] sm:$0xff]
    %v1406 = vld [vmem:[#allocation3 + $0x470] sm:$0xff]
    %v1407 = vld [vmem:[#allocation3 + $0x478] sm:$0xff]
    %v1408 = vld [vmem:[#allocation3 + $0x480] sm:$0xff]
    %v1409 = vld [vmem:[#allocation3 + $0x488] sm:$0xff]
    %v1410 = vld [vmem:[#allocation3 + $0x490] sm:$0xff]
    %v1411 = vld [vmem:[#allocation3 + $0x498] sm:$0xff]
    %v1412 = vld [vmem:[#allocation3 + $0x4a0] sm:$0xff]
    %v1413 = vld [vmem:[#allocation3 + $0x4a8] sm:$0xff]
    %v1414 = vld [vmem:[#allocation3 + $0x4b0] sm:$0xff]
    %v1415 = vld [vmem:[#allocation3 + $0x4b8] sm:$0xff]
    %v1416 = vld [vmem:[#allocation3 + $0x4c0] sm:$0xff]
    %v1417 = vld [vmem:[#allocation3 + $0x4c8] sm:$0xff]
    %v1418 = vld [vmem:[#allocation3 + $0x4d0] sm:$0xff]
    %v1419 = vld [vmem:[#allocation3 + $0x4d8] sm:$0xff]
    %v1420 = vld [vmem:[#allocation3 + $0x4e0] sm:$0xff]
    %v1421 = vld [vmem:[#allocation3 + $0x4e8] sm:$0xff]
    %v1422 = vld [vmem:[#allocation3 + $0x4f0] sm:$0xff]
    %v1423 = vld [vmem:[#allocation3 + $0x4f8] sm:$0xff]
    %v1424 = vld [vmem:[#allocation3 + $0x500] sm:$0xff]
    %v1425 = vld [vmem:[#allocation3 + $0x508] sm:$0xff]
    %v1426 = vld [vmem:[#allocation3 + $0x510] sm:$0xff]
    %v1427 = vld [vmem:[#allocation3 + $0x518] sm:$0xff]
    %v1428 = vld [vmem:[#allocation3 + $0x520] sm:$0xff]
    %v1429 = vld [vmem:[#allocation3 + $0x528] sm:$0xff]
    %v1430 = vld [vmem:[#allocation3 + $0x530] sm:$0xff]
    %v1431 = vld [vmem:[#allocation3 + $0x538] sm:$0xff]
    %v1432 = vld [vmem:[#allocation3 + $0x540] sm:$0xff]
    %v1433 = vld [vmem:[#allocation3 + $0x548] sm:$0xff]
    %v1434 = vld [vmem:[#allocation3 + $0x550] sm:$0xff]
    %v1435 = vld [vmem:[#allocation3 + $0x558] sm:$0xff]
    %v1436 = vld [vmem:[#allocation3 + $0x560] sm:$0xff]
    %v1437 = vld [vmem:[#allocation3 + $0x568] sm:$0xff]
    %v1438 = vld [vmem:[#allocation3 + $0x570] sm:$0xff]
    %v1439 = vld [vmem:[#allocation3 + $0x578] sm:$0xff]
    %v1440 = vld [vmem:[#allocation3 + $0x580] sm:$0xff]
    %v1441 = vld [vmem:[#allocation3 + $0x588] sm:$0xff]
    %v1442 = vld [vmem:[#allocation3 + $0x590] sm:$0xff]
    %v1443 = vld [vmem:[#allocation3 + $0x598] sm:$0xff]
    %v1444 = vld [vmem:[#allocation3 + $0x5a0] sm:$0xff]
    %v1445 = vld [vmem:[#allocation3 + $0x5a8] sm:$0xff]
    %v1446 = vld [vmem:[#allocation3 + $0x5b0] sm:$0xff]
    %v1447 = vld [vmem:[#allocation3 + $0x5b8] sm:$0xff]
    %v1448 = vld [vmem:[#allocation3 + $0x5c0] sm:$0xff]
    %v1449 = vld [vmem:[#allocation3 + $0x5c8] sm:$0xff]
    %v1450 = vld [vmem:[#allocation3 + $0x5d0] sm:$0xff]
    %v1451 = vld [vmem:[#allocation3 + $0x5d8] sm:$0xff]
    %v1452 = vld [vmem:[#allocation3 + $0x5e0] sm:$0xff]
    %v1453 = vld [vmem:[#allocation3 + $0x5e8] sm:$0xff]
    %v1454 = vld [vmem:[#allocation3 + $0x5f0] sm:$0xff]
    %v1455 = vld [vmem:[#allocation3 + $0x5f8] sm:$0xff]
    %v1456 = vld [vmem:[#allocation3 + $0x600] sm:$0xff]
    %v1457 = vld [vmem:[#allocation3 + $0x608] sm:$0xff]
    %v1458 = vld [vmem:[#allocation3 + $0x610] sm:$0xff]
    %v1459 = vld [vmem:[#allocation3 + $0x618] sm:$0xff]
    %v1460 = vld [vmem:[#allocation3 + $0x620] sm:$0xff]
    %v1461 = vld [vmem:[#allocation3 + $0x628] sm:$0xff]
    %v1462 = vld [vmem:[#allocation3 + $0x630] sm:$0xff]
    %v1463 = vld [vmem:[#allocation3 + $0x638] sm:$0xff]
    %v1464 = vld [vmem:[#allocation3 + $0x640] sm:$0xff]
    %v1465 = vld [vmem:[#allocation3 + $0x648] sm:$0xff]
    %v1466 = vld [vmem:[#allocation3 + $0x650] sm:$0xff]
    %v1467 = vld [vmem:[#allocation3 + $0x658] sm:$0xff]
    %v1468 = vld [vmem:[#allocation3 + $0x660] sm:$0xff]
    %v1469 = vld [vmem:[#allocation3 + $0x668] sm:$0xff]
    %v1470 = vld [vmem:[#allocation3 + $0x670] sm:$0xff]
    %v1471 = vld [vmem:[#allocation3 + $0x678] sm:$0xff]
    %v1472 = vld [vmem:[#allocation3 + $0x680] sm:$0xff]
    %v1473 = vld [vmem:[#allocation3 + $0x688] sm:$0xff]
    %v1474 = vld [vmem:[#allocation3 + $0x690] sm:$0xff]
    %v1475 = vld [vmem:[#allocation3 + $0x698] sm:$0xff]
    %v1476 = vld [vmem:[#allocation3 + $0x6a0] sm:$0xff]
    %v1477 = vld [vmem:[#allocation3 + $0x6a8] sm:$0xff]
    %v1478 = vld [vmem:[#allocation3 + $0x6b0] sm:$0xff]
    %v1479 = vld [vmem:[#allocation3 + $0x6b8] sm:$0xff]
    %v1480 = vld [vmem:[#allocation3 + $0x6c0] sm:$0xff]
    %v1481 = vld [vmem:[#allocation3 + $0x6c8] sm:$0xff]
    %v1482 = vld [vmem:[#allocation3 + $0x6d0] sm:$0xff]
    %v1483 = vld [vmem:[#allocation3 + $0x6d8] sm:$0xff]
    %v1484 = vld [vmem:[#allocation3 + $0x6e0] sm:$0xff]
    %v1485 = vld [vmem:[#allocation3 + $0x6e8] sm:$0xff]
    %v1486 = vld [vmem:[#allocation3 + $0x6f0] sm:$0xff]
    %v1487 = vld [vmem:[#allocation3 + $0x6f8] sm:$0xff]
    %v1488 = vld [vmem:[#allocation3 + $0x700] sm:$0xff]
    %v1489 = vld [vmem:[#allocation3 + $0x708] sm:$0xff]
    %v1490 = vld [vmem:[#allocation3 + $0x710] sm:$0xff]
    %v1491 = vld [vmem:[#allocation3 + $0x718] sm:$0xff]
    %v1492 = vld [vmem:[#allocation3 + $0x720] sm:$0xff]
    %v1493 = vld [vmem:[#allocation3 + $0x728] sm:$0xff]
    %v1494 = vld [vmem:[#allocation3 + $0x730] sm:$0xff]
    %v1495 = vld [vmem:[#allocation3 + $0x738] sm:$0xff]
    %v1496 = vld [vmem:[#allocation3 + $0x740] sm:$0xff]
    %v1497 = vld [vmem:[#allocation3 + $0x748] sm:$0xff]
    %v1498 = vld [vmem:[#allocation3 + $0x750] sm:$0xff]
    %v1499 = vld [vmem:[#allocation3 + $0x758] sm:$0xff]
    %v1500 = vld [vmem:[#allocation3 + $0x760] sm:$0xff]
    %v1501 = vld [vmem:[#allocation3 + $0x768] sm:$0xff]
    %v1502 = vld [vmem:[#allocation3 + $0x770] sm:$0xff]
    %v1503 = vld [vmem:[#allocation3 + $0x778] sm:$0xff]
    %v1504 = vld [vmem:[#allocation3 + $0x780] sm:$0xff]
    %v1505 = vld [vmem:[#allocation3 + $0x788] sm:$0xff]
    %v1506 = vld [vmem:[#allocation3 + $0x790] sm:$0xff]
    %v1507 = vld [vmem:[#allocation3 + $0x798] sm:$0xff]
    %v1508 = vld [vmem:[#allocation3 + $0x7a0] sm:$0xff]
    %v1509 = vld [vmem:[#allocation3 + $0x7a8] sm:$0xff]
    %v1510 = vld [vmem:[#allocation3 + $0x7b0] sm:$0xff]
    %v1511 = vld [vmem:[#allocation3 + $0x7b8] sm:$0xff]
    %v1512 = vld [vmem:[#allocation3 + $0x7c0] sm:$0xff]
    %v1513 = vld [vmem:[#allocation3 + $0x7c8] sm:$0xff]
    %v1514 = vld [vmem:[#allocation3 + $0x7d0] sm:$0xff]
    %v1515 = vld [vmem:[#allocation3 + $0x7d8] sm:$0xff]
    %v1516 = vld [vmem:[#allocation3 + $0x7e0] sm:$0xff]
    %v1517 = vld [vmem:[#allocation3 + $0x7e8] sm:$0xff]
    %v1518 = vld [vmem:[#allocation3 + $0x7f0] sm:$0xff]
    %v1519 = vld [vmem:[#allocation3 + $0x7f8] sm:$0xff]
    %v1528 = vrot.slane %v1103, 6
    %v1529 = vrot.slane %v1105, 6
    %v1530 = vrot.slane %v1144, 6
    %v1531 = vrot.slane %v1146, 6
    %v1532 = vrot.slane %v1185, 6
    %v1533 = vrot.slane %v1187, 6
    %v1534 = vrot.slane %v1226, 6
    %v1535 = vrot.slane %v1228, 6
    %vm1544 = vcmask 1040384
    %v1545 = vsel %vm1544, %v939, %v1528
    %v1546 = vsel %vm1544, %v941, %v1529
    %v1547 = vsel %vm1544, %v980, %v1530
    %v1548 = vsel %vm1544, %v982, %v1531
    %v1549 = vsel %vm1544, %v1021, %v1532
    %v1550 = vsel %vm1544, %v1023, %v1533
    %v1551 = vsel %vm1544, %v1062, %v1534
    %v1552 = vsel %vm1544, %v1064, %v1535
    %v1553 = vmul.f32 %v1256, 0.0
    %v1554 = vmul.f32 %v1257, 0.0
    %v1555 = vmul.f32 %v1258, 0.0
    %v1556 = vmul.f32 %v1259, 0.0
    %v1557 = vpack.c.bf16 %v1553, %v1553
    %v1558 = vpack.c.bf16 %v1554, %v1554
    %v1559 = vpack.c.bf16 %v1555, %v1555
    %v1560 = vpack.c.bf16 %v1556, %v1556
    %1561 = vmatprep.subr.bf16.mxu0 %v1265
    %1562 = vmatpush1.bf16.msra.mxu0 %v1264
    %1563 = vmatprep.subr.bf16.mxu0 %v1273
    %1564 = vmatpush1.bf16.msra.mxu0 %v1272
    %1565 = vmatprep.subr.bf16.mxu0 %v1281
    %1566 = vmatpush1.bf16.msra.mxu0 %v1280
    %1567 = vmatprep.subr.bf16.mxu0 %v1289
    %1568 = vmatpush1.bf16.msra.mxu0 %v1288
    %1569 = vmatprep.subr.bf16.mxu0 %v1297
    %1570 = vmatpush1.bf16.msra.mxu0 %v1296
    %1571 = vmatprep.subr.bf16.mxu0 %v1305
    %1572 = vmatpush1.bf16.msra.mxu0 %v1304
    %1573 = vmatprep.subr.bf16.mxu0 %v1313
    %1574 = vmatpush1.bf16.msra.mxu0 %v1312
    %1575 = vmatprep.subr.bf16.mxu0 %v1321
    %1576 = vmatpush1.bf16.msra.mxu0 %v1320
    %1577 = vmatprep.subr.bf16.mxu0 %v1329
    %1578 = vmatpush1.bf16.msra.mxu0 %v1328
    %1579 = vmatprep.subr.bf16.mxu0 %v1337
    %1580 = vmatpush1.bf16.msra.mxu0 %v1336
    %1581 = vmatprep.subr.bf16.mxu0 %v1345
    %1582 = vmatpush1.bf16.msra.mxu0 %v1344
    %1583 = vmatprep.subr.bf16.mxu0 %v1353
    %1584 = vmatpush1.bf16.msra.mxu0 %v1352
    %1585 = vmatprep.subr.bf16.mxu0 %v1361
    %1586 = vmatpush1.bf16.msra.mxu0 %v1360
    %1587 = vmatprep.subr.bf16.mxu0 %v1369
    %1588 = vmatpush1.bf16.msra.mxu0 %v1368
    %1589 = vmatprep.subr.bf16.mxu0 %v1377
    %1590 = vmatpush1.bf16.msra.mxu0 %v1376
    %1591 = vmatprep.subr.bf16.mxu0 %v1385
    %1592 = vmatpush1.bf16.msra.mxu0 %v1384
    %1593 = vmatprep.mubr.bf16.mxu0 %v1558
    %1594 = vmatmul.mubr.bf16.gmra.mrb[0].mxu0 %v1557
    %v1595 = vpop.f32.mrb[0].mxu0
    %v1596 = vadd.f32 0.0, %v1595
    %v1597 = vpop.f32.mrb[0].mxu0
    %v1598 = vadd.f32 0.0, %v1597
    %v1599 = vpop.f32.mrb[0].mxu0
    %v1600 = vpop.f32.mrb[0].mxu0
    %1601 = vdwg.mxu0
    %1602 = vmatprep.subr.bf16.mxu0 %v1393
    %1603 = vmatpush1.bf16.msra.mxu0 %v1392
    %1604 = vmatprep.subr.bf16.mxu0 %v1401
    %1605 = vmatpush1.bf16.msra.mxu0 %v1400
    %1606 = vmatprep.subr.bf16.mxu0 %v1409
    %1607 = vmatpush1.bf16.msra.mxu0 %v1408
    %1608 = vmatprep.subr.bf16.mxu0 %v1417
    %1609 = vmatpush1.bf16.msra.mxu0 %v1416
    %1610 = vmatprep.subr.bf16.mxu0 %v1425
    %1611 = vmatpush1.bf16.msra.mxu0 %v1424
    %1612 = vmatprep.subr.bf16.mxu0 %v1433
    %1613 = vmatpush1.bf16.msra.mxu0 %v1432
    %1614 = vmatprep.subr.bf16.mxu0 %v1441
    %1615 = vmatpush1.bf16.msra.mxu0 %v1440
    %1616 = vmatprep.subr.bf16.mxu0 %v1449
    %1617 = vmatpush1.bf16.msra.mxu0 %v1448
    %1618 = vmatprep.subr.bf16.mxu0 %v1457
    %1619 = vmatpush1.bf16.msra.mxu0 %v1456
    %1620 = vmatprep.subr.bf16.mxu0 %v1465
    %1621 = vmatpush1.bf16.msra.mxu0 %v1464
    %1622 = vmatprep.subr.bf16.mxu0 %v1473
    %1623 = vmatpush1.bf16.msra.mxu0 %v1472
    %1624 = vmatprep.subr.bf16.mxu0 %v1481
    %1625 = vmatpush1.bf16.msra.mxu0 %v1480
    %1626 = vmatprep.subr.bf16.mxu0 %v1489
    %1627 = vmatpush1.bf16.msra.mxu0 %v1488
    %1628 = vmatprep.subr.bf16.mxu0 %v1497
    %1629 = vmatpush1.bf16.msra.mxu0 %v1496
    %1630 = vmatprep.subr.bf16.mxu0 %v1505
    %1631 = vmatpush1.bf16.msra.mxu0 %v1504
    %1632 = vmatprep.subr.bf16.mxu0 %v1513
    %1633 = vmatpush1.bf16.msra.mxu0 %v1512
    %1634 = vmatprep.mubr.bf16.mxu0 %v1560
    %1635 = vmatmul.mubr.bf16.gmra.mrb[0].mxu0 %v1559
    %v1636 = vpop.f32.mrb[0].mxu0
    %v1637 = vadd.f32 %v1596, %v1636
    %v1638 = vpop.f32.mrb[0].mxu0
    %v1639 = vadd.f32 %v1598, %v1638
    %v1640 = vpop.f32.mrb[0].mxu0
    %v1641 = vpop.f32.mrb[0].mxu0
    %1642 = vdwg.mxu0
    %1643 = vmatprep.subr.bf16.mxu0 %v1267
    %1644 = vmatpush1.bf16.msra.mxu0 %v1266
    %1645 = vmatprep.subr.bf16.mxu0 %v1275
    %1646 = vmatpush1.bf16.msra.mxu0 %v1274
    %1647 = vmatprep.subr.bf16.mxu0 %v1283
    %1648 = vmatpush1.bf16.msra.mxu0 %v1282
    %1649 = vmatprep.subr.bf16.mxu0 %v1291
    %1650 = vmatpush1.bf16.msra.mxu0 %v1290
    %1651 = vmatprep.subr.bf16.mxu0 %v1299
    %1652 = vmatpush1.bf16.msra.mxu0 %v1298
    %1653 = vmatprep.subr.bf16.mxu0 %v1307
    %1654 = vmatpush1.bf16.msra.mxu0 %v1306
    %1655 = vmatprep.subr.bf16.mxu0 %v1315
    %1656 = vmatpush1.bf16.msra.mxu0 %v1314
    %1657 = vmatprep.subr.bf16.mxu0 %v1323
    %1658 = vmatpush1.bf16.msra.mxu0 %v1322
    %1659 = vmatprep.subr.bf16.mxu0 %v1331
    %1660 = vmatpush1.bf16.msra.mxu0 %v1330
    %1661 = vmatprep.subr.bf16.mxu0 %v1339
    %1662 = vmatpush1.bf16.msra.mxu0 %v1338
    %1663 = vmatprep.subr.bf16.mxu0 %v1347
    %1664 = vmatpush1.bf16.msra.mxu0 %v1346
    %1665 = vmatprep.subr.bf16.mxu0 %v1355
    %1666 = vmatpush1.bf16.msra.mxu0 %v1354
    %1667 = vmatprep.subr.bf16.mxu0 %v1363
    %1668 = vmatpush1.bf16.msra.mxu0 %v1362
    %1669 = vmatprep.subr.bf16.mxu0 %v1371
    %1670 = vmatpush1.bf16.msra.mxu0 %v1370
    %1671 = vmatprep.subr.bf16.mxu0 %v1379
    %1672 = vmatpush1.bf16.msra.mxu0 %v1378
    %1673 = vmatprep.subr.bf16.mxu0 %v1387
    %1674 = vmatpush1.bf16.msra.mxu0 %v1386
    %1675 = vmatprep.mubr.bf16.mxu0 %v1558
    %1676 = vmatmul.mubr.bf16.gmra.mrb[0].mxu0 %v1557
    %v1677 = vpop.f32.mrb[0].mxu0
    %v1678 = vadd.f32 0.0, %v1677
    %v1679 = vpop.f32.mrb[0].mxu0
    %v1680 = vadd.f32 0.0, %v1679
    %v1681 = vpop.f32.mrb[0].mxu0
    %v1682 = vpop.f32.mrb[0].mxu0
    %1683 = vdwg.mxu0
    %1684 = vmatprep.subr.bf16.mxu0 %v1395
    %1685 = vmatpush1.bf16.msra.mxu0 %v1394
    %1686 = vmatprep.subr.bf16.mxu0 %v1403
    %1687 = vmatpush1.bf16.msra.mxu0 %v1402
    %1688 = vmatprep.subr.bf16.mxu0 %v1411
    %1689 = vmatpush1.bf16.msra.mxu0 %v1410
    %1690 = vmatprep.subr.bf16.mxu0 %v1419
    %1691 = vmatpush1.bf16.msra.mxu0 %v1418
    %1692 = vmatprep.subr.bf16.mxu0 %v1427
    %1693 = vmatpush1.bf16.msra.mxu0 %v1426
    %1694 = vmatprep.subr.bf16.mxu0 %v1435
    %1695 = vmatpush1.bf16.msra.mxu0 %v1434
    %1696 = vmatprep.subr.bf16.mxu0 %v1443
    %1697 = vmatpush1.bf16.msra.mxu0 %v1442
    %1698 = vmatprep.subr.bf16.mxu0 %v1451
    %1699 = vmatpush1.bf16.msra.mxu0 %v1450
    %1700 = vmatprep.subr.bf16.mxu0 %v1459
    %1701 = vmatpush1.bf16.msra.mxu0 %v1458
    %1702 = vmatprep.subr.bf16.mxu0 %v1467
    %1703 = vmatpush1.bf16.msra.mxu0 %v1466
    %1704 = vmatprep.subr.bf16.mxu0 %v1475
    %1705 = vmatpush1.bf16.msra.mxu0 %v1474
    %1706 = vmatprep.subr.bf16.mxu0 %v1483
    %1707 = vmatpush1.bf16.msra.mxu0 %v1482
    %1708 = vmatprep.subr.bf16.mxu0 %v1491
    %1709 = vmatpush1.bf16.msra.mxu0 %v1490
    %1710 = vmatprep.subr.bf16.mxu0 %v1499
    %1711 = vmatpush1.bf16.msra.mxu0 %v1498
    %1712 = vmatprep.subr.bf16.mxu0 %v1507
    %1713 = vmatpush1.bf16.msra.mxu0 %v1506
    %1714 = vmatprep.subr.bf16.mxu0 %v1515
    %1715 = vmatpush1.bf16.msra.mxu0 %v1514
    %1716 = vmatprep.mubr.bf16.mxu0 %v1560
    %1717 = vmatmul.mubr.bf16.gmra.mrb[0].mxu0 %v1559
    %v1718 = vpop.f32.mrb[0].mxu0
    %v1719 = vadd.f32 %v1678, %v1718
    %v1720 = vpop.f32.mrb[0].mxu0
    %v1721 = vadd.f32 %v1680, %v1720
    %v1722 = vpop.f32.mrb[0].mxu0
    %v1723 = vpop.f32.mrb[0].mxu0
    %1724 = vdwg.mxu0
    %1725 = vmatprep.subr.bf16.mxu0 %v1269
    %1726 = vmatpush1.bf16.msra.mxu0 %v1268
    %1727 = vmatprep.subr.bf16.mxu0 %v1277
    %1728 = vmatpush1.bf16.msra.mxu0 %v1276
    %1729 = vmatprep.subr.bf16.mxu0 %v1285
    %1730 = vmatpush1.bf16.msra.mxu0 %v1284
    %1731 = vmatprep.subr.bf16.mxu0 %v1293
    %1732 = vmatpush1.bf16.msra.mxu0 %v1292
    %1733 = vmatprep.subr.bf16.mxu0 %v1301
    %1734 = vmatpush1.bf16.msra.mxu0 %v1300
    %1735 = vmatprep.subr.bf16.mxu0 %v1309
    %1736 = vmatpush1.bf16.msra.mxu0 %v1308
    %1737 = vmatprep.subr.bf16.mxu0 %v1317
    %1738 = vmatpush1.bf16.msra.mxu0 %v1316
    %1739 = vmatprep.subr.bf16.mxu0 %v1325
    %1740 = vmatpush1.bf16.msra.mxu0 %v1324
    %1741 = vmatprep.subr.bf16.mxu0 %v1333
    %1742 = vmatpush1.bf16.msra.mxu0 %v1332
    %1743 = vmatprep.subr.bf16.mxu0 %v1341
    %1744 = vmatpush1.bf16.msra.mxu0 %v1340
    %1745 = vmatprep.subr.bf16.mxu0 %v1349
    %1746 = vmatpush1.bf16.msra.mxu0 %v1348
    %1747 = vmatprep.subr.bf16.mxu0 %v1357
    %1748 = vmatpush1.bf16.msra.mxu0 %v1356
    %1749 = vmatprep.subr.bf16.mxu0 %v1365
    %1750 = vmatpush1.bf16.msra.mxu0 %v1364
    %1751 = vmatprep.subr.bf16.mxu0 %v1373
    %1752 = vmatpush1.bf16.msra.mxu0 %v1372
    %1753 = vmatprep.subr.bf16.mxu0 %v1381
    %1754 = vmatpush1.bf16.msra.mxu0 %v1380
    %1755 = vmatprep.subr.bf16.mxu0 %v1389
    %1756 = vmatpush1.bf16.msra.mxu0 %v1388
    %1757 = vmatprep.mubr.bf16.mxu0 %v1558
    %1758 = vmatmul.mubr.bf16.gmra.mrb[0].mxu0 %v1557
    %v1759 = vpop.f32.mrb[0].mxu0
    %v1760 = vadd.f32 0.0, %v1759
    %v1761 = vpop.f32.mrb[0].mxu0
    %v1762 = vadd.f32 0.0, %v1761
    %v1763 = vpop.f32.mrb[0].mxu0
    %v1764 = vpop.f32.mrb[0].mxu0
    %1765 = vdwg.mxu0
    %1766 = vmatprep.subr.bf16.mxu0 %v1397
    %1767 = vmatpush1.bf16.msra.mxu0 %v1396
    %1768 = vmatprep.subr.bf16.mxu0 %v1405
    %1769 = vmatpush1.bf16.msra.mxu0 %v1404
    %1770 = vmatprep.subr.bf16.mxu0 %v1413
    %1771 = vmatpush1.bf16.msra.mxu0 %v1412
    %1772 = vmatprep.subr.bf16.mxu0 %v1421
    %1773 = vmatpush1.bf16.msra.mxu0 %v1420
    %1774 = vmatprep.subr.bf16.mxu0 %v1429
    %1775 = vmatpush1.bf16.msra.mxu0 %v1428
    %1776 = vmatprep.subr.bf16.mxu0 %v1437
    %1777 = vmatpush1.bf16.msra.mxu0 %v1436
    %1778 = vmatprep.subr.bf16.mxu0 %v1445
    %1779 = vmatpush1.bf16.msra.mxu0 %v1444
    %1780 = vmatprep.subr.bf16.mxu0 %v1453
    %1781 = vmatpush1.bf16.msra.mxu0 %v1452
    %1782 = vmatprep.subr.bf16.mxu0 %v1461
    %1783 = vmatpush1.bf16.msra.mxu0 %v1460
    %1784 = vmatprep.subr.bf16.mxu0 %v1469
    %1785 = vmatpush1.bf16.msra.mxu0 %v1468
    %1786 = vmatprep.subr.bf16.mxu0 %v1477
    %1787 = vmatpush1.bf16.msra.mxu0 %v1476
    %1788 = vmatprep.subr.bf16.mxu0 %v1485
    %1789 = vmatpush1.bf16.msra.mxu0 %v1484
    %1790 = vmatprep.subr.bf16.mxu0 %v1493
    %1791 = vmatpush1.bf16.msra.mxu0 %v1492
    %1792 = vmatprep.subr.bf16.mxu0 %v1501
    %1793 = vmatpush1.bf16.msra.mxu0 %v1500
    %1794 = vmatprep.subr.bf16.mxu0 %v1509
    %1795 = vmatpush1.bf16.msra.mxu0 %v1508
    %1796 = vmatprep.subr.bf16.mxu0 %v1517
    %1797 = vmatpush1.bf16.msra.mxu0 %v1516
    %1798 = vmatprep.mubr.bf16.mxu0 %v1560
    %1799 = vmatmul.mubr.bf16.gmra.mrb[0].mxu0 %v1559
    %v1800 = vpop.f32.mrb[0].mxu0
    %v1801 = vadd.f32 %v1760, %v1800
    %v1802 = vpop.f32.mrb[0].mxu0
    %v1803 = vadd.f32 %v1762, %v1802
    %v1804 = vpop.f32.mrb[0].mxu0
    %v1805 = vpop.f32.mrb[0].mxu0
    %1806 = vdwg.mxu0
    %1807 = vmatprep.subr.bf16.mxu0 %v1271
    %1808 = vmatpush1.bf16.msra.mxu0 %v1270
    %1809 = vmatprep.subr.bf16.mxu0 %v1279
    %1810 = vmatpush1.bf16.msra.mxu0 %v1278
    %1811 = vmatprep.subr.bf16.mxu0 %v1287
    %1812 = vmatpush1.bf16.msra.mxu0 %v1286
    %1813 = vmatprep.subr.bf16.mxu0 %v1295
    %1814 = vmatpush1.bf16.msra.mxu0 %v1294
    %1815 = vmatprep.subr.bf16.mxu0 %v1303
    %1816 = vmatpush1.bf16.msra.mxu0 %v1302
    %1817 = vmatprep.subr.bf16.mxu0 %v1311
    %1818 = vmatpush1.bf16.msra.mxu0 %v1310
    %1819 = vmatprep.subr.bf16.mxu0 %v1319
    %1820 = vmatpush1.bf16.msra.mxu0 %v1318
    %1821 = vmatprep.subr.bf16.mxu0 %v1327
    %1822 = vmatpush1.bf16.msra.mxu0 %v1326
    %1823 = vmatprep.subr.bf16.mxu0 %v1335
    %1824 = vmatpush1.bf16.msra.mxu0 %v1334
    %1825 = vmatprep.subr.bf16.mxu0 %v1343
    %1826 = vmatpush1.bf16.msra.mxu0 %v1342
    %1827 = vmatprep.subr.bf16.mxu0 %v1351
    %1828 = vmatpush1.bf16.msra.mxu0 %v1350
    %1829 = vmatprep.subr.bf16.mxu0 %v1359
    %1830 = vmatpush1.bf16.msra.mxu0 %v1358
    %1831 = vmatprep.subr.bf16.mxu0 %v1367
    %1832 = vmatpush1.bf16.msra.mxu0 %v1366
    %1833 = vmatprep.subr.bf16.mxu0 %v1375
    %1834 = vmatpush1.bf16.msra.mxu0 %v1374
    %1835 = vmatprep.subr.bf16.mxu0 %v1383
    %1836 = vmatpush1.bf16.msra.mxu0 %v1382
    %1837 = vmatprep.subr.bf16.mxu0 %v1391
    %1838 = vmatpush1.bf16.msra.mxu0 %v1390
    %1839 = vmatprep.mubr.bf16.mxu0 %v1558
    %1840 = vmatmul.mubr.bf16.gmra.mrb[0].mxu0 %v1557
    %v1841 = vpop.f32.mrb[0].mxu0
    %v1842 = vadd.f32 0.0, %v1841
    %v1843 = vpop.f32.mrb[0].mxu0
    %v1844 = vadd.f32 0.0, %v1843
    %v1845 = vpop.f32.mrb[0].mxu0
    %v1846 = vpop.f32.mrb[0].mxu0
    %1847 = vdwg.mxu0
    %1848 = vmatprep.subr.bf16.mxu0 %v1399
    %1849 = vmatpush1.bf16.msra.mxu0 %v1398
    %1850 = vmatprep.subr.bf16.mxu0 %v1407
    %1851 = vmatpush1.bf16.msra.mxu0 %v1406
    %1852 = vmatprep.subr.bf16.mxu0 %v1415
    %1853 = vmatpush1.bf16.msra.mxu0 %v1414
    %1854 = vmatprep.subr.bf16.mxu0 %v1423
    %1855 = vmatpush1.bf16.msra.mxu0 %v1422
    %1856 = vmatprep.subr.bf16.mxu0 %v1431
    %1857 = vmatpush1.bf16.msra.mxu0 %v1430
    %1858 = vmatprep.subr.bf16.mxu0 %v1439
    %1859 = vmatpush1.bf16.msra.mxu0 %v1438
    %1860 = vmatprep.subr.bf16.mxu0 %v1447
    %1861 = vmatpush1.bf16.msra.mxu0 %v1446
    %1862 = vmatprep.subr.bf16.mxu0 %v1455
    %1863 = vmatpush1.bf16.msra.mxu0 %v1454
    %1864 = vmatprep.subr.bf16.mxu0 %v1463
    %1865 = vmatpush1.bf16.msra.mxu0 %v1462
    %1866 = vmatprep.subr.bf16.mxu0 %v1471
    %1867 = vmatpush1.bf16.msra.mxu0 %v1470
    %1868 = vmatprep.subr.bf16.mxu0 %v1479
    %1869 = vmatpush1.bf16.msra.mxu0 %v1478
    %1870 = vmatprep.subr.bf16.mxu0 %v1487
    %1871 = vmatpush1.bf16.msra.mxu0 %v1486
    %1872 = vmatprep.subr.bf16.mxu0 %v1495
    %1873 = vmatpush1.bf16.msra.mxu0 %v1494
    %1874 = vmatprep.subr.bf16.mxu0 %v1503
    %1875 = vmatpush1.bf16.msra.mxu0 %v1502
    %1876 = vmatprep.subr.bf16.mxu0 %v1511
    %1877 = vmatpush1.bf16.msra.mxu0 %v1510
    %1878 = vmatprep.subr.bf16.mxu0 %v1519
    %1879 = vmatpush1.bf16.msra.mxu0 %v1518
    %1880 = vmatprep.mubr.bf16.mxu0 %v1560
    %1881 = vmatmul.mubr.bf16.gmra.mrb[0].mxu0 %v1559
    %v1882 = vpop.f32.mrb[0].mxu0
    %v1883 = vadd.f32 %v1842, %v1882
    %v1884 = vpop.f32.mrb[0].mxu0
    %v1885 = vadd.f32 %v1844, %v1884
    %v1886 = vpop.f32.mrb[0].mxu0
    %v1887 = vpop.f32.mrb[0].mxu0
    %1888 = vdwg.mxu0
    %v1889 = vadd.f32 %v1545, %v1637
    %v1890 = vadd.f32 %v1546, %v1639
    %v1891 = vadd.f32 %v1547, %v1719
    %v1892 = vadd.f32 %v1548, %v1721
    %v1893 = vadd.f32 %v1549, %v1801
    %v1894 = vadd.f32 %v1550, %v1803
    %v1895 = vadd.f32 %v1551, %v1883
    %v1896 = vadd.f32 %v1552, %v1885
    %v1897 = vxor.u32 %v1889, 2147483648
    %v1898 = vxor.u32 %v1890, 2147483648
    %v1899 = vxor.u32 %v1891, 2147483648
    %v1900 = vxor.u32 %v1892, 2147483648
    %v1901 = vxor.u32 %v1893, 2147483648
    %v1902 = vxor.u32 %v1894, 2147483648
    %v1903 = vmul.f32 %v1897, 1.442695
    %v1904 = vpow.pop %v1903
    %v1905 = vmul.f32 %v1898, 1.442695
    %v1906 = vpow.pop %v1905
    %v1907 = vmul.f32 %v1899, 1.442695
    %v1908 = vpow.pop %v1907
    %v1909 = vmul.f32 %v1900, 1.442695
    %v1910 = vpow.pop %v1909
    %v1911 = vmul.f32 %v1901, 1.442695
    %v1912 = vpow.pop %v1911
    %v1913 = vmul.f32 %v1902, 1.442695
    %v1914 = vpow.pop %v1913
    %v1915 = vadd.f32 %v1904, 1.0
    %v1916 = vadd.f32 %v1906, 1.0
    %v1917 = vadd.f32 %v1908, 1.0
    %v1918 = vadd.f32 %v1910, 1.0
    %v1919 = vadd.f32 %v1912, 1.0
    %v1920 = vadd.f32 %v1914, 1.0
    %v1921 = vrcp.pop %v1915
    %v1922 = vmul.f32 1.0, %v1921
    %v1923 = vrcp.pop %v1916
    %v1924 = vmul.f32 1.0, %v1923
    %v1925 = vrcp.pop %v1917
    %v1926 = vmul.f32 1.0, %v1925
    %v1927 = vrcp.pop %v1918
    %v1928 = vmul.f32 1.0, %v1927
    %v1929 = vrcp.pop %v1919
    %v1930 = vmul.f32 1.0, %v1929
    %v1931 = vrcp.pop %v1920
    %v1932 = vmul.f32 1.0, %v1931
    %v1933 = vtanh.pop %v1895
    %v1934 = vtanh.pop %v1896
    %v1935 = vmul.f32 %v1926, 0.0
    %v1936 = vmul.f32 %v1928, 0.0
    %v1937 = vmul.f32 %v1922, %v1933
    %v1938 = vmul.f32 %v1924, %v1934
    %v1939 = vadd.f32 %v1935, %v1937
    %v1940 = vadd.f32 %v1936, %v1938
    %v1941 = vtanh.pop %v1939
    %v1942 = vtanh.pop %v1940
    %v1943 = vmul.f32 %v1930, %v1941
    %v1944 = vmul.f32 %v1932, %v1942
    %v1953 = vrot.slane %v939, 1
    %v1954 = vrot.slane %v941, 1
    %v1955 = vrot.slane %v980, 1
    %v1956 = vrot.slane %v982, 1
    %v1957 = vrot.slane %v1021, 1
    %v1958 = vrot.slane %v1023, 1
    %v1959 = vrot.slane %v1062, 1
    %v1960 = vrot.slane %v1064, 1
    %v1969 = vrot.slane %v1103, 5
    %v1970 = vrot.slane %v1105, 5
    %v1971 = vrot.slane %v1144, 5
    %v1972 = vrot.slane %v1146, 5
    %v1973 = vrot.slane %v1185, 5
    %v1974 = vrot.slane %v1187, 5
    %v1975 = vrot.slane %v1226, 5
    %v1976 = vrot.slane %v1228, 5
    %v1985 = vsel %vm1544, %v1953, %v1969
    %v1986 = vsel %vm1544, %v1954, %v1970
    %v1987 = vsel %vm1544, %v1955, %v1971
    %v1988 = vsel %vm1544, %v1956, %v1972
    %v1989 = vsel %vm1544, %v1957, %v1973
    %v1990 = vsel %vm1544, %v1958, %v1974
    %v1991 = vsel %vm1544, %v1959, %v1975
    %v1992 = vsel %vm1544, %v1960, %v1976
    %v1993 = vmul.f32 %v1943, %v1256
    %v1994 = vmul.f32 %v1944, %v1257
    %v1995 = vmul.f32 %v1943, %v1258
    %v1996 = vmul.f32 %v1944, %v1259
    %v1997 = vpack.c.bf16 %v1993, %v1993
    %v1998 = vpack.c.bf16 %v1994, %v1994
    %v1999 = vpack.c.bf16 %v1995, %v1995
    %v2000 = vpack.c.bf16 %v1996, %v1996
    %2001 = vmatprep.subr.bf16.mxu0 %v1265
    %2002 = vmatpush1.bf16.msra.mxu0 %v1264
    %2003 = vmatprep.subr.bf16.mxu0 %v1273
    %2004 = vmatpush1.bf16.msra.mxu0 %v1272
    %2005 = vmatprep.subr.bf16.mxu0 %v1281
    %2006 = vmatpush1.bf16.msra.mxu0 %v1280
    %2007 = vmatprep.subr.bf16.mxu0 %v1289
    %2008 = vmatpush1.bf16.msra.mxu0 %v1288
    %2009 = vmatprep.subr.bf16.mxu0 %v1297
    %2010 = vmatpush1.bf16.msra.mxu0 %v1296
    %2011 = vmatprep.subr.bf16.mxu0 %v1305
    %2012 = vmatpush1.bf16.msra.mxu0 %v1304
    %2013 = vmatprep.subr.bf16.mxu0 %v1313
    %2014 = vmatpush1.bf16.msra.mxu0 %v1312
    %2015 = vmatprep.subr.bf16.mxu0 %v1321
    %2016 = vmatpush1.bf16.msra.mxu0 %v1320
    %2017 = vmatprep.subr.bf16.mxu0 %v1329
    %2018 = vmatpush1.bf16.msra.mxu0 %v1328
    %2019 = vmatprep.subr.bf16.mxu0 %v1337
    %2020 = vmatpush1.bf16.msra.mxu0 %v1336
    %2021 = vmatprep.subr.bf16.mxu0 %v1345
    %2022 = vmatpush1.bf16.msra.mxu0 %v1344
    %2023 = vmatprep.subr.bf16.mxu0 %v1353
    %2024 = vmatpush1.bf16.msra.mxu0 %v1352
    %2025 = vmatprep.subr.bf16.mxu0 %v1361
    %2026 = vmatpush1.bf16.msra.mxu0 %v1360
    %2027 = vmatprep.subr.bf16.mxu0 %v1369
    %2028 = vmatpush1.bf16.msra.mxu0 %v1368
    %2029 = vmatprep.subr.bf16.mxu0 %v1377
    %2030 = vmatpush1.bf16.msra.mxu0 %v1376
    %2031 = vmatprep.subr.bf16.mxu0 %v1385
    %2032 = vmatpush1.bf16.msra.mxu0 %v1384
    %2033 = vmatprep.mubr.bf16.mxu0 %v1998
    %2034 = vmatmul.mubr.bf16.gmra.mrb[0].mxu0 %v1997
    %v2035 = vpop.f32.mrb[0].mxu0
    %v2036 = vadd.f32 0.0, %v2035
    %v2037 = vpop.f32.mrb[0].mxu0
    %v2038 = vadd.f32 0.0, %v2037
    %v2039 = vpop.f32.mrb[0].mxu0
    %v2040 = vpop.f32.mrb[0].mxu0
    %2041 = vdwg.mxu0
    %2042 = vmatprep.subr.bf16.mxu0 %v1393
    %2043 = vmatpush1.bf16.msra.mxu0 %v1392
    %2044 = vmatprep.subr.bf16.mxu0 %v1401
    %2045 = vmatpush1.bf16.msra.mxu0 %v1400
    %2046 = vmatprep.subr.bf16.mxu0 %v1409
    %2047 = vmatpush1.bf16.msra.mxu0 %v1408
    %2048 = vmatprep.subr.bf16.mxu0 %v1417
    %2049 = vmatpush1.bf16.msra.mxu0 %v1416
    %2050 = vmatprep.subr.bf16.mxu0 %v1425
    %2051 = vmatpush1.bf16.msra.mxu0 %v1424
    %2052 = vmatprep.subr.bf16.mxu0 %v1433
    %2053 = vmatpush1.bf16.msra.mxu0 %v1432
    %2054 = vmatprep.subr.bf16.mxu0 %v1441
    %2055 = vmatpush1.bf16.msra.mxu0 %v1440
    %2056 = vmatprep.subr.bf16.mxu0 %v1449
    %2057 = vmatpush1.bf16.msra.mxu0 %v1448
    %2058 = vmatprep.subr.bf16.mxu0 %v1457
    %2059 = vmatpush1.bf16.msra.mxu0 %v1456
    %2060 = vmatprep.subr.bf16.mxu0 %v1465
    %2061 = vmatpush1.bf16.msra.mxu0 %v1464
    %2062 = vmatprep.subr.bf16.mxu0 %v1473
    %2063 = vmatpush1.bf16.msra.mxu0 %v1472
    %2064 = vmatprep.subr.bf16.mxu0 %v1481
    %2065 = vmatpush1.bf16.msra.mxu0 %v1480
    %2066 = vmatprep.subr.bf16.mxu0 %v1489
    %2067 = vmatpush1.bf16.msra.mxu0 %v1488
    %2068 = vmatprep.subr.bf16.mxu0 %v1497
    %2069 = vmatpush1.bf16.msra.mxu0 %v1496
    %2070 = vmatprep.subr.bf16.mxu0 %v1505
    %2071 = vmatpush1.bf16.msra.mxu0 %v1504
    %2072 = vmatprep.subr.bf16.mxu0 %v1513
    %2073 = vmatpush1.bf16.msra.mxu0 %v1512
    %2074 = vmatprep.mubr.bf16.mxu0 %v2000
    %2075 = vmatmul.mubr.bf16.gmra.mrb[0].mxu0 %v1999
    %v2076 = vpop.f32.mrb[0].mxu0
    %v2077 = vadd.f32 %v2036, %v2076
    %v2078 = vpop.f32.mrb[0].mxu0
    %v2079 = vadd.f32 %v2038, %v2078
    %v2080 = vpop.f32.mrb[0].mxu0
    %v2081 = vpop.f32.mrb[0].mxu0
    %2082 = vdwg.mxu0
    %2083 = vmatprep.subr.bf16.mxu0 %v1267
    %2084 = vmatpush1.bf16.msra.mxu0 %v1266
    %2085 = vmatprep.subr.bf16.mxu0 %v1275
    %2086 = vmatpush1.bf16.msra.mxu0 %v1274
    %2087 = vmatprep.subr.bf16.mxu0 %v1283
    %2088 = vmatpush1.bf16.msra.mxu0 %v1282
    %2089 = vmatprep.subr.bf16.mxu0 %v1291
    %2090 = vmatpush1.bf16.msra.mxu0 %v1290
    %2091 = vmatprep.subr.bf16.mxu0 %v1299
    %2092 = vmatpush1.bf16.msra.mxu0 %v1298
    %2093 = vmatprep.subr.bf16.mxu0 %v1307
    %2094 = vmatpush1.bf16.msra.mxu0 %v1306
    %2095 = vmatprep.subr.bf16.mxu0 %v1315
    %2096 = vmatpush1.bf16.msra.mxu0 %v1314
    %2097 = vmatprep.subr.bf16.mxu0 %v1323
    %2098 = vmatpush1.bf16.msra.mxu0 %v1322
    %2099 = vmatprep.subr.bf16.mxu0 %v1331
    %2100 = vmatpush1.bf16.msra.mxu0 %v1330
    %2101 = vmatprep.subr.bf16.mxu0 %v1339
    %2102 = vmatpush1.bf16.msra.mxu0 %v1338
    %2103 = vmatprep.subr.bf16.mxu0 %v1347
    %2104 = vmatpush1.bf16.msra.mxu0 %v1346
    %2105 = vmatprep.subr.bf16.mxu0 %v1355
    %2106 = vmatpush1.bf16.msra.mxu0 %v1354
    %2107 = vmatprep.subr.bf16.mxu0 %v1363
    %2108 = vmatpush1.bf16.msra.mxu0 %v1362
    %2109 = vmatprep.subr.bf16.mxu0 %v1371
    %2110 = vmatpush1.bf16.msra.mxu0 %v1370
    %2111 = vmatprep.subr.bf16.mxu0 %v1379
    %2112 = vmatpush1.bf16.msra.mxu0 %v1378
    %2113 = vmatprep.subr.bf16.mxu0 %v1387
    %2114 = vmatpush1.bf16.msra.mxu0 %v1386
    %2115 = vmatprep.mubr.bf16.mxu0 %v1998
    %2116 = vmatmul.mubr.bf16.gmra.mrb[0].mxu0 %v1997
    %v2117 = vpop.f32.mrb[0].mxu0
    %v2118 = vadd.f32 0.0, %v2117
    %v2119 = vpop.f32.mrb[0].mxu0
    %v2120 = vadd.f32 0.0, %v2119
    %v2121 = vpop.f32.mrb[0].mxu0
    %v2122 = vpop.f32.mrb[0].mxu0
    %2123 = vdwg.mxu0
    %2124 = vmatprep.subr.bf16.mxu0 %v1395
    %2125 = vmatpush1.bf16.msra.mxu0 %v1394
    %2126 = vmatprep.subr.bf16.mxu0 %v1403
    %2127 = vmatpush1.bf16.msra.mxu0 %v1402
    %2128 = vmatprep.subr.bf16.mxu0 %v1411
    %2129 = vmatpush1.bf16.msra.mxu0 %v1410
    %2130 = vmatprep.subr.bf16.mxu0 %v1419
    %2131 = vmatpush1.bf16.msra.mxu0 %v1418
    %2132 = vmatprep.subr.bf16.mxu0 %v1427
    %2133 = vmatpush1.bf16.msra.mxu0 %v1426
    %2134 = vmatprep.subr.bf16.mxu0 %v1435
    %2135 = vmatpush1.bf16.msra.mxu0 %v1434
    %2136 = vmatprep.subr.bf16.mxu0 %v1443
    %2137 = vmatpush1.bf16.msra.mxu0 %v1442
    %2138 = vmatprep.subr.bf16.mxu0 %v1451
    %2139 = vmatpush1.bf16.msra.mxu0 %v1450
    %2140 = vmatprep.subr.bf16.mxu0 %v1459
    %2141 = vmatpush1.bf16.msra.mxu0 %v1458
    %2142 = vmatprep.subr.bf16.mxu0 %v1467
    %2143 = vmatpush1.bf16.msra.mxu0 %v1466
    %2144 = vmatprep.subr.bf16.mxu0 %v1475
    %2145 = vmatpush1.bf16.msra.mxu0 %v1474
    %2146 = vmatprep.subr.bf16.mxu0 %v1483
    %2147 = vmatpush1.bf16.msra.mxu0 %v1482
    %2148 = vmatprep.subr.bf16.mxu0 %v1491
    %2149 = vmatpush1.bf16.msra.mxu0 %v1490
    %2150 = vmatprep.subr.bf16.mxu0 %v1499
    %2151 = vmatpush1.bf16.msra.mxu0 %v1498
    %2152 = vmatprep.subr.bf16.mxu0 %v1507
    %2153 = vmatpush1.bf16.msra.mxu0 %v1506
    %2154 = vmatprep.subr.bf16.mxu0 %v1515
    %2155 = vmatpush1.bf16.msra.mxu0 %v1514
    %2156 = vmatprep.mubr.bf16.mxu0 %v2000
    %2157 = vmatmul.mubr.bf16.gmra.mrb[0].mxu0 %v1999
    %v2158 = vpop.f32.mrb[0].mxu0
    %v2159 = vadd.f32 %v2118, %v2158
    %v2160 = vpop.f32.mrb[0].mxu0
    %v2161 = vadd.f32 %v2120, %v2160
    %v2162 = vpop.f32.mrb[0].mxu0
    %v2163 = vpop.f32.mrb[0].mxu0
    %2164 = vdwg.mxu0
    %2165 = vmatprep.subr.bf16.mxu0 %v1269
    %2166 = vmatpush1.bf16.msra.mxu0 %v1268
    %2167 = vmatprep.subr.bf16.mxu0 %v1277
    %2168 = vmatpush1.bf16.msra.mxu0 %v1276
    %2169 = vmatprep.subr.bf16.mxu0 %v1285
    %2170 = vmatpush1.bf16.msra.mxu0 %v1284
    %2171 = vmatprep.subr.bf16.mxu0 %v1293
    %2172 = vmatpush1.bf16.msra.mxu0 %v1292
    %2173 = vmatprep.subr.bf16.mxu0 %v1301
    %2174 = vmatpush1.bf16.msra.mxu0 %v1300
    %2175 = vmatprep.subr.bf16.mxu0 %v1309
    %2176 = vmatpush1.bf16.msra.mxu0 %v1308
    %2177 = vmatprep.subr.bf16.mxu0 %v1317
    %2178 = vmatpush1.bf16.msra.mxu0 %v1316
    %2179 = vmatprep.subr.bf16.mxu0 %v1325
    %2180 = vmatpush1.bf16.msra.mxu0 %v1324
    %2181 = vmatprep.subr.bf16.mxu0 %v1333
    %2182 = vmatpush1.bf16.msra.mxu0 %v1332
    %2183 = vmatprep.subr.bf16.mxu0 %v1341
    %2184 = vmatpush1.bf16.msra.mxu0 %v1340
    %2185 = vmatprep.subr.bf16.mxu0 %v1349
    %2186 = vmatpush1.bf16.msra.mxu0 %v1348
    %2187 = vmatprep.subr.bf16.mxu0 %v1357
    %2188 = vmatpush1.bf16.msra.mxu0 %v1356
    %2189 = vmatprep.subr.bf16.mxu0 %v1365
    %2190 = vmatpush1.bf16.msra.mxu0 %v1364
    %2191 = vmatprep.subr.bf16.mxu0 %v1373
    %2192 = vmatpush1.bf16.msra.mxu0 %v1372
    %2193 = vmatprep.subr.bf16.mxu0 %v1381
    %2194 = vmatpush1.bf16.msra.mxu0 %v1380
    %2195 = vmatprep.subr.bf16.mxu0 %v1389
    %2196 = vmatpush1.bf16.msra.mxu0 %v1388
    %2197 = vmatprep.mubr.bf16.mxu0 %v1998
    %2198 = vmatmul.mubr.bf16.gmra.mrb[0].mxu0 %v1997
    %v2199 = vpop.f32.mrb[0].mxu0
    %v2200 = vadd.f32 0.0, %v2199
    %v2201 = vpop.f32.mrb[0].mxu0
    %v2202 = vadd.f32 0.0, %v2201
    %v2203 = vpop.f32.mrb[0].mxu0
    %v2204 = vpop.f32.mrb[0].mxu0
    %2205 = vdwg.mxu0
    %2206 = vmatprep.subr.bf16.mxu0 %v1397
    %2207 = vmatpush1.bf16.msra.mxu0 %v1396
    %2208 = vmatprep.subr.bf16.mxu0 %v1405
    %2209 = vmatpush1.bf16.msra.mxu0 %v1404
    %2210 = vmatprep.subr.bf16.mxu0 %v1413
    %2211 = vmatpush1.bf16.msra.mxu0 %v1412
    %2212 = vmatprep.subr.bf16.mxu0 %v1421
    %2213 = vmatpush1.bf16.msra.mxu0 %v1420
    %2214 = vmatprep.subr.bf16.mxu0 %v1429
    %2215 = vmatpush1.bf16.msra.mxu0 %v1428
    %2216 = vmatprep.subr.bf16.mxu0 %v1437
    %2217 = vmatpush1.bf16.msra.mxu0 %v1436
    %2218 = vmatprep.subr.bf16.mxu0 %v1445
    %2219 = vmatpush1.bf16.msra.mxu0 %v1444
    %2220 = vmatprep.subr.bf16.mxu0 %v1453
    %2221 = vmatpush1.bf16.msra.mxu0 %v1452
    %2222 = vmatprep.subr.bf16.mxu0 %v1461
    %2223 = vmatpush1.bf16.msra.mxu0 %v1460
    %2224 = vmatprep.subr.bf16.mxu0 %v1469
    %2225 = vmatpush1.bf16.msra.mxu0 %v1468
    %2226 = vmatprep.subr.bf16.mxu0 %v1477
    %2227 = vmatpush1.bf16.msra.mxu0 %v1476
    %2228 = vmatprep.subr.bf16.mxu0 %v1485
    %2229 = vmatpush1.bf16.msra.mxu0 %v1484
    %2230 = vmatprep.subr.bf16.mxu0 %v1493
    %2231 = vmatpush1.bf16.msra.mxu0 %v1492
    %2232 = vmatprep.subr.bf16.mxu0 %v1501
    %2233 = vmatpush1.bf16.msra.mxu0 %v1500
    %2234 = vmatprep.subr.bf16.mxu0 %v1509
    %2235 = vmatpush1.bf16.msra.mxu0 %v1508
    %2236 = vmatprep.subr.bf16.mxu0 %v1517
    %2237 = vmatpush1.bf16.msra.mxu0 %v1516
    %2238 = vmatprep.mubr.bf16.mxu0 %v2000
    %2239 = vmatmul.mubr.bf16.gmra.mrb[0].mxu0 %v1999
    %v2240 = vpop.f32.mrb[0].mxu0
    %v2241 = vadd.f32 %v2200, %v2240
    %v2242 = vpop.f32.mrb[0].mxu0
    %v2243 = vadd.f32 %v2202, %v2242
    %v2244 = vpop.f32.mrb[0].mxu0
    %v2245 = vpop.f32.mrb[0].mxu0
    %2246 = vdwg.mxu0
    %2247 = vmatprep.subr.bf16.mxu0 %v1271
    %2248 = vmatpush1.bf16.msra.mxu0 %v1270
    %2249 = vmatprep.subr.bf16.mxu0 %v1279
    %2250 = vmatpush1.bf16.msra.mxu0 %v1278
    %2251 = vmatprep.subr.bf16.mxu0 %v1287
    %2252 = vmatpush1.bf16.msra.mxu0 %v1286
    %2253 = vmatprep.subr.bf16.mxu0 %v1295
    %2254 = vmatpush1.bf16.msra.mxu0 %v1294
    %2255 = vmatprep.subr.bf16.mxu0 %v1303
    %2256 = vmatpush1.bf16.msra.mxu0 %v1302
    %2257 = vmatprep.subr.bf16.mxu0 %v1311
    %2258 = vmatpush1.bf16.msra.mxu0 %v1310
    %2259 = vmatprep.subr.bf16.mxu0 %v1319
    %2260 = vmatpush1.bf16.msra.mxu0 %v1318
    %2261 = vmatprep.subr.bf16.mxu0 %v1327
    %2262 = vmatpush1.bf16.msra.mxu0 %v1326
    %2263 = vmatprep.subr.bf16.mxu0 %v1335
    %2264 = vmatpush1.bf16.msra.mxu0 %v1334
    %2265 = vmatprep.subr.bf16.mxu0 %v1343
    %2266 = vmatpush1.bf16.msra.mxu0 %v1342
    %2267 = vmatprep.subr.bf16.mxu0 %v1351
    %2268 = vmatpush1.bf16.msra.mxu0 %v1350
    %2269 = vmatprep.subr.bf16.mxu0 %v1359
    %2270 = vmatpush1.bf16.msra.mxu0 %v1358
    %2271 = vmatprep.subr.bf16.mxu0 %v1367
    %2272 = vmatpush1.bf16.msra.mxu0 %v1366
    %2273 = vmatprep.subr.bf16.mxu0 %v1375
    %2274 = vmatpush1.bf16.msra.mxu0 %v1374
    %2275 = vmatprep.subr.bf16.mxu0 %v1383
    %2276 = vmatpush1.bf16.msra.mxu0 %v1382
    %2277 = vmatprep.subr.bf16.mxu0 %v1391
    %2278 = vmatpush1.bf16.msra.mxu0 %v1390
    %2279 = vmatprep.mubr.bf16.mxu0 %v1998
    %2280 = vmatmul.mubr.bf16.gmra.mrb[0].mxu0 %v1997
    %v2281 = vpop.f32.mrb[0].mxu0
    %v2282 = vadd.f32 0.0, %v2281
    %v2283 = vpop.f32.mrb[0].mxu0
    %v2284 = vadd.f32 0.0, %v2283
    %v2285 = vpop.f32.mrb[0].mxu0
    %v2286 = vpop.f32.mrb[0].mxu0
    %2287 = vdwg.mxu0
    %2288 = vmatprep.subr.bf16.mxu0 %v1399
    %2289 = vmatpush1.bf16.msra.mxu0 %v1398
    %2290 = vmatprep.subr.bf16.mxu0 %v1407
    %2291 = vmatpush1.bf16.msra.mxu0 %v1406
    %2292 = vmatprep.subr.bf16.mxu0 %v1415
    %2293 = vmatpush1.bf16.msra.mxu0 %v1414
    %2294 = vmatprep.subr.bf16.mxu0 %v1423
    %2295 = vmatpush1.bf16.msra.mxu0 %v1422
    %2296 = vmatprep.subr.bf16.mxu0 %v1431
    %2297 = vmatpush1.bf16.msra.mxu0 %v1430
    %2298 = vmatprep.subr.bf16.mxu0 %v1439
    %2299 = vmatpush1.bf16.msra.mxu0 %v1438
    %2300 = vmatprep.subr.bf16.mxu0 %v1447
    %2301 = vmatpush1.bf16.msra.mxu0 %v1446
    %2302 = vmatprep.subr.bf16.mxu0 %v1455
    %2303 = vmatpush1.bf16.msra.mxu0 %v1454
    %2304 = vmatprep.subr.bf16.mxu0 %v1463
    %2305 = vmatpush1.bf16.msra.mxu0 %v1462
    %2306 = vmatprep.subr.bf16.mxu0 %v1471
    %2307 = vmatpush1.bf16.msra.mxu0 %v1470
    %2308 = vmatprep.subr.bf16.mxu0 %v1479
    %2309 = vmatpush1.bf16.msra.mxu0 %v1478
    %2310 = vmatprep.subr.bf16.mxu0 %v1487
    %2311 = vmatpush1.bf16.msra.mxu0 %v1486
    %2312 = vmatprep.subr.bf16.mxu0 %v1495
    %2313 = vmatpush1.bf16.msra.mxu0 %v1494
    %2314 = vmatprep.subr.bf16.mxu0 %v1503
    %2315 = vmatpush1.bf16.msra.mxu0 %v1502
    %2316 = vmatprep.subr.bf16.mxu0 %v1511
    %2317 = vmatpush1.bf16.msra.mxu0 %v1510
    %2318 = vmatprep.subr.bf16.mxu0 %v1519
    %2319 = vmatpush1.bf16.msra.mxu0 %v1518
    %2320 = vmatprep.mubr.bf16.mxu0 %v2000
    %2321 = vmatmul.mubr.bf16.gmra.mrb[0].mxu0 %v1999
    %v2322 = vpop.f32.mrb[0].mxu0
    %v2323 = vadd.f32 %v2282, %v2322
    %v2324 = vpop.f32.mrb[0].mxu0
    %v2325 = vadd.f32 %v2284, %v2324
    %v2326 = vpop.f32.mrb[0].mxu0
    %v2327 = vpop.f32.mrb[0].mxu0
    %2328 = vdwg.mxu0
    %v2329 = vadd.f32 %v1985, %v2077
    %v2330 = vadd.f32 %v1986, %v2079
    %v2331 = vadd.f32 %v1987, %v2159
    %v2332 = vadd.f32 %v1988, %v2161
    %v2333 = vadd.f32 %v1989, %v2241
    %v2334 = vadd.f32 %v1990, %v2243
    %v2335 = vadd.f32 %v1991, %v2323
    %v2336 = vadd.f32 %v1992, %v2325
    %v2337 = vxor.u32 %v2329, 2147483648
    %v2338 = vxor.u32 %v2330, 2147483648
    %v2339 = vxor.u32 %v2331, 2147483648
    %v2340 = vxor.u32 %v2332, 2147483648
    %v2341 = vxor.u32 %v2333, 2147483648
    %v2342 = vxor.u32 %v2334, 2147483648
    %v2343 = vmul.f32 %v2337, 1.442695
    %v2344 = vpow.pop %v2343
    %v2345 = vmul.f32 %v2338, 1.442695
    %v2346 = vpow.pop %v2345
    %v2347 = vmul.f32 %v2339, 1.442695
    %v2348 = vpow.pop %v2347
    %v2349 = vmul.f32 %v2340, 1.442695
    %v2350 = vpow.pop %v2349
    %v2351 = vmul.f32 %v2341, 1.442695
    %v2352 = vpow.pop %v2351
    %v2353 = vmul.f32 %v2342, 1.442695
    %v2354 = vpow.pop %v2353
    %v2355 = vadd.f32 %v2344, 1.0
    %v2356 = vadd.f32 %v2346, 1.0
    %v2357 = vadd.f32 %v2348, 1.0
    %v2358 = vadd.f32 %v2350, 1.0
    %v2359 = vadd.f32 %v2352, 1.0
    %v2360 = vadd.f32 %v2354, 1.0
    %v2361 = vrcp.pop %v2355
    %v2362 = vmul.f32 1.0, %v2361
    %v2363 = vrcp.pop %v2356
    %v2364 = vmul.f32 1.0, %v2363
    %v2365 = vrcp.pop %v2357
    %v2366 = vmul.f32 1.0, %v2365
    %v2367 = vrcp.pop %v2358
    %v2368 = vmul.f32 1.0, %v2367
    %v2369 = vrcp.pop %v2359
    %v2370 = vmul.f32 1.0, %v2369
    %v2371 = vrcp.pop %v2360
    %v2372 = vmul.f32 1.0, %v2371
    %v2373 = vtanh.pop %v2335
    %v2374 = vtanh.pop %v2336
    %v2375 = vmul.f32 %v2366, %v1939
    %v2376 = vmul.f32 %v2368, %v1940
    %v2377 = vmul.f32 %v2362, %v2373
    %v2378 = vmul.f32 %v2364, %v2374
    %v2379 = vadd.f32 %v2375, %v2377
    %v2380 = vadd.f32 %v2376, %v2378
    %v2381 = vtanh.pop %v2379
    %v2382 = vtanh.pop %v2380
    %v2383 = vmul.f32 %v2370, %v2381
    %v2384 = vmul.f32 %v2372, %v2382
    %v2385 = vrot.slane %v939, 2
    %v2386 = vrot.slane %v941, 2
    %v2387 = vrot.slane %v980, 2
    %v2388 = vrot.slane %v982, 2
    %v2389 = vrot.slane %v1021, 2
    %v2390 = vrot.slane %v1023, 2
    %v2391 = vrot.slane %v1062, 2
    %v2392 = vrot.slane %v1064, 2
    %v2401 = vrot.slane %v1103, 4
    %v2402 = vrot.slane %v1105, 4
    %v2403 = vrot.slane %v1144, 4
    %v2404 = vrot.slane %v1146, 4
    %v2405 = vrot.slane %v1185, 4
    %v2406 = vrot.slane %v1187, 4
    %v2407 = vrot.slane %v1226, 4
    %v2408 = vrot.slane %v1228, 4
    %v2417 = vsel %vm1544, %v2385, %v2401
    %v2418 = vsel %vm1544, %v2386, %v2402
    %v2419 = vsel %vm1544, %v2387, %v2403
    %v2420 = vsel %vm1544, %v2388, %v2404
    %v2421 = vsel %vm1544, %v2389, %v2405
    %v2422 = vsel %vm1544, %v2390, %v2406
    %v2423 = vsel %vm1544, %v2391, %v2407
    %v2424 = vsel %vm1544, %v2392, %v2408
    %v2425 = vmul.f32 %v2383, %v1256
    %v2426 = vmul.f32 %v2384, %v1257
    %v2427 = vmul.f32 %v2383, %v1258
    %v2428 = vmul.f32 %v2384, %v1259
    %v2429 = vpack.c.bf16 %v2425, %v2425
    %v2430 = vpack.c.bf16 %v2426, %v2426
    %v2431 = vpack.c.bf16 %v2427, %v2427
    %v2432 = vpack.c.bf16 %v2428, %v2428
    %2433 = vmatprep.subr.bf16.mxu0 %v1265
    %2434 = vmatpush1.bf16.msra.mxu0 %v1264
    %2435 = vmatprep.subr.bf16.mxu0 %v1273
    %2436 = vmatpush1.bf16.msra.mxu0 %v1272
    %2437 = vmatprep.subr.bf16.mxu0 %v1281
    %2438 = vmatpush1.bf16.msra.mxu0 %v1280
    %2439 = vmatprep.subr.bf16.mxu0 %v1289
    %2440 = vmatpush1.bf16.msra.mxu0 %v1288
    %2441 = vmatprep.subr.bf16.mxu0 %v1297
    %2442 = vmatpush1.bf16.msra.mxu0 %v1296
    %2443 = vmatprep.subr.bf16.mxu0 %v1305
    %2444 = vmatpush1.bf16.msra.mxu0 %v1304
    %2445 = vmatprep.subr.bf16.mxu0 %v1313
    %2446 = vmatpush1.bf16.msra.mxu0 %v1312
    %2447 = vmatprep.subr.bf16.mxu0 %v1321
    %2448 = vmatpush1.bf16.msra.mxu0 %v1320
    %2449 = vmatprep.subr.bf16.mxu0 %v1329
    %2450 = vmatpush1.bf16.msra.mxu0 %v1328
    %2451 = vmatprep.subr.bf16.mxu0 %v1337
    %2452 = vmatpush1.bf16.msra.mxu0 %v1336
    %2453 = vmatprep.subr.bf16.mxu0 %v1345
    %2454 = vmatpush1.bf16.msra.mxu0 %v1344
    %2455 = vmatprep.subr.bf16.mxu0 %v1353
    %2456 = vmatpush1.bf16.msra.mxu0 %v1352
    %2457 = vmatprep.subr.bf16.mxu0 %v1361
    %2458 = vmatpush1.bf16.msra.mxu0 %v1360
    %2459 = vmatprep.subr.bf16.mxu0 %v1369
    %2460 = vmatpush1.bf16.msra.mxu0 %v1368
    %2461 = vmatprep.subr.bf16.mxu0 %v1377
    %2462 = vmatpush1.bf16.msra.mxu0 %v1376
    %2463 = vmatprep.subr.bf16.mxu0 %v1385
    %2464 = vmatpush1.bf16.msra.mxu0 %v1384
    %2465 = vmatprep.mubr.bf16.mxu0 %v2430
    %2466 = vmatmul.mubr.bf16.gmra.mrb[0].mxu0 %v2429
    %v2467 = vpop.f32.mrb[0].mxu0
    %v2468 = vadd.f32 0.0, %v2467
    %v2469 = vpop.f32.mrb[0].mxu0
    %v2470 = vadd.f32 0.0, %v2469
    %v2471 = vpop.f32.mrb[0].mxu0
    %v2472 = vpop.f32.mrb[0].mxu0
    %2473 = vdwg.mxu0
    %2474 = vmatprep.subr.bf16.mxu0 %v1393
    %2475 = vmatpush1.bf16.msra.mxu0 %v1392
    %2476 = vmatprep.subr.bf16.mxu0 %v1401
    %2477 = vmatpush1.bf16.msra.mxu0 %v1400
    %2478 = vmatprep.subr.bf16.mxu0 %v1409
    %2479 = vmatpush1.bf16.msra.mxu0 %v1408
    %2480 = vmatprep.subr.bf16.mxu0 %v1417
    %2481 = vmatpush1.bf16.msra.mxu0 %v1416
    %2482 = vmatprep.subr.bf16.mxu0 %v1425
    %2483 = vmatpush1.bf16.msra.mxu0 %v1424
    %2484 = vmatprep.subr.bf16.mxu0 %v1433
    %2485 = vmatpush1.bf16.msra.mxu0 %v1432
    %2486 = vmatprep.subr.bf16.mxu0 %v1441
    %2487 = vmatpush1.bf16.msra.mxu0 %v1440
    %2488 = vmatprep.subr.bf16.mxu0 %v1449
    %2489 = vmatpush1.bf16.msra.mxu0 %v1448
    %2490 = vmatprep.subr.bf16.mxu0 %v1457
    %2491 = vmatpush1.bf16.msra.mxu0 %v1456
    %2492 = vmatprep.subr.bf16.mxu0 %v1465
    %2493 = vmatpush1.bf16.msra.mxu0 %v1464
    %2494 = vmatprep.subr.bf16.mxu0 %v1473
    %2495 = vmatpush1.bf16.msra.mxu0 %v1472
    %2496 = vmatprep.subr.bf16.mxu0 %v1481
    %2497 = vmatpush1.bf16.msra.mxu0 %v1480
    %2498 = vmatprep.subr.bf16.mxu0 %v1489
    %2499 = vmatpush1.bf16.msra.mxu0 %v1488
    %2500 = vmatprep.subr.bf16.mxu0 %v1497
    %2501 = vmatpush1.bf16.msra.mxu0 %v1496
    %2502 = vmatprep.subr.bf16.mxu0 %v1505
    %2503 = vmatpush1.bf16.msra.mxu0 %v1504
    %2504 = vmatprep.subr.bf16.mxu0 %v1513
    %2505 = vmatpush1.bf16.msra.mxu0 %v1512
    %2506 = vmatprep.mubr.bf16.mxu0 %v2432
    %2507 = vmatmul.mubr.bf16.gmra.mrb[0].mxu0 %v2431
    %v2508 = vpop.f32.mrb[0].mxu0
    %v2509 = vadd.f32 %v2468, %v2508
    %v2510 = vpop.f32.mrb[0].mxu0
    %v2511 = vadd.f32 %v2470, %v2510
    %v2512 = vpop.f32.mrb[0].mxu0
    %v2513 = vpop.f32.mrb[0].mxu0
    %2514 = vdwg.mxu0
    %2515 = vmatprep.subr.bf16.mxu0 %v1267
    %2516 = vmatpush1.bf16.msra.mxu0 %v1266
    %2517 = vmatprep.subr.bf16.mxu0 %v1275
    %2518 = vmatpush1.bf16.msra.mxu0 %v1274
    %2519 = vmatprep.subr.bf16.mxu0 %v1283
    %2520 = vmatpush1.bf16.msra.mxu0 %v1282
    %2521 = vmatprep.subr.bf16.mxu0 %v1291
    %2522 = vmatpush1.bf16.msra.mxu0 %v1290
    %2523 = vmatprep.subr.bf16.mxu0 %v1299
    %2524 = vmatpush1.bf16.msra.mxu0 %v1298
    %2525 = vmatprep.subr.bf16.mxu0 %v1307
    %2526 = vmatpush1.bf16.msra.mxu0 %v1306
    %2527 = vmatprep.subr.bf16.mxu0 %v1315
    %2528 = vmatpush1.bf16.msra.mxu0 %v1314
    %2529 = vmatprep.subr.bf16.mxu0 %v1323
    %2530 = vmatpush1.bf16.msra.mxu0 %v1322
    %2531 = vmatprep.subr.bf16.mxu0 %v1331
    %2532 = vmatpush1.bf16.msra.mxu0 %v1330
    %2533 = vmatprep.subr.bf16.mxu0 %v1339
    %2534 = vmatpush1.bf16.msra.mxu0 %v1338
    %2535 = vmatprep.subr.bf16.mxu0 %v1347
    %2536 = vmatpush1.bf16.msra.mxu0 %v1346
    %2537 = vmatprep.subr.bf16.mxu0 %v1355
    %2538 = vmatpush1.bf16.msra.mxu0 %v1354
    %2539 = vmatprep.subr.bf16.mxu0 %v1363
    %2540 = vmatpush1.bf16.msra.mxu0 %v1362
    %2541 = vmatprep.subr.bf16.mxu0 %v1371
    %2542 = vmatpush1.bf16.msra.mxu0 %v1370
    %2543 = vmatprep.subr.bf16.mxu0 %v1379
    %2544 = vmatpush1.bf16.msra.mxu0 %v1378
    %2545 = vmatprep.subr.bf16.mxu0 %v1387
    %2546 = vmatpush1.bf16.msra.mxu0 %v1386
    %2547 = vmatprep.mubr.bf16.mxu0 %v2430
    %2548 = vmatmul.mubr.bf16.gmra.mrb[0].mxu0 %v2429
    %v2549 = vpop.f32.mrb[0].mxu0
    %v2550 = vadd.f32 0.0, %v2549
    %v2551 = vpop.f32.mrb[0].mxu0
    %v2552 = vadd.f32 0.0, %v2551
    %v2553 = vpop.f32.mrb[0].mxu0
    %v2554 = vpop.f32.mrb[0].mxu0
    %2555 = vdwg.mxu0
    %2556 = vmatprep.subr.bf16.mxu0 %v1395
    %2557 = vmatpush1.bf16.msra.mxu0 %v1394
    %2558 = vmatprep.subr.bf16.mxu0 %v1403
    %2559 = vmatpush1.bf16.msra.mxu0 %v1402
    %2560 = vmatprep.subr.bf16.mxu0 %v1411
    %2561 = vmatpush1.bf16.msra.mxu0 %v1410
    %2562 = vmatprep.subr.bf16.mxu0 %v1419
    %2563 = vmatpush1.bf16.msra.mxu0 %v1418
    %2564 = vmatprep.subr.bf16.mxu0 %v1427
    %2565 = vmatpush1.bf16.msra.mxu0 %v1426
    %2566 = vmatprep.subr.bf16.mxu0 %v1435
    %2567 = vmatpush1.bf16.msra.mxu0 %v1434
    %2568 = vmatprep.subr.bf16.mxu0 %v1443
    %2569 = vmatpush1.bf16.msra.mxu0 %v1442
    %2570 = vmatprep.subr.bf16.mxu0 %v1451
    %2571 = vmatpush1.bf16.msra.mxu0 %v1450
    %2572 = vmatprep.subr.bf16.mxu0 %v1459
    %2573 = vmatpush1.bf16.msra.mxu0 %v1458
    %2574 = vmatprep.subr.bf16.mxu0 %v1467
    %2575 = vmatpush1.bf16.msra.mxu0 %v1466
    %2576 = vmatprep.subr.bf16.mxu0 %v1475
    %2577 = vmatpush1.bf16.msra.mxu0 %v1474
    %2578 = vmatprep.subr.bf16.mxu0 %v1483
    %2579 = vmatpush1.bf16.msra.mxu0 %v1482
    %2580 = vmatprep.subr.bf16.mxu0 %v1491
    %2581 = vmatpush1.bf16.msra.mxu0 %v1490
    %2582 = vmatprep.subr.bf16.mxu0 %v1499
    %2583 = vmatpush1.bf16.msra.mxu0 %v1498
    %2584 = vmatprep.subr.bf16.mxu0 %v1507
    %2585 = vmatpush1.bf16.msra.mxu0 %v1506
    %2586 = vmatprep.subr.bf16.mxu0 %v1515
    %2587 = vmatpush1.bf16.msra.mxu0 %v1514
    %2588 = vmatprep.mubr.bf16.mxu0 %v2432
    %2589 = vmatmul.mubr.bf16.gmra.mrb[0].mxu0 %v2431
    %v2590 = vpop.f32.mrb[0].mxu0
    %v2591 = vadd.f32 %v2550, %v2590
    %v2592 = vpop.f32.mrb[0].mxu0
    %v2593 = vadd.f32 %v2552, %v2592
    %v2594 = vpop.f32.mrb[0].mxu0
    %v2595 = vpop.f32.mrb[0].mxu0
    %2596 = vdwg.mxu0
    %2597 = vmatprep.subr.bf16.mxu0 %v1269
    %2598 = vmatpush1.bf16.msra.mxu0 %v1268
    %2599 = vmatprep.subr.bf16.mxu0 %v1277
    %2600 = vmatpush1.bf16.msra.mxu0 %v1276
    %2601 = vmatprep.subr.bf16.mxu0 %v1285
    %2602 = vmatpush1.bf16.msra.mxu0 %v1284
    %2603 = vmatprep.subr.bf16.mxu0 %v1293
    %2604 = vmatpush1.bf16.msra.mxu0 %v1292
    %2605 = vmatprep.subr.bf16.mxu0 %v1301
    %2606 = vmatpush1.bf16.msra.mxu0 %v1300
    %2607 = vmatprep.subr.bf16.mxu0 %v1309
    %2608 = vmatpush1.bf16.msra.mxu0 %v1308
    %2609 = vmatprep.subr.bf16.mxu0 %v1317
    %2610 = vmatpush1.bf16.msra.mxu0 %v1316
    %2611 = vmatprep.subr.bf16.mxu0 %v1325
    %2612 = vmatpush1.bf16.msra.mxu0 %v1324
    %2613 = vmatprep.subr.bf16.mxu0 %v1333
    %2614 = vmatpush1.bf16.msra.mxu0 %v1332
    %2615 = vmatprep.subr.bf16.mxu0 %v1341
    %2616 = vmatpush1.bf16.msra.mxu0 %v1340
    %2617 = vmatprep.subr.bf16.mxu0 %v1349
    %2618 = vmatpush1.bf16.msra.mxu0 %v1348
    %2619 = vmatprep.subr.bf16.mxu0 %v1357
    %2620 = vmatpush1.bf16.msra.mxu0 %v1356
    %2621 = vmatprep.subr.bf16.mxu0 %v1365
    %2622 = vmatpush1.bf16.msra.mxu0 %v1364
    %2623 = vmatprep.subr.bf16.mxu0 %v1373
    %2624 = vmatpush1.bf16.msra.mxu0 %v1372
    %2625 = vmatprep.subr.bf16.mxu0 %v1381
    %2626 = vmatpush1.bf16.msra.mxu0 %v1380
    %2627 = vmatprep.subr.bf16.mxu0 %v1389
    %2628 = vmatpush1.bf16.msra.mxu0 %v1388
    %2629 = vmatprep.mubr.bf16.mxu0 %v2430
    %2630 = vmatmul.mubr.bf16.gmra.mrb[0].mxu0 %v2429
    %v2631 = vpop.f32.mrb[0].mxu0
    %v2632 = vadd.f32 0.0, %v2631
    %v2633 = vpop.f32.mrb[0].mxu0
    %v2634 = vadd.f32 0.0, %v2633
    %v2635 = vpop.f32.mrb[0].mxu0
    %v2636 = vpop.f32.mrb[0].mxu0
    %2637 = vdwg.mxu0
    %2638 = vmatprep.subr.bf16.mxu0 %v1397
    %2639 = vmatpush1.bf16.msra.mxu0 %v1396
    %2640 = vmatprep.subr.bf16.mxu0 %v1405
    %2641 = vmatpush1.bf16.msra.mxu0 %v1404
    %2642 = vmatprep.subr.bf16.mxu0 %v1413
    %2643 = vmatpush1.bf16.msra.mxu0 %v1412
    %2644 = vmatprep.subr.bf16.mxu0 %v1421
    %2645 = vmatpush1.bf16.msra.mxu0 %v1420
    %2646 = vmatprep.subr.bf16.mxu0 %v1429
    %2647 = vmatpush1.bf16.msra.mxu0 %v1428
    %2648 = vmatprep.subr.bf16.mxu0 %v1437
    %2649 = vmatpush1.bf16.msra.mxu0 %v1436
    %2650 = vmatprep.subr.bf16.mxu0 %v1445
    %2651 = vmatpush1.bf16.msra.mxu0 %v1444
    %2652 = vmatprep.subr.bf16.mxu0 %v1453
    %2653 = vmatpush1.bf16.msra.mxu0 %v1452
    %2654 = vmatprep.subr.bf16.mxu0 %v1461
    %2655 = vmatpush1.bf16.msra.mxu0 %v1460
    %2656 = vmatprep.subr.bf16.mxu0 %v1469
    %2657 = vmatpush1.bf16.msra.mxu0 %v1468
    %2658 = vmatprep.subr.bf16.mxu0 %v1477
    %2659 = vmatpush1.bf16.msra.mxu0 %v1476
    %2660 = vmatprep.subr.bf16.mxu0 %v1485
    %2661 = vmatpush1.bf16.msra.mxu0 %v1484
    %2662 = vmatprep.subr.bf16.mxu0 %v1493
    %2663 = vmatpush1.bf16.msra.mxu0 %v1492
    %2664 = vmatprep.subr.bf16.mxu0 %v1501
    %2665 = vmatpush1.bf16.msra.mxu0 %v1500
    %2666 = vmatprep.subr.bf16.mxu0 %v1509
    %2667 = vmatpush1.bf16.msra.mxu0 %v1508
    %2668 = vmatprep.subr.bf16.mxu0 %v1517
    %2669 = vmatpush1.bf16.msra.mxu0 %v1516
    %2670 = vmatprep.mubr.bf16.mxu0 %v2432
    %2671 = vmatmul.mubr.bf16.gmra.mrb[0].mxu0 %v2431
    %v2672 = vpop.f32.mrb[0].mxu0
    %v2673 = vadd.f32 %v2632, %v2672
    %v2674 = vpop.f32.mrb[0].mxu0
    %v2675 = vadd.f32 %v2634, %v2674
    %v2676 = vpop.f32.mrb[0].mxu0
    %v2677 = vpop.f32.mrb[0].mxu0
    %2678 = vdwg.mxu0
    %2679 = vmatprep.subr.bf16.mxu0 %v1271
    %2680 = vmatpush1.bf16.msra.mxu0 %v1270
    %2681 = vmatprep.subr.bf16.mxu0 %v1279
    %2682 = vmatpush1.bf16.msra.mxu0 %v1278
    %2683 = vmatprep.subr.bf16.mxu0 %v1287
    %2684 = vmatpush1.bf16.msra.mxu0 %v1286
    %2685 = vmatprep.subr.bf16.mxu0 %v1295
    %2686 = vmatpush1.bf16.msra.mxu0 %v1294
    %2687 = vmatprep.subr.bf16.mxu0 %v1303
    %2688 = vmatpush1.bf16.msra.mxu0 %v1302
    %2689 = vmatprep.subr.bf16.mxu0 %v1311
    %2690 = vmatpush1.bf16.msra.mxu0 %v1310
    %2691 = vmatprep.subr.bf16.mxu0 %v1319
    %2692 = vmatpush1.bf16.msra.mxu0 %v1318
    %2693 = vmatprep.subr.bf16.mxu0 %v1327
    %2694 = vmatpush1.bf16.msra.mxu0 %v1326
    %2695 = vmatprep.subr.bf16.mxu0 %v1335
    %2696 = vmatpush1.bf16.msra.mxu0 %v1334
    %2697 = vmatprep.subr.bf16.mxu0 %v1343
    %2698 = vmatpush1.bf16.msra.mxu0 %v1342
    %2699 = vmatprep.subr.bf16.mxu0 %v1351
    %2700 = vmatpush1.bf16.msra.mxu0 %v1350
    %2701 = vmatprep.subr.bf16.mxu0 %v1359
    %2702 = vmatpush1.bf16.msra.mxu0 %v1358
    %2703 = vmatprep.subr.bf16.mxu0 %v1367
    %2704 = vmatpush1.bf16.msra.mxu0 %v1366
    %2705 = vmatprep.subr.bf16.mxu0 %v1375
    %2706 = vmatpush1.bf16.msra.mxu0 %v1374
    %2707 = vmatprep.subr.bf16.mxu0 %v1383
    %2708 = vmatpush1.bf16.msra.mxu0 %v1382
    %2709 = vmatprep.subr.bf16.mxu0 %v1391
    %2710 = vmatpush1.bf16.msra.mxu0 %v1390
    %2711 = vmatprep.mubr.bf16.mxu0 %v2430
    %2712 = vmatmul.mubr.bf16.gmra.mrb[0].mxu0 %v2429
    %v2713 = vpop.f32.mrb[0].mxu0
    %v2714 = vadd.f32 0.0, %v2713
    %v2715 = vpop.f32.mrb[0].mxu0
    %v2716 = vadd.f32 0.0, %v2715
    %v2717 = vpop.f32.mrb[0].mxu0
    %v2718 = vpop.f32.mrb[0].mxu0
    %2719 = vdwg.mxu0
    %2720 = vmatprep.subr.bf16.mxu0 %v1399
    %2721 = vmatpush1.bf16.msra.mxu0 %v1398
    %2722 = vmatprep.subr.bf16.mxu0 %v1407
    %2723 = vmatpush1.bf16.msra.mxu0 %v1406
    %2724 = vmatprep.subr.bf16.mxu0 %v1415
    %2725 = vmatpush1.bf16.msra.mxu0 %v1414
    %2726 = vmatprep.subr.bf16.mxu0 %v1423
    %2727 = vmatpush1.bf16.msra.mxu0 %v1422
    %2728 = vmatprep.subr.bf16.mxu0 %v1431
    %2729 = vmatpush1.bf16.msra.mxu0 %v1430
    %2730 = vmatprep.subr.bf16.mxu0 %v1439
    %2731 = vmatpush1.bf16.msra.mxu0 %v1438
    %2732 = vmatprep.subr.bf16.mxu0 %v1447
    %2733 = vmatpush1.bf16.msra.mxu0 %v1446
    %2734 = vmatprep.subr.bf16.mxu0 %v1455
    %2735 = vmatpush1.bf16.msra.mxu0 %v1454
    %2736 = vmatprep.subr.bf16.mxu0 %v1463
    %2737 = vmatpush1.bf16.msra.mxu0 %v1462
    %2738 = vmatprep.subr.bf16.mxu0 %v1471
    %2739 = vmatpush1.bf16.msra.mxu0 %v1470
    %2740 = vmatprep.subr.bf16.mxu0 %v1479
    %2741 = vmatpush1.bf16.msra.mxu0 %v1478
    %2742 = vmatprep.subr.bf16.mxu0 %v1487
    %2743 = vmatpush1.bf16.msra.mxu0 %v1486
    %2744 = vmatprep.subr.bf16.mxu0 %v1495
    %2745 = vmatpush1.bf16.msra.mxu0 %v1494
    %2746 = vmatprep.subr.bf16.mxu0 %v1503
    %2747 = vmatpush1.bf16.msra.mxu0 %v1502
    %2748 = vmatprep.subr.bf16.mxu0 %v1511
    %2749 = vmatpush1.bf16.msra.mxu0 %v1510
    %2750 = vmatprep.subr.bf16.mxu0 %v1519
    %2751 = vmatpush1.bf16.msra.mxu0 %v1518
    %2752 = vmatprep.mubr.bf16.mxu0 %v2432
    %2753 = vmatmul.mubr.bf16.gmra.mrb[0].mxu0 %v2431
    %v2754 = vpop.f32.mrb[0].mxu0
    %v2755 = vadd.f32 %v2714, %v2754
    %v2756 = vpop.f32.mrb[0].mxu0
    %v2757 = vadd.f32 %v2716, %v2756
    %v2758 = vpop.f32.mrb[0].mxu0
    %v2759 = vpop.f32.mrb[0].mxu0
    %2760 = vdwg.mxu0
    %v2761 = vadd.f32 %v2417, %v2509
    %v2762 = vadd.f32 %v2418, %v2511
    %v2763 = vadd.f32 %v2419, %v2591
    %v2764 = vadd.f32 %v2420, %v2593
    %v2765 = vadd.f32 %v2421, %v2673
    %v2766 = vadd.f32 %v2422, %v2675
    %v2767 = vadd.f32 %v2423, %v2755
    %v2768 = vadd.f32 %v2424, %v2757
    %v2769 = vxor.u32 %v2761, 2147483648
    %v2770 = vxor.u32 %v2762, 2147483648
    %v2771 = vxor.u32 %v2763, 2147483648
    %v2772 = vxor.u32 %v2764, 2147483648
    %v2773 = vxor.u32 %v2765, 2147483648
    %v2774 = vxor.u32 %v2766, 2147483648
    %v2775 = vmul.f32 %v2769, 1.442695
    %v2776 = vpow.pop %v2775
    %v2777 = vmul.f32 %v2770, 1.442695
    %v2778 = vpow.pop %v2777
    %v2779 = vmul.f32 %v2771, 1.442695
    %v2780 = vpow.pop %v2779
    %v2781 = vmul.f32 %v2772, 1.442695
    %v2782 = vpow.pop %v2781
    %v2783 = vmul.f32 %v2773, 1.442695
    %v2784 = vpow.pop %v2783
    %v2785 = vmul.f32 %v2774, 1.442695
    %v2786 = vpow.pop %v2785
    %v2787 = vadd.f32 %v2776, 1.0
    %v2788 = vadd.f32 %v2778, 1.0
    %v2789 = vadd.f32 %v2780, 1.0
    %v2790 = vadd.f32 %v2782, 1.0
    %v2791 = vadd.f32 %v2784, 1.0
    %v2792 = vadd.f32 %v2786, 1.0
    %v2793 = vrcp.pop %v2787
    %v2794 = vmul.f32 1.0, %v2793
    %v2795 = vrcp.pop %v2788
    %v2796 = vmul.f32 1.0, %v2795
    %v2797 = vrcp.pop %v2789
    %v2798 = vmul.f32 1.0, %v2797
    %v2799 = vrcp.pop %v2790
    %v2800 = vmul.f32 1.0, %v2799
    %v2801 = vrcp.pop %v2791
    %v2802 = vmul.f32 1.0, %v2801
    %v2803 = vrcp.pop %v2792
    %v2804 = vmul.f32 1.0, %v2803
    %v2805 = vtanh.pop %v2767
    %v2806 = vtanh.pop %v2768
    %v2807 = vmul.f32 %v2798, %v2379
    %v2808 = vmul.f32 %v2800, %v2380
    %v2809 = vmul.f32 %v2794, %v2805
    %v2810 = vmul.f32 %v2796, %v2806
    %v2811 = vadd.f32 %v2807, %v2809
    %v2812 = vadd.f32 %v2808, %v2810
    %v2813 = vtanh.pop %v2811
    %v2814 = vtanh.pop %v2812
    %v2815 = vmul.f32 %v2802, %v2813
    %v2816 = vmul.f32 %v2804, %v2814
    %v2817 = vrot.slane %v939, 3
    %v2818 = vrot.slane %v941, 3
    %v2819 = vrot.slane %v980, 3
    %v2820 = vrot.slane %v982, 3
    %v2821 = vrot.slane %v1021, 3
    %v2822 = vrot.slane %v1023, 3
    %v2823 = vrot.slane %v1062, 3
    %v2824 = vrot.slane %v1064, 3
    %v2833 = vrot.slane %v1103, 3
    %v2834 = vrot.slane %v1105, 3
    %v2835 = vrot.slane %v1144, 3
    %v2836 = vrot.slane %v1146, 3
    %v2837 = vrot.slane %v1185, 3
    %v2838 = vrot.slane %v1187, 3
    %v2839 = vrot.slane %v1226, 3
    %v2840 = vrot.slane %v1228, 3
    %v2849 = vsel %vm1544, %v2817, %v2833
    %v2850 = vsel %vm1544, %v2818, %v2834
    %v2851 = vsel %vm1544, %v2819, %v2835
    %v2852 = vsel %vm1544, %v2820, %v2836
    %v2853 = vsel %vm1544, %v2821, %v2837
    %v2854 = vsel %vm1544, %v2822, %v2838
    %v2855 = vsel %vm1544, %v2823, %v2839
    %v2856 = vsel %vm1544, %v2824, %v2840
    %v2857 = vmul.f32 %v2815, %v1256
    %v2858 = vmul.f32 %v2816, %v1257
    %v2859 = vmul.f32 %v2815, %v1258
    %v2860 = vmul.f32 %v2816, %v1259
    %v2861 = vpack.c.bf16 %v2857, %v2857
    %v2862 = vpack.c.bf16 %v2858, %v2858
    %v2863 = vpack.c.bf16 %v2859, %v2859
    %v2864 = vpack.c.bf16 %v2860, %v2860
    %2865 = vmatprep.subr.bf16.mxu0 %v1265
    %2866 = vmatpush1.bf16.msra.mxu0 %v1264
    %2867 = vmatprep.subr.bf16.mxu0 %v1273
    %2868 = vmatpush1.bf16.msra.mxu0 %v1272
    %2869 = vmatprep.subr.bf16.mxu0 %v1281
    %2870 = vmatpush1.bf16.msra.mxu0 %v1280
    %2871 = vmatprep.subr.bf16.mxu0 %v1289
    %2872 = vmatpush1.bf16.msra.mxu0 %v1288
    %2873 = vmatprep.subr.bf16.mxu0 %v1297
    %2874 = vmatpush1.bf16.msra.mxu0 %v1296
    %2875 = vmatprep.subr.bf16.mxu0 %v1305
    %2876 = vmatpush1.bf16.msra.mxu0 %v1304
    %2877 = vmatprep.subr.bf16.mxu0 %v1313
    %2878 = vmatpush1.bf16.msra.mxu0 %v1312
    %2879 = vmatprep.subr.bf16.mxu0 %v1321
    %2880 = vmatpush1.bf16.msra.mxu0 %v1320
    %2881 = vmatprep.subr.bf16.mxu0 %v1329
    %2882 = vmatpush1.bf16.msra.mxu0 %v1328
    %2883 = vmatprep.subr.bf16.mxu0 %v1337
    %2884 = vmatpush1.bf16.msra.mxu0 %v1336
    %2885 = vmatprep.subr.bf16.mxu0 %v1345
    %2886 = vmatpush1.bf16.msra.mxu0 %v1344
    %2887 = vmatprep.subr.bf16.mxu0 %v1353
    %2888 = vmatpush1.bf16.msra.mxu0 %v1352
    %2889 = vmatprep.subr.bf16.mxu0 %v1361
    %2890 = vmatpush1.bf16.msra.mxu0 %v1360
    %2891 = vmatprep.subr.bf16.mxu0 %v1369
    %2892 = vmatpush1.bf16.msra.mxu0 %v1368
    %2893 = vmatprep.subr.bf16.mxu0 %v1377
    %2894 = vmatpush1.bf16.msra.mxu0 %v1376
    %2895 = vmatprep.subr.bf16.mxu0 %v1385
    %2896 = vmatpush1.bf16.msra.mxu0 %v1384
    %2897 = vmatprep.mubr.bf16.mxu0 %v2862
    %2898 = vmatmul.mubr.bf16.gmra.mrb[0].mxu0 %v2861
    %v2899 = vpop.f32.mrb[0].mxu0
    %v2900 = vadd.f32 0.0, %v2899
    %v2901 = vpop.f32.mrb[0].mxu0
    %v2902 = vadd.f32 0.0, %v2901
    %v2903 = vpop.f32.mrb[0].mxu0
    %v2904 = vpop.f32.mrb[0].mxu0
    %2905 = vdwg.mxu0
    %2906 = vmatprep.subr.bf16.mxu0 %v1393
    %2907 = vmatpush1.bf16.msra.mxu0 %v1392
    %2908 = vmatprep.subr.bf16.mxu0 %v1401
    %2909 = vmatpush1.bf16.msra.mxu0 %v1400
    %2910 = vmatprep.subr.bf16.mxu0 %v1409
    %2911 = vmatpush1.bf16.msra.mxu0 %v1408
    %2912 = vmatprep.subr.bf16.mxu0 %v1417
    %2913 = vmatpush1.bf16.msra.mxu0 %v1416
    %2914 = vmatprep.subr.bf16.mxu0 %v1425
    %2915 = vmatpush1.bf16.msra.mxu0 %v1424
    %2916 = vmatprep.subr.bf16.mxu0 %v1433
    %2917 = vmatpush1.bf16.msra.mxu0 %v1432
    %2918 = vmatprep.subr.bf16.mxu0 %v1441
    %2919 = vmatpush1.bf16.msra.mxu0 %v1440
    %2920 = vmatprep.subr.bf16.mxu0 %v1449
    %2921 = vmatpush1.bf16.msra.mxu0 %v1448
    %2922 = vmatprep.subr.bf16.mxu0 %v1457
    %2923 = vmatpush1.bf16.msra.mxu0 %v1456
    %2924 = vmatprep.subr.bf16.mxu0 %v1465
    %2925 = vmatpush1.bf16.msra.mxu0 %v1464
    %2926 = vmatprep.subr.bf16.mxu0 %v1473
    %2927 = vmatpush1.bf16.msra.mxu0 %v1472
    %2928 = vmatprep.subr.bf16.mxu0 %v1481
    %2929 = vmatpush1.bf16.msra.mxu0 %v1480
    %2930 = vmatprep.subr.bf16.mxu0 %v1489
    %2931 = vmatpush1.bf16.msra.mxu0 %v1488
    %2932 = vmatprep.subr.bf16.mxu0 %v1497
    %2933 = vmatpush1.bf16.msra.mxu0 %v1496
    %2934 = vmatprep.subr.bf16.mxu0 %v1505
    %2935 = vmatpush1.bf16.msra.mxu0 %v1504
    %2936 = vmatprep.subr.bf16.mxu0 %v1513
    %2937 = vmatpush1.bf16.msra.mxu0 %v1512
    %2938 = vmatprep.mubr.bf16.mxu0 %v2864
    %2939 = vmatmul.mubr.bf16.gmra.mrb[0].mxu0 %v2863
    %v2940 = vpop.f32.mrb[0].mxu0
    %v2941 = vadd.f32 %v2900, %v2940
    %v2942 = vpop.f32.mrb[0].mxu0
    %v2943 = vadd.f32 %v2902, %v2942
    %v2944 = vpop.f32.mrb[0].mxu0
    %v2945 = vpop.f32.mrb[0].mxu0
    %2946 = vdwg.mxu0
    %2947 = vmatprep.subr.bf16.mxu0 %v1267
    %2948 = vmatpush1.bf16.msra.mxu0 %v1266
    %2949 = vmatprep.subr.bf16.mxu0 %v1275
    %2950 = vmatpush1.bf16.msra.mxu0 %v1274
    %2951 = vmatprep.subr.bf16.mxu0 %v1283
    %2952 = vmatpush1.bf16.msra.mxu0 %v1282
    %2953 = vmatprep.subr.bf16.mxu0 %v1291
    %2954 = vmatpush1.bf16.msra.mxu0 %v1290
    %2955 = vmatprep.subr.bf16.mxu0 %v1299
    %2956 = vmatpush1.bf16.msra.mxu0 %v1298
    %2957 = vmatprep.subr.bf16.mxu0 %v1307
    %2958 = vmatpush1.bf16.msra.mxu0 %v1306
    %2959 = vmatprep.subr.bf16.mxu0 %v1315
    %2960 = vmatpush1.bf16.msra.mxu0 %v1314
    %2961 = vmatprep.subr.bf16.mxu0 %v1323
    %2962 = vmatpush1.bf16.msra.mxu0 %v1322
    %2963 = vmatprep.subr.bf16.mxu0 %v1331
    %2964 = vmatpush1.bf16.msra.mxu0 %v1330
    %2965 = vmatprep.subr.bf16.mxu0 %v1339
    %2966 = vmatpush1.bf16.msra.mxu0 %v1338
    %2967 = vmatprep.subr.bf16.mxu0 %v1347
    %2968 = vmatpush1.bf16.msra.mxu0 %v1346
    %2969 = vmatprep.subr.bf16.mxu0 %v1355
    %2970 = vmatpush1.bf16.msra.mxu0 %v1354
    %2971 = vmatprep.subr.bf16.mxu0 %v1363
    %2972 = vmatpush1.bf16.msra.mxu0 %v1362
    %2973 = vmatprep.subr.bf16.mxu0 %v1371
    %2974 = vmatpush1.bf16.msra.mxu0 %v1370
    %2975 = vmatprep.subr.bf16.mxu0 %v1379
    %2976 = vmatpush1.bf16.msra.mxu0 %v1378
    %2977 = vmatprep.subr.bf16.mxu0 %v1387
    %2978 = vmatpush1.bf16.msra.mxu0 %v1386
    %2979 = vmatprep.mubr.bf16.mxu0 %v2862
    %2980 = vmatmul.mubr.bf16.gmra.mrb[0].mxu0 %v2861
    %v2981 = vpop.f32.mrb[0].mxu0
    %v2982 = vadd.f32 0.0, %v2981
    %v2983 = vpop.f32.mrb[0].mxu0
    %v2984 = vadd.f32 0.0, %v2983
    %v2985 = vpop.f32.mrb[0].mxu0
    %v2986 = vpop.f32.mrb[0].mxu0
    %2987 = vdwg.mxu0
    %2988 = vmatprep.subr.bf16.mxu0 %v1395
    %2989 = vmatpush1.bf16.msra.mxu0 %v1394
    %2990 = vmatprep.subr.bf16.mxu0 %v1403
    %2991 = vmatpush1.bf16.msra.mxu0 %v1402
    %2992 = vmatprep.subr.bf16.mxu0 %v1411
    %2993 = vmatpush1.bf16.msra.mxu0 %v1410
    %2994 = vmatprep.subr.bf16.mxu0 %v1419
    %2995 = vmatpush1.bf16.msra.mxu0 %v1418
    %2996 = vmatprep.subr.bf16.mxu0 %v1427
    %2997 = vmatpush1.bf16.msra.mxu0 %v1426
    %2998 = vmatprep.subr.bf16.mxu0 %v1435
    %2999 = vmatpush1.bf16.msra.mxu0 %v1434
    %3000 = vmatprep.subr.bf16.mxu0 %v1443
    %3001 = vmatpush1.bf16.msra.mxu0 %v1442
    %3002 = vmatprep.subr.bf16.mxu0 %v1451
    %3003 = vmatpush1.bf16.msra.mxu0 %v1450
    %3004 = vmatprep.subr.bf16.mxu0 %v1459
    %3005 = vmatpush1.bf16.msra.mxu0 %v1458
    %3006 = vmatprep.subr.bf16.mxu0 %v1467
    %3007 = vmatpush1.bf16.msra.mxu0 %v1466
    %3008 = vmatprep.subr.bf16.mxu0 %v1475
    %3009 = vmatpush1.bf16.msra.mxu0 %v1474
    %3010 = vmatprep.subr.bf16.mxu0 %v1483
    %3011 = vmatpush1.bf16.msra.mxu0 %v1482
    %3012 = vmatprep.subr.bf16.mxu0 %v1491
    %3013 = vmatpush1.bf16.msra.mxu0 %v1490
    %3014 = vmatprep.subr.bf16.mxu0 %v1499
    %3015 = vmatpush1.bf16.msra.mxu0 %v1498
    %3016 = vmatprep.subr.bf16.mxu0 %v1507
    %3017 = vmatpush1.bf16.msra.mxu0 %v1506
    %3018 = vmatprep.subr.bf16.mxu0 %v1515
    %3019 = vmatpush1.bf16.msra.mxu0 %v1514
    %3020 = vmatprep.mubr.bf16.mxu0 %v2864
    %3021 = vmatmul.mubr.bf16.gmra.mrb[0].mxu0 %v2863
    %v3022 = vpop.f32.mrb[0].mxu0
    %v3023 = vadd.f32 %v2982, %v3022
    %v3024 = vpop.f32.mrb[0].mxu0
    %v3025 = vadd.f32 %v2984, %v3024
    %v3026 = vpop.f32.mrb[0].mxu0
    %v3027 = vpop.f32.mrb[0].mxu0
    %3028 = vdwg.mxu0
    %3029 = vmatprep.subr.bf16.mxu0 %v1269
    %3030 = vmatpush1.bf16.msra.mxu0 %v1268
    %3031 = vmatprep.subr.bf16.mxu0 %v1277
    %3032 = vmatpush1.bf16.msra.mxu0 %v1276
    %3033 = vmatprep.subr.bf16.mxu0 %v1285
    %3034 = vmatpush1.bf16.msra.mxu0 %v1284
    %3035 = vmatprep.subr.bf16.mxu0 %v1293
    %3036 = vmatpush1.bf16.msra.mxu0 %v1292
    %3037 = vmatprep.subr.bf16.mxu0 %v1301
    %3038 = vmatpush1.bf16.msra.mxu0 %v1300
    %3039 = vmatprep.subr.bf16.mxu0 %v1309
    %3040 = vmatpush1.bf16.msra.mxu0 %v1308
    %3041 = vmatprep.subr.bf16.mxu0 %v1317
    %3042 = vmatpush1.bf16.msra.mxu0 %v1316
    %3043 = vmatprep.subr.bf16.mxu0 %v1325
    %3044 = vmatpush1.bf16.msra.mxu0 %v1324
    %3045 = vmatprep.subr.bf16.mxu0 %v1333
    %3046 = vmatpush1.bf16.msra.mxu0 %v1332
    %3047 = vmatprep.subr.bf16.mxu0 %v1341
    %3048 = vmatpush1.bf16.msra.mxu0 %v1340
    %3049 = vmatprep.subr.bf16.mxu0 %v1349
    %3050 = vmatpush1.bf16.msra.mxu0 %v1348
    %3051 = vmatprep.subr.bf16.mxu0 %v1357
    %3052 = vmatpush1.bf16.msra.mxu0 %v1356
    %3053 = vmatprep.subr.bf16.mxu0 %v1365
    %3054 = vmatpush1.bf16.msra.mxu0 %v1364
    %3055 = vmatprep.subr.bf16.mxu0 %v1373
    %3056 = vmatpush1.bf16.msra.mxu0 %v1372
    %3057 = vmatprep.subr.bf16.mxu0 %v1381
    %3058 = vmatpush1.bf16.msra.mxu0 %v1380
    %3059 = vmatprep.subr.bf16.mxu0 %v1389
    %3060 = vmatpush1.bf16.msra.mxu0 %v1388
    %3061 = vmatprep.mubr.bf16.mxu0 %v2862
    %3062 = vmatmul.mubr.bf16.gmra.mrb[0].mxu0 %v2861
    %v3063 = vpop.f32.mrb[0].mxu0
    %v3064 = vadd.f32 0.0, %v3063
    %v3065 = vpop.f32.mrb[0].mxu0
    %v3066 = vadd.f32 0.0, %v3065
    %v3067 = vpop.f32.mrb[0].mxu0
    %v3068 = vpop.f32.mrb[0].mxu0
    %3069 = vdwg.mxu0
    %3070 = vmatprep.subr.bf16.mxu0 %v1397
    %3071 = vmatpush1.bf16.msra.mxu0 %v1396
    %3072 = vmatprep.subr.bf16.mxu0 %v1405
    %3073 = vmatpush1.bf16.msra.mxu0 %v1404
    %3074 = vmatprep.subr.bf16.mxu0 %v1413
    %3075 = vmatpush1.bf16.msra.mxu0 %v1412
    %3076 = vmatprep.subr.bf16.mxu0 %v1421
    %3077 = vmatpush1.bf16.msra.mxu0 %v1420
    %3078 = vmatprep.subr.bf16.mxu0 %v1429
    %3079 = vmatpush1.bf16.msra.mxu0 %v1428
    %3080 = vmatprep.subr.bf16.mxu0 %v1437
    %3081 = vmatpush1.bf16.msra.mxu0 %v1436
    %3082 = vmatprep.subr.bf16.mxu0 %v1445
    %3083 = vmatpush1.bf16.msra.mxu0 %v1444
    %3084 = vmatprep.subr.bf16.mxu0 %v1453
    %3085 = vmatpush1.bf16.msra.mxu0 %v1452
    %3086 = vmatprep.subr.bf16.mxu0 %v1461
    %3087 = vmatpush1.bf16.msra.mxu0 %v1460
    %3088 = vmatprep.subr.bf16.mxu0 %v1469
    %3089 = vmatpush1.bf16.msra.mxu0 %v1468
    %3090 = vmatprep.subr.bf16.mxu0 %v1477
    %3091 = vmatpush1.bf16.msra.mxu0 %v1476
    %3092 = vmatprep.subr.bf16.mxu0 %v1485
    %3093 = vmatpush1.bf16.msra.mxu0 %v1484
    %3094 = vmatprep.subr.bf16.mxu0 %v1493
    %3095 = vmatpush1.bf16.msra.mxu0 %v1492
    %3096 = vmatprep.subr.bf16.mxu0 %v1501
    %3097 = vmatpush1.bf16.msra.mxu0 %v1500
    %3098 = vmatprep.subr.bf16.mxu0 %v1509
    %3099 = vmatpush1.bf16.msra.mxu0 %v1508
    %3100 = vmatprep.subr.bf16.mxu0 %v1517
    %3101 = vmatpush1.bf16.msra.mxu0 %v1516
    %3102 = vmatprep.mubr.bf16.mxu0 %v2864
    %3103 = vmatmul.mubr.bf16.gmra.mrb[0].mxu0 %v2863
    %v3104 = vpop.f32.mrb[0].mxu0
    %v3105 = vadd.f32 %v3064, %v3104
    %v3106 = vpop.f32.mrb[0].mxu0
    %v3107 = vadd.f32 %v3066, %v3106
    %v3108 = vpop.f32.mrb[0].mxu0
    %v3109 = vpop.f32.mrb[0].mxu0
    %3110 = vdwg.mxu0
    %3111 = vmatprep.subr.bf16.mxu0 %v1271
    %3112 = vmatpush1.bf16.msra.mxu0 %v1270
    %3113 = vmatprep.subr.bf16.mxu0 %v1279
    %3114 = vmatpush1.bf16.msra.mxu0 %v1278
    %3115 = vmatprep.subr.bf16.mxu0 %v1287
    %3116 = vmatpush1.bf16.msra.mxu0 %v1286
    %3117 = vmatprep.subr.bf16.mxu0 %v1295
    %3118 = vmatpush1.bf16.msra.mxu0 %v1294
    %3119 = vmatprep.subr.bf16.mxu0 %v1303
    %3120 = vmatpush1.bf16.msra.mxu0 %v1302
    %3121 = vmatprep.subr.bf16.mxu0 %v1311
    %3122 = vmatpush1.bf16.msra.mxu0 %v1310
    %3123 = vmatprep.subr.bf16.mxu0 %v1319
    %3124 = vmatpush1.bf16.msra.mxu0 %v1318
    %3125 = vmatprep.subr.bf16.mxu0 %v1327
    %3126 = vmatpush1.bf16.msra.mxu0 %v1326
    %3127 = vmatprep.subr.bf16.mxu0 %v1335
    %3128 = vmatpush1.bf16.msra.mxu0 %v1334
    %3129 = vmatprep.subr.bf16.mxu0 %v1343
    %3130 = vmatpush1.bf16.msra.mxu0 %v1342
    %3131 = vmatprep.subr.bf16.mxu0 %v1351
    %3132 = vmatpush1.bf16.msra.mxu0 %v1350
    %3133 = vmatprep.subr.bf16.mxu0 %v1359
    %3134 = vmatpush1.bf16.msra.mxu0 %v1358
    %3135 = vmatprep.subr.bf16.mxu0 %v1367
    %3136 = vmatpush1.bf16.msra.mxu0 %v1366
    %3137 = vmatprep.subr.bf16.mxu0 %v1375
    %3138 = vmatpush1.bf16.msra.mxu0 %v1374
    %3139 = vmatprep.subr.bf16.mxu0 %v1383
    %3140 = vmatpush1.bf16.msra.mxu0 %v1382
    %3141 = vmatprep.subr.bf16.mxu0 %v1391
    %3142 = vmatpush1.bf16.msra.mxu0 %v1390
    %3143 = vmatprep.mubr.bf16.mxu0 %v2862
    %3144 = vmatmul.mubr.bf16.gmra.mrb[0].mxu0 %v2861
    %v3145 = vpop.f32.mrb[0].mxu0
    %v3146 = vadd.f32 0.0, %v3145
    %v3147 = vpop.f32.mrb[0].mxu0
    %v3148 = vadd.f32 0.0, %v3147
    %v3149 = vpop.f32.mrb[0].mxu0
    %v3150 = vpop.f32.mrb[0].mxu0
    %3151 = vdwg.mxu0
    %3152 = vmatprep.subr.bf16.mxu0 %v1399
    %3153 = vmatpush1.bf16.msra.mxu0 %v1398
    %3154 = vmatprep.subr.bf16.mxu0 %v1407
    %3155 = vmatpush1.bf16.msra.mxu0 %v1406
    %3156 = vmatprep.subr.bf16.mxu0 %v1415
    %3157 = vmatpush1.bf16.msra.mxu0 %v1414
    %3158 = vmatprep.subr.bf16.mxu0 %v1423
    %3159 = vmatpush1.bf16.msra.mxu0 %v1422
    %3160 = vmatprep.subr.bf16.mxu0 %v1431
    %3161 = vmatpush1.bf16.msra.mxu0 %v1430
    %3162 = vmatprep.subr.bf16.mxu0 %v1439
    %3163 = vmatpush1.bf16.msra.mxu0 %v1438
    %3164 = vmatprep.subr.bf16.mxu0 %v1447
    %3165 = vmatpush1.bf16.msra.mxu0 %v1446
    %3166 = vmatprep.subr.bf16.mxu0 %v1455
    %3167 = vmatpush1.bf16.msra.mxu0 %v1454
    %3168 = vmatprep.subr.bf16.mxu0 %v1463
    %3169 = vmatpush1.bf16.msra.mxu0 %v1462
    %3170 = vmatprep.subr.bf16.mxu0 %v1471
    %3171 = vmatpush1.bf16.msra.mxu0 %v1470
    %3172 = vmatprep.subr.bf16.mxu0 %v1479
    %3173 = vmatpush1.bf16.msra.mxu0 %v1478
    %3174 = vmatprep.subr.bf16.mxu0 %v1487
    %3175 = vmatpush1.bf16.msra.mxu0 %v1486
    %3176 = vmatprep.subr.bf16.mxu0 %v1495
    %3177 = vmatpush1.bf16.msra.mxu0 %v1494
    %3178 = vmatprep.subr.bf16.mxu0 %v1503
    %3179 = vmatpush1.bf16.msra.mxu0 %v1502
    %3180 = vmatprep.subr.bf16.mxu0 %v1511
    %3181 = vmatpush1.bf16.msra.mxu0 %v1510
    %3182 = vmatprep.subr.bf16.mxu0 %v1519
    %3183 = vmatpush1.bf16.msra.mxu0 %v1518
    %3184 = vmatprep.mubr.bf16.mxu0 %v2864
    %3185 = vmatmul.mubr.bf16.gmra.mrb[0].mxu0 %v2863
    %v3186 = vpop.f32.mrb[0].mxu0
    %v3187 = vadd.f32 %v3146, %v3186
    %v3188 = vpop.f32.mrb[0].mxu0
    %v3189 = vadd.f32 %v3148, %v3188
    %v3190 = vpop.f32.mrb[0].mxu0
    %v3191 = vpop.f32.mrb[0].mxu0
    %3192 = vdwg.mxu0
    %v3193 = vadd.f32 %v2849, %v2941
    %v3194 = vadd.f32 %v2850, %v2943
    %v3195 = vadd.f32 %v2851, %v3023
    %v3196 = vadd.f32 %v2852, %v3025
    %v3197 = vadd.f32 %v2853, %v3105
    %v3198 = vadd.f32 %v2854, %v3107
    %v3199 = vadd.f32 %v2855, %v3187
    %v3200 = vadd.f32 %v2856, %v3189
    %v3201 = vxor.u32 %v3193, 2147483648
    %v3202 = vxor.u32 %v3194, 2147483648
    %v3203 = vxor.u32 %v3195, 2147483648
    %v3204 = vxor.u32 %v3196, 2147483648
    %v3205 = vxor.u32 %v3197, 2147483648
    %v3206 = vxor.u32 %v3198, 2147483648
    %v3207 = vmul.f32 %v3201, 1.442695
    %v3208 = vpow.pop %v3207
    %v3209 = vmul.f32 %v3202, 1.442695
    %v3210 = vpow.pop %v3209
    %v3211 = vmul.f32 %v3203, 1.442695
    %v3212 = vpow.pop %v3211
    %v3213 = vmul.f32 %v3204, 1.442695
    %v3214 = vpow.pop %v3213
    %v3215 = vmul.f32 %v3205, 1.442695
    %v3216 = vpow.pop %v3215
    %v3217 = vmul.f32 %v3206, 1.442695
    %v3218 = vpow.pop %v3217
    %v3219 = vadd.f32 %v3208, 1.0
    %v3220 = vadd.f32 %v3210, 1.0
    %v3221 = vadd.f32 %v3212, 1.0
    %v3222 = vadd.f32 %v3214, 1.0
    %v3223 = vadd.f32 %v3216, 1.0
    %v3224 = vadd.f32 %v3218, 1.0
    %v3225 = vrcp.pop %v3219
    %v3226 = vmul.f32 1.0, %v3225
    %v3227 = vrcp.pop %v3220
    %v3228 = vmul.f32 1.0, %v3227
    %v3229 = vrcp.pop %v3221
    %v3230 = vmul.f32 1.0, %v3229
    %v3231 = vrcp.pop %v3222
    %v3232 = vmul.f32 1.0, %v3231
    %v3233 = vrcp.pop %v3223
    %v3234 = vmul.f32 1.0, %v3233
    %v3235 = vrcp.pop %v3224
    %v3236 = vmul.f32 1.0, %v3235
    %v3237 = vtanh.pop %v3199
    %v3238 = vtanh.pop %v3200
    %v3239 = vmul.f32 %v3230, %v2811
    %v3240 = vmul.f32 %v3232, %v2812
    %v3241 = vmul.f32 %v3226, %v3237
    %v3242 = vmul.f32 %v3228, %v3238
    %v3243 = vadd.f32 %v3239, %v3241
    %v3244 = vadd.f32 %v3240, %v3242
    %v3245 = vtanh.pop %v3243
    %v3246 = vtanh.pop %v3244
    %v3247 = vmul.f32 %v3234, %v3245
    %v3248 = vmul.f32 %v3236, %v3246
    %v3249 = vrot.slane %v939, 4
    %v3250 = vrot.slane %v941, 4
    %v3251 = vrot.slane %v980, 4
    %v3252 = vrot.slane %v982, 4
    %v3253 = vrot.slane %v1021, 4
    %v3254 = vrot.slane %v1023, 4
    %v3255 = vrot.slane %v1062, 4
    %v3256 = vrot.slane %v1064, 4
    %v3265 = vrot.slane %v1103, 2
    %v3266 = vrot.slane %v1105, 2
    %v3267 = vrot.slane %v1144, 2
    %v3268 = vrot.slane %v1146, 2
    %v3269 = vrot.slane %v1185, 2
    %v3270 = vrot.slane %v1187, 2
    %v3271 = vrot.slane %v1226, 2
    %v3272 = vrot.slane %v1228, 2
    %v3281 = vsel %vm1544, %v3249, %v3265
    %v3282 = vsel %vm1544, %v3250, %v3266
    %v3283 = vsel %vm1544, %v3251, %v3267
    %v3284 = vsel %vm1544, %v3252, %v3268
    %v3285 = vsel %vm1544, %v3253, %v3269
    %v3286 = vsel %vm1544, %v3254, %v3270
    %v3287 = vsel %vm1544, %v3255, %v3271
    %v3288 = vsel %vm1544, %v3256, %v3272
    %v3289 = vmul.f32 %v3247, %v1256
    %v3290 = vmul.f32 %v3248, %v1257
    %v3291 = vmul.f32 %v3247, %v1258
    %v3292 = vmul.f32 %v3248, %v1259
    %v3293 = vpack.c.bf16 %v3289, %v3289
    %v3294 = vpack.c.bf16 %v3290, %v3290
    %v3295 = vpack.c.bf16 %v3291, %v3291
    %v3296 = vpack.c.bf16 %v3292, %v3292
    %3297 = vmatprep.subr.bf16.mxu0 %v1265
    %3298 = vmatpush1.bf16.msra.mxu0 %v1264
    %3299 = vmatprep.subr.bf16.mxu0 %v1273
    %3300 = vmatpush1.bf16.msra.mxu0 %v1272
    %3301 = vmatprep.subr.bf16.mxu0 %v1281
    %3302 = vmatpush1.bf16.msra.mxu0 %v1280
    %3303 = vmatprep.subr.bf16.mxu0 %v1289
    %3304 = vmatpush1.bf16.msra.mxu0 %v1288
    %3305 = vmatprep.subr.bf16.mxu0 %v1297
    %3306 = vmatpush1.bf16.msra.mxu0 %v1296
    %3307 = vmatprep.subr.bf16.mxu0 %v1305
    %3308 = vmatpush1.bf16.msra.mxu0 %v1304
    %3309 = vmatprep.subr.bf16.mxu0 %v1313
    %3310 = vmatpush1.bf16.msra.mxu0 %v1312
    %3311 = vmatprep.subr.bf16.mxu0 %v1321
    %3312 = vmatpush1.bf16.msra.mxu0 %v1320
    %3313 = vmatprep.subr.bf16.mxu0 %v1329
    %3314 = vmatpush1.bf16.msra.mxu0 %v1328
    %3315 = vmatprep.subr.bf16.mxu0 %v1337
    %3316 = vmatpush1.bf16.msra.mxu0 %v1336
    %3317 = vmatprep.subr.bf16.mxu0 %v1345
    %3318 = vmatpush1.bf16.msra.mxu0 %v1344
    %3319 = vmatprep.subr.bf16.mxu0 %v1353
    %3320 = vmatpush1.bf16.msra.mxu0 %v1352
    %3321 = vmatprep.subr.bf16.mxu0 %v1361
    %3322 = vmatpush1.bf16.msra.mxu0 %v1360
    %3323 = vmatprep.subr.bf16.mxu0 %v1369
    %3324 = vmatpush1.bf16.msra.mxu0 %v1368
    %3325 = vmatprep.subr.bf16.mxu0 %v1377
    %3326 = vmatpush1.bf16.msra.mxu0 %v1376
    %3327 = vmatprep.subr.bf16.mxu0 %v1385
    %3328 = vmatpush1.bf16.msra.mxu0 %v1384
    %3329 = vmatprep.mubr.bf16.mxu0 %v3294
    %3330 = vmatmul.mubr.bf16.gmra.mrb[0].mxu0 %v3293
    %v3331 = vpop.f32.mrb[0].mxu0
    %v3332 = vadd.f32 0.0, %v3331
    %v3333 = vpop.f32.mrb[0].mxu0
    %v3334 = vadd.f32 0.0, %v3333
    %v3335 = vpop.f32.mrb[0].mxu0
    %v3336 = vpop.f32.mrb[0].mxu0
    %3337 = vdwg.mxu0
    %3338 = vmatprep.subr.bf16.mxu0 %v1393
    %3339 = vmatpush1.bf16.msra.mxu0 %v1392
    %3340 = vmatprep.subr.bf16.mxu0 %v1401
    %3341 = vmatpush1.bf16.msra.mxu0 %v1400
    %3342 = vmatprep.subr.bf16.mxu0 %v1409
    %3343 = vmatpush1.bf16.msra.mxu0 %v1408
    %3344 = vmatprep.subr.bf16.mxu0 %v1417
    %3345 = vmatpush1.bf16.msra.mxu0 %v1416
    %3346 = vmatprep.subr.bf16.mxu0 %v1425
    %3347 = vmatpush1.bf16.msra.mxu0 %v1424
    %3348 = vmatprep.subr.bf16.mxu0 %v1433
    %3349 = vmatpush1.bf16.msra.mxu0 %v1432
    %3350 = vmatprep.subr.bf16.mxu0 %v1441
    %3351 = vmatpush1.bf16.msra.mxu0 %v1440
    %3352 = vmatprep.subr.bf16.mxu0 %v1449
    %3353 = vmatpush1.bf16.msra.mxu0 %v1448
    %3354 = vmatprep.subr.bf16.mxu0 %v1457
    %3355 = vmatpush1.bf16.msra.mxu0 %v1456
    %3356 = vmatprep.subr.bf16.mxu0 %v1465
    %3357 = vmatpush1.bf16.msra.mxu0 %v1464
    %3358 = vmatprep.subr.bf16.mxu0 %v1473
    %3359 = vmatpush1.bf16.msra.mxu0 %v1472
    %3360 = vmatprep.subr.bf16.mxu0 %v1481
    %3361 = vmatpush1.bf16.msra.mxu0 %v1480
    %3362 = vmatprep.subr.bf16.mxu0 %v1489
    %3363 = vmatpush1.bf16.msra.mxu0 %v1488
    %3364 = vmatprep.subr.bf16.mxu0 %v1497
    %3365 = vmatpush1.bf16.msra.mxu0 %v1496
    %3366 = vmatprep.subr.bf16.mxu0 %v1505
    %3367 = vmatpush1.bf16.msra.mxu0 %v1504
    %3368 = vmatprep.subr.bf16.mxu0 %v1513
    %3369 = vmatpush1.bf16.msra.mxu0 %v1512
    %3370 = vmatprep.mubr.bf16.mxu0 %v3296
    %3371 = vmatmul.mubr.bf16.gmra.mrb[0].mxu0 %v3295
    %v3372 = vpop.f32.mrb[0].mxu0
    %v3373 = vadd.f32 %v3332, %v3372
    %v3374 = vpop.f32.mrb[0].mxu0
    %v3375 = vadd.f32 %v3334, %v3374
    %v3376 = vpop.f32.mrb[0].mxu0
    %v3377 = vpop.f32.mrb[0].mxu0
    %3378 = vdwg.mxu0
    %3379 = vmatprep.subr.bf16.mxu0 %v1267
    %3380 = vmatpush1.bf16.msra.mxu0 %v1266
    %3381 = vmatprep.subr.bf16.mxu0 %v1275
    %3382 = vmatpush1.bf16.msra.mxu0 %v1274
    %3383 = vmatprep.subr.bf16.mxu0 %v1283
    %3384 = vmatpush1.bf16.msra.mxu0 %v1282
    %3385 = vmatprep.subr.bf16.mxu0 %v1291
    %3386 = vmatpush1.bf16.msra.mxu0 %v1290
    %3387 = vmatprep.subr.bf16.mxu0 %v1299
    %3388 = vmatpush1.bf16.msra.mxu0 %v1298
    %3389 = vmatprep.subr.bf16.mxu0 %v1307
    %3390 = vmatpush1.bf16.msra.mxu0 %v1306
    %3391 = vmatprep.subr.bf16.mxu0 %v1315
    %3392 = vmatpush1.bf16.msra.mxu0 %v1314
    %3393 = vmatprep.subr.bf16.mxu0 %v1323
    %3394 = vmatpush1.bf16.msra.mxu0 %v1322
    %3395 = vmatprep.subr.bf16.mxu0 %v1331
    %3396 = vmatpush1.bf16.msra.mxu0 %v1330
    %3397 = vmatprep.subr.bf16.mxu0 %v1339
    %3398 = vmatpush1.bf16.msra.mxu0 %v1338
    %3399 = vmatprep.subr.bf16.mxu0 %v1347
    %3400 = vmatpush1.bf16.msra.mxu0 %v1346
    %3401 = vmatprep.subr.bf16.mxu0 %v1355
    %3402 = vmatpush1.bf16.msra.mxu0 %v1354
    %3403 = vmatprep.subr.bf16.mxu0 %v1363
    %3404 = vmatpush1.bf16.msra.mxu0 %v1362
    %3405 = vmatprep.subr.bf16.mxu0 %v1371
    %3406 = vmatpush1.bf16.msra.mxu0 %v1370
    %3407 = vmatprep.subr.bf16.mxu0 %v1379
    %3408 = vmatpush1.bf16.msra.mxu0 %v1378
    %3409 = vmatprep.subr.bf16.mxu0 %v1387
    %3410 = vmatpush1.bf16.msra.mxu0 %v1386
    %3411 = vmatprep.mubr.bf16.mxu0 %v3294
    %3412 = vmatmul.mubr.bf16.gmra.mrb[0].mxu0 %v3293
    %v3413 = vpop.f32.mrb[0].mxu0
    %v3414 = vadd.f32 0.0, %v3413
    %v3415 = vpop.f32.mrb[0].mxu0
    %v3416 = vadd.f32 0.0, %v3415
    %v3417 = vpop.f32.mrb[0].mxu0
    %v3418 = vpop.f32.mrb[0].mxu0
    %3419 = vdwg.mxu0
    %3420 = vmatprep.subr.bf16.mxu0 %v1395
    %3421 = vmatpush1.bf16.msra.mxu0 %v1394
    %3422 = vmatprep.subr.bf16.mxu0 %v1403
    %3423 = vmatpush1.bf16.msra.mxu0 %v1402
    %3424 = vmatprep.subr.bf16.mxu0 %v1411
    %3425 = vmatpush1.bf16.msra.mxu0 %v1410
    %3426 = vmatprep.subr.bf16.mxu0 %v1419
    %3427 = vmatpush1.bf16.msra.mxu0 %v1418
    %3428 = vmatprep.subr.bf16.mxu0 %v1427
    %3429 = vmatpush1.bf16.msra.mxu0 %v1426
    %3430 = vmatprep.subr.bf16.mxu0 %v1435
    %3431 = vmatpush1.bf16.msra.mxu0 %v1434
    %3432 = vmatprep.subr.bf16.mxu0 %v1443
    %3433 = vmatpush1.bf16.msra.mxu0 %v1442
    %3434 = vmatprep.subr.bf16.mxu0 %v1451
    %3435 = vmatpush1.bf16.msra.mxu0 %v1450
    %3436 = vmatprep.subr.bf16.mxu0 %v1459
    %3437 = vmatpush1.bf16.msra.mxu0 %v1458
    %3438 = vmatprep.subr.bf16.mxu0 %v1467
    %3439 = vmatpush1.bf16.msra.mxu0 %v1466
    %3440 = vmatprep.subr.bf16.mxu0 %v1475
    %3441 = vmatpush1.bf16.msra.mxu0 %v1474
    %3442 = vmatprep.subr.bf16.mxu0 %v1483
    %3443 = vmatpush1.bf16.msra.mxu0 %v1482
    %3444 = vmatprep.subr.bf16.mxu0 %v1491
    %3445 = vmatpush1.bf16.msra.mxu0 %v1490
    %3446 = vmatprep.subr.bf16.mxu0 %v1499
    %3447 = vmatpush1.bf16.msra.mxu0 %v1498
    %3448 = vmatprep.subr.bf16.mxu0 %v1507
    %3449 = vmatpush1.bf16.msra.mxu0 %v1506
    %3450 = vmatprep.subr.bf16.mxu0 %v1515
    %3451 = vmatpush1.bf16.msra.mxu0 %v1514
    %3452 = vmatprep.mubr.bf16.mxu0 %v3296
    %3453 = vmatmul.mubr.bf16.gmra.mrb[0].mxu0 %v3295
    %v3454 = vpop.f32.mrb[0].mxu0
    %v3455 = vadd.f32 %v3414, %v3454
    %v3456 = vpop.f32.mrb[0].mxu0
    %v3457 = vadd.f32 %v3416, %v3456
    %v3458 = vpop.f32.mrb[0].mxu0
    %v3459 = vpop.f32.mrb[0].mxu0
    %3460 = vdwg.mxu0
    %3461 = vmatprep.subr.bf16.mxu0 %v1269
    %3462 = vmatpush1.bf16.msra.mxu0 %v1268
    %3463 = vmatprep.subr.bf16.mxu0 %v1277
    %3464 = vmatpush1.bf16.msra.mxu0 %v1276
    %3465 = vmatprep.subr.bf16.mxu0 %v1285
    %3466 = vmatpush1.bf16.msra.mxu0 %v1284
    %3467 = vmatprep.subr.bf16.mxu0 %v1293
    %3468 = vmatpush1.bf16.msra.mxu0 %v1292
    %3469 = vmatprep.subr.bf16.mxu0 %v1301
    %3470 = vmatpush1.bf16.msra.mxu0 %v1300
    %3471 = vmatprep.subr.bf16.mxu0 %v1309
    %3472 = vmatpush1.bf16.msra.mxu0 %v1308
    %3473 = vmatprep.subr.bf16.mxu0 %v1317
    %3474 = vmatpush1.bf16.msra.mxu0 %v1316
    %3475 = vmatprep.subr.bf16.mxu0 %v1325
    %3476 = vmatpush1.bf16.msra.mxu0 %v1324
    %3477 = vmatprep.subr.bf16.mxu0 %v1333
    %3478 = vmatpush1.bf16.msra.mxu0 %v1332
    %3479 = vmatprep.subr.bf16.mxu0 %v1341
    %3480 = vmatpush1.bf16.msra.mxu0 %v1340
    %3481 = vmatprep.subr.bf16.mxu0 %v1349
    %3482 = vmatpush1.bf16.msra.mxu0 %v1348
    %3483 = vmatprep.subr.bf16.mxu0 %v1357
    %3484 = vmatpush1.bf16.msra.mxu0 %v1356
    %3485 = vmatprep.subr.bf16.mxu0 %v1365
    %3486 = vmatpush1.bf16.msra.mxu0 %v1364
    %3487 = vmatprep.subr.bf16.mxu0 %v1373
    %3488 = vmatpush1.bf16.msra.mxu0 %v1372
    %3489 = vmatprep.subr.bf16.mxu0 %v1381
    %3490 = vmatpush1.bf16.msra.mxu0 %v1380
    %3491 = vmatprep.subr.bf16.mxu0 %v1389
    %3492 = vmatpush1.bf16.msra.mxu0 %v1388
    %3493 = vmatprep.mubr.bf16.mxu0 %v3294
    %3494 = vmatmul.mubr.bf16.gmra.mrb[0].mxu0 %v3293
    %v3495 = vpop.f32.mrb[0].mxu0
    %v3496 = vadd.f32 0.0, %v3495
    %v3497 = vpop.f32.mrb[0].mxu0
    %v3498 = vadd.f32 0.0, %v3497
    %v3499 = vpop.f32.mrb[0].mxu0
    %v3500 = vpop.f32.mrb[0].mxu0
    %3501 = vdwg.mxu0
    %3502 = vmatprep.subr.bf16.mxu0 %v1397
    %3503 = vmatpush1.bf16.msra.mxu0 %v1396
    %3504 = vmatprep.subr.bf16.mxu0 %v1405
    %3505 = vmatpush1.bf16.msra.mxu0 %v1404
    %3506 = vmatprep.subr.bf16.mxu0 %v1413
    %3507 = vmatpush1.bf16.msra.mxu0 %v1412
    %3508 = vmatprep.subr.bf16.mxu0 %v1421
    %3509 = vmatpush1.bf16.msra.mxu0 %v1420
    %3510 = vmatprep.subr.bf16.mxu0 %v1429
    %3511 = vmatpush1.bf16.msra.mxu0 %v1428
    %3512 = vmatprep.subr.bf16.mxu0 %v1437
    %3513 = vmatpush1.bf16.msra.mxu0 %v1436
    %3514 = vmatprep.subr.bf16.mxu0 %v1445
    %3515 = vmatpush1.bf16.msra.mxu0 %v1444
    %3516 = vmatprep.subr.bf16.mxu0 %v1453
    %3517 = vmatpush1.bf16.msra.mxu0 %v1452
    %3518 = vmatprep.subr.bf16.mxu0 %v1461
    %3519 = vmatpush1.bf16.msra.mxu0 %v1460
    %3520 = vmatprep.subr.bf16.mxu0 %v1469
    %3521 = vmatpush1.bf16.msra.mxu0 %v1468
    %3522 = vmatprep.subr.bf16.mxu0 %v1477
    %3523 = vmatpush1.bf16.msra.mxu0 %v1476
    %3524 = vmatprep.subr.bf16.mxu0 %v1485
    %3525 = vmatpush1.bf16.msra.mxu0 %v1484
    %3526 = vmatprep.subr.bf16.mxu0 %v1493
    %3527 = vmatpush1.bf16.msra.mxu0 %v1492
    %3528 = vmatprep.subr.bf16.mxu0 %v1501
    %3529 = vmatpush1.bf16.msra.mxu0 %v1500
    %3530 = vmatprep.subr.bf16.mxu0 %v1509
    %3531 = vmatpush1.bf16.msra.mxu0 %v1508
    %3532 = vmatprep.subr.bf16.mxu0 %v1517
    %3533 = vmatpush1.bf16.msra.mxu0 %v1516
    %3534 = vmatprep.mubr.bf16.mxu0 %v3296
    %3535 = vmatmul.mubr.bf16.gmra.mrb[0].mxu0 %v3295
    %v3536 = vpop.f32.mrb[0].mxu0
    %v3537 = vadd.f32 %v3496, %v3536
    %v3538 = vpop.f32.mrb[0].mxu0
    %v3539 = vadd.f32 %v3498, %v3538
    %v3540 = vpop.f32.mrb[0].mxu0
    %v3541 = vpop.f32.mrb[0].mxu0
    %3542 = vdwg.mxu0
    %3543 = vmatprep.subr.bf16.mxu0 %v1271
    %3544 = vmatpush1.bf16.msra.mxu0 %v1270
    %3545 = vmatprep.subr.bf16.mxu0 %v1279
    %3546 = vmatpush1.bf16.msra.mxu0 %v1278
    %3547 = vmatprep.subr.bf16.mxu0 %v1287
    %3548 = vmatpush1.bf16.msra.mxu0 %v1286
    %3549 = vmatprep.subr.bf16.mxu0 %v1295
    %3550 = vmatpush1.bf16.msra.mxu0 %v1294
    %3551 = vmatprep.subr.bf16.mxu0 %v1303
    %3552 = vmatpush1.bf16.msra.mxu0 %v1302
    %3553 = vmatprep.subr.bf16.mxu0 %v1311
    %3554 = vmatpush1.bf16.msra.mxu0 %v1310
    %3555 = vmatprep.subr.bf16.mxu0 %v1319
    %3556 = vmatpush1.bf16.msra.mxu0 %v1318
    %3557 = vmatprep.subr.bf16.mxu0 %v1327
    %3558 = vmatpush1.bf16.msra.mxu0 %v1326
    %3559 = vmatprep.subr.bf16.mxu0 %v1335
    %3560 = vmatpush1.bf16.msra.mxu0 %v1334
    %3561 = vmatprep.subr.bf16.mxu0 %v1343
    %3562 = vmatpush1.bf16.msra.mxu0 %v1342
    %3563 = vmatprep.subr.bf16.mxu0 %v1351
    %3564 = vmatpush1.bf16.msra.mxu0 %v1350
    %3565 = vmatprep.subr.bf16.mxu0 %v1359
    %3566 = vmatpush1.bf16.msra.mxu0 %v1358
    %3567 = vmatprep.subr.bf16.mxu0 %v1367
    %3568 = vmatpush1.bf16.msra.mxu0 %v1366
    %3569 = vmatprep.subr.bf16.mxu0 %v1375
    %3570 = vmatpush1.bf16.msra.mxu0 %v1374
    %3571 = vmatprep.subr.bf16.mxu0 %v1383
    %3572 = vmatpush1.bf16.msra.mxu0 %v1382
    %3573 = vmatprep.subr.bf16.mxu0 %v1391
    %3574 = vmatpush1.bf16.msra.mxu0 %v1390
    %3575 = vmatprep.mubr.bf16.mxu0 %v3294
    %3576 = vmatmul.mubr.bf16.gmra.mrb[0].mxu0 %v3293
    %v3577 = vpop.f32.mrb[0].mxu0
    %v3578 = vadd.f32 0.0, %v3577
    %v3579 = vpop.f32.mrb[0].mxu0
    %v3580 = vadd.f32 0.0, %v3579
    %v3581 = vpop.f32.mrb[0].mxu0
    %v3582 = vpop.f32.mrb[0].mxu0
    %3583 = vdwg.mxu0
    %3584 = vmatprep.subr.bf16.mxu0 %v1399
    %3585 = vmatpush1.bf16.msra.mxu0 %v1398
    %3586 = vmatprep.subr.bf16.mxu0 %v1407
    %3587 = vmatpush1.bf16.msra.mxu0 %v1406
    %3588 = vmatprep.subr.bf16.mxu0 %v1415
    %3589 = vmatpush1.bf16.msra.mxu0 %v1414
    %3590 = vmatprep.subr.bf16.mxu0 %v1423
    %3591 = vmatpush1.bf16.msra.mxu0 %v1422
    %3592 = vmatprep.subr.bf16.mxu0 %v1431
    %3593 = vmatpush1.bf16.msra.mxu0 %v1430
    %3594 = vmatprep.subr.bf16.mxu0 %v1439
    %3595 = vmatpush1.bf16.msra.mxu0 %v1438
    %3596 = vmatprep.subr.bf16.mxu0 %v1447
    %3597 = vmatpush1.bf16.msra.mxu0 %v1446
    %3598 = vmatprep.subr.bf16.mxu0 %v1455
    %3599 = vmatpush1.bf16.msra.mxu0 %v1454
    %3600 = vmatprep.subr.bf16.mxu0 %v1463
    %3601 = vmatpush1.bf16.msra.mxu0 %v1462
    %3602 = vmatprep.subr.bf16.mxu0 %v1471
    %3603 = vmatpush1.bf16.msra.mxu0 %v1470
    %3604 = vmatprep.subr.bf16.mxu0 %v1479
    %3605 = vmatpush1.bf16.msra.mxu0 %v1478
    %3606 = vmatprep.subr.bf16.mxu0 %v1487
    %3607 = vmatpush1.bf16.msra.mxu0 %v1486
    %3608 = vmatprep.subr.bf16.mxu0 %v1495
    %3609 = vmatpush1.bf16.msra.mxu0 %v1494
    %3610 = vmatprep.subr.bf16.mxu0 %v1503
    %3611 = vmatpush1.bf16.msra.mxu0 %v1502
    %3612 = vmatprep.subr.bf16.mxu0 %v1511
    %3613 = vmatpush1.bf16.msra.mxu0 %v1510
    %3614 = vmatprep.subr.bf16.mxu0 %v1519
    %3615 = vmatpush1.bf16.msra.mxu0 %v1518
    %3616 = vmatprep.mubr.bf16.mxu0 %v3296
    %3617 = vmatmul.mubr.bf16.gmra.mrb[0].mxu0 %v3295
    %v3618 = vpop.f32.mrb[0].mxu0
    %v3619 = vadd.f32 %v3578, %v3618
    %v3620 = vpop.f32.mrb[0].mxu0
    %v3621 = vadd.f32 %v3580, %v3620
    %v3622 = vpop.f32.mrb[0].mxu0
    %v3623 = vpop.f32.mrb[0].mxu0
    %3624 = vdwg.mxu0
    %v3625 = vadd.f32 %v3281, %v3373
    %v3626 = vadd.f32 %v3282, %v3375
    %v3627 = vadd.f32 %v3283, %v3455
    %v3628 = vadd.f32 %v3284, %v3457
    %v3629 = vadd.f32 %v3285, %v3537
    %v3630 = vadd.f32 %v3286, %v3539
    %v3631 = vadd.f32 %v3287, %v3619
    %v3632 = vadd.f32 %v3288, %v3621
    %v3633 = vxor.u32 %v3625, 2147483648
    %v3634 = vxor.u32 %v3626, 2147483648
    %v3635 = vxor.u32 %v3627, 2147483648
    %v3636 = vxor.u32 %v3628, 2147483648
    %v3637 = vxor.u32 %v3629, 2147483648
    %v3638 = vxor.u32 %v3630, 2147483648
    %v3639 = vmul.f32 %v3633, 1.442695
    %v3640 = vpow.pop %v3639
    %v3641 = vmul.f32 %v3634, 1.442695
    %v3642 = vpow.pop %v3641
    %v3643 = vmul.f32 %v3635, 1.442695
    %v3644 = vpow.pop %v3643
    %v3645 = vmul.f32 %v3636, 1.442695
    %v3646 = vpow.pop %v3645
    %v3647 = vmul.f32 %v3637, 1.442695
    %v3648 = vpow.pop %v3647
    %v3649 = vmul.f32 %v3638, 1.442695
    %v3650 = vpow.pop %v3649
    %v3651 = vadd.f32 %v3640, 1.0
    %v3652 = vadd.f32 %v3642, 1.0
    %v3653 = vadd.f32 %v3644, 1.0
    %v3654 = vadd.f32 %v3646, 1.0
    %v3655 = vadd.f32 %v3648, 1.0
    %v3656 = vadd.f32 %v3650, 1.0
    %v3657 = vrcp.pop %v3651
    %v3658 = vmul.f32 1.0, %v3657
    %v3659 = vrcp.pop %v3652
    %v3660 = vmul.f32 1.0, %v3659
    %v3661 = vrcp.pop %v3653
    %v3662 = vmul.f32 1.0, %v3661
    %v3663 = vrcp.pop %v3654
    %v3664 = vmul.f32 1.0, %v3663
    %v3665 = vrcp.pop %v3655
    %v3666 = vmul.f32 1.0, %v3665
    %v3667 = vrcp.pop %v3656
    %v3668 = vmul.f32 1.0, %v3667
    %v3669 = vtanh.pop %v3631
    %v3670 = vtanh.pop %v3632
    %v3671 = vmul.f32 %v3662, %v3243
    %v3672 = vmul.f32 %v3664, %v3244
    %v3673 = vmul.f32 %v3658, %v3669
    %v3674 = vmul.f32 %v3660, %v3670
    %v3675 = vadd.f32 %v3671, %v3673
    %v3676 = vadd.f32 %v3672, %v3674
    %v3677 = vtanh.pop %v3675
    %v3678 = vtanh.pop %v3676
    %v3679 = vmul.f32 %v3666, %v3677
    %v3680 = vmul.f32 %v3668, %v3678
    %v3681 = vrot.slane %v939, 5
    %v3682 = vrot.slane %v941, 5
    %v3683 = vrot.slane %v980, 5
    %v3684 = vrot.slane %v982, 5
    %v3685 = vrot.slane %v1021, 5
    %v3686 = vrot.slane %v1023, 5
    %v3687 = vrot.slane %v1062, 5
    %v3688 = vrot.slane %v1064, 5
    %v3697 = vrot.slane %v1103, 1
    %v3698 = vrot.slane %v1105, 1
    %v3699 = vrot.slane %v1144, 1
    %v3700 = vrot.slane %v1146, 1
    %v3701 = vrot.slane %v1185, 1
    %v3702 = vrot.slane %v1187, 1
    %v3703 = vrot.slane %v1226, 1
    %v3704 = vrot.slane %v1228, 1
    %v3713 = vsel %vm1544, %v3681, %v3697
    %v3714 = vsel %vm1544, %v3682, %v3698
    %v3715 = vsel %vm1544, %v3683, %v3699
    %v3716 = vsel %vm1544, %v3684, %v3700
    %v3717 = vsel %vm1544, %v3685, %v3701
    %v3718 = vsel %vm1544, %v3686, %v3702
    %v3719 = vsel %vm1544, %v3687, %v3703
    %v3720 = vsel %vm1544, %v3688, %v3704
    %v3721 = vmul.f32 %v3679, %v1256
    %v3722 = vmul.f32 %v3680, %v1257
    %v3723 = vmul.f32 %v3679, %v1258
    %v3724 = vmul.f32 %v3680, %v1259
    %v3725 = vpack.c.bf16 %v3721, %v3721
    %v3726 = vpack.c.bf16 %v3722, %v3722
    %v3727 = vpack.c.bf16 %v3723, %v3723
    %v3728 = vpack.c.bf16 %v3724, %v3724
    %3729 = vmatprep.subr.bf16.mxu0 %v1265
    %3730 = vmatpush1.bf16.msra.mxu0 %v1264
    %3731 = vmatprep.subr.bf16.mxu0 %v1273
    %3732 = vmatpush1.bf16.msra.mxu0 %v1272
    %3733 = vmatprep.subr.bf16.mxu0 %v1281
    %3734 = vmatpush1.bf16.msra.mxu0 %v1280
    %3735 = vmatprep.subr.bf16.mxu0 %v1289
    %3736 = vmatpush1.bf16.msra.mxu0 %v1288
    %3737 = vmatprep.subr.bf16.mxu0 %v1297
    %3738 = vmatpush1.bf16.msra.mxu0 %v1296
    %3739 = vmatprep.subr.bf16.mxu0 %v1305
    %3740 = vmatpush1.bf16.msra.mxu0 %v1304
    %3741 = vmatprep.subr.bf16.mxu0 %v1313
    %3742 = vmatpush1.bf16.msra.mxu0 %v1312
    %3743 = vmatprep.subr.bf16.mxu0 %v1321
    %3744 = vmatpush1.bf16.msra.mxu0 %v1320
    %3745 = vmatprep.subr.bf16.mxu0 %v1329
    %3746 = vmatpush1.bf16.msra.mxu0 %v1328
    %3747 = vmatprep.subr.bf16.mxu0 %v1337
    %3748 = vmatpush1.bf16.msra.mxu0 %v1336
    %3749 = vmatprep.subr.bf16.mxu0 %v1345
    %3750 = vmatpush1.bf16.msra.mxu0 %v1344
    %3751 = vmatprep.subr.bf16.mxu0 %v1353
    %3752 = vmatpush1.bf16.msra.mxu0 %v1352
    %3753 = vmatprep.subr.bf16.mxu0 %v1361
    %3754 = vmatpush1.bf16.msra.mxu0 %v1360
    %3755 = vmatprep.subr.bf16.mxu0 %v1369
    %3756 = vmatpush1.bf16.msra.mxu0 %v1368
    %3757 = vmatprep.subr.bf16.mxu0 %v1377
    %3758 = vmatpush1.bf16.msra.mxu0 %v1376
    %3759 = vmatprep.subr.bf16.mxu0 %v1385
    %3760 = vmatpush1.bf16.msra.mxu0 %v1384
    %3761 = vmatprep.mubr.bf16.mxu0 %v3726
    %3762 = vmatmul.mubr.bf16.gmra.mrb[0].mxu0 %v3725
    %v3763 = vpop.f32.mrb[0].mxu0
    %v3764 = vadd.f32 0.0, %v3763
    %v3765 = vpop.f32.mrb[0].mxu0
    %v3766 = vadd.f32 0.0, %v3765
    %v3767 = vpop.f32.mrb[0].mxu0
    %v3768 = vpop.f32.mrb[0].mxu0
    %3769 = vdwg.mxu0
    %3770 = vmatprep.subr.bf16.mxu0 %v1393
    %3771 = vmatpush1.bf16.msra.mxu0 %v1392
    %3772 = vmatprep.subr.bf16.mxu0 %v1401
    %3773 = vmatpush1.bf16.msra.mxu0 %v1400
    %3774 = vmatprep.subr.bf16.mxu0 %v1409
    %3775 = vmatpush1.bf16.msra.mxu0 %v1408
    %3776 = vmatprep.subr.bf16.mxu0 %v1417
    %3777 = vmatpush1.bf16.msra.mxu0 %v1416
    %3778 = vmatprep.subr.bf16.mxu0 %v1425
    %3779 = vmatpush1.bf16.msra.mxu0 %v1424
    %3780 = vmatprep.subr.bf16.mxu0 %v1433
    %3781 = vmatpush1.bf16.msra.mxu0 %v1432
    %3782 = vmatprep.subr.bf16.mxu0 %v1441
    %3783 = vmatpush1.bf16.msra.mxu0 %v1440
    %3784 = vmatprep.subr.bf16.mxu0 %v1449
    %3785 = vmatpush1.bf16.msra.mxu0 %v1448
    %3786 = vmatprep.subr.bf16.mxu0 %v1457
    %3787 = vmatpush1.bf16.msra.mxu0 %v1456
    %3788 = vmatprep.subr.bf16.mxu0 %v1465
    %3789 = vmatpush1.bf16.msra.mxu0 %v1464
    %3790 = vmatprep.subr.bf16.mxu0 %v1473
    %3791 = vmatpush1.bf16.msra.mxu0 %v1472
    %3792 = vmatprep.subr.bf16.mxu0 %v1481
    %3793 = vmatpush1.bf16.msra.mxu0 %v1480
    %3794 = vmatprep.subr.bf16.mxu0 %v1489
    %3795 = vmatpush1.bf16.msra.mxu0 %v1488
    %3796 = vmatprep.subr.bf16.mxu0 %v1497
    %3797 = vmatpush1.bf16.msra.mxu0 %v1496
    %3798 = vmatprep.subr.bf16.mxu0 %v1505
    %3799 = vmatpush1.bf16.msra.mxu0 %v1504
    %3800 = vmatprep.subr.bf16.mxu0 %v1513
    %3801 = vmatpush1.bf16.msra.mxu0 %v1512
    %3802 = vmatprep.mubr.bf16.mxu0 %v3728
    %3803 = vmatmul.mubr.bf16.gmra.mrb[0].mxu0 %v3727
    %v3804 = vpop.f32.mrb[0].mxu0
    %v3805 = vadd.f32 %v3764, %v3804
    %v3806 = vpop.f32.mrb[0].mxu0
    %v3807 = vadd.f32 %v3766, %v3806
    %v3808 = vpop.f32.mrb[0].mxu0
    %v3809 = vpop.f32.mrb[0].mxu0
    %3810 = vdwg.mxu0
    %3811 = vmatprep.subr.bf16.mxu0 %v1267
    %3812 = vmatpush1.bf16.msra.mxu0 %v1266
    %3813 = vmatprep.subr.bf16.mxu0 %v1275
    %3814 = vmatpush1.bf16.msra.mxu0 %v1274
    %3815 = vmatprep.subr.bf16.mxu0 %v1283
    %3816 = vmatpush1.bf16.msra.mxu0 %v1282
    %3817 = vmatprep.subr.bf16.mxu0 %v1291
    %3818 = vmatpush1.bf16.msra.mxu0 %v1290
    %3819 = vmatprep.subr.bf16.mxu0 %v1299
    %3820 = vmatpush1.bf16.msra.mxu0 %v1298
    %3821 = vmatprep.subr.bf16.mxu0 %v1307
    %3822 = vmatpush1.bf16.msra.mxu0 %v1306
    %3823 = vmatprep.subr.bf16.mxu0 %v1315
    %3824 = vmatpush1.bf16.msra.mxu0 %v1314
    %3825 = vmatprep.subr.bf16.mxu0 %v1323
    %3826 = vmatpush1.bf16.msra.mxu0 %v1322
    %3827 = vmatprep.subr.bf16.mxu0 %v1331
    %3828 = vmatpush1.bf16.msra.mxu0 %v1330
    %3829 = vmatprep.subr.bf16.mxu0 %v1339
    %3830 = vmatpush1.bf16.msra.mxu0 %v1338
    %3831 = vmatprep.subr.bf16.mxu0 %v1347
    %3832 = vmatpush1.bf16.msra.mxu0 %v1346
    %3833 = vmatprep.subr.bf16.mxu0 %v1355
    %3834 = vmatpush1.bf16.msra.mxu0 %v1354
    %3835 = vmatprep.subr.bf16.mxu0 %v1363
    %3836 = vmatpush1.bf16.msra.mxu0 %v1362
    %3837 = vmatprep.subr.bf16.mxu0 %v1371
    %3838 = vmatpush1.bf16.msra.mxu0 %v1370
    %3839 = vmatprep.subr.bf16.mxu0 %v1379
    %3840 = vmatpush1.bf16.msra.mxu0 %v1378
    %3841 = vmatprep.subr.bf16.mxu0 %v1387
    %3842 = vmatpush1.bf16.msra.mxu0 %v1386
    %3843 = vmatprep.mubr.bf16.mxu0 %v3726
    %3844 = vmatmul.mubr.bf16.gmra.mrb[0].mxu0 %v3725
    %v3845 = vpop.f32.mrb[0].mxu0
    %v3846 = vadd.f32 0.0, %v3845
    %v3847 = vpop.f32.mrb[0].mxu0
    %v3848 = vadd.f32 0.0, %v3847
    %v3849 = vpop.f32.mrb[0].mxu0
    %v3850 = vpop.f32.mrb[0].mxu0
    %3851 = vdwg.mxu0
    %3852 = vmatprep.subr.bf16.mxu0 %v1395
    %3853 = vmatpush1.bf16.msra.mxu0 %v1394
    %3854 = vmatprep.subr.bf16.mxu0 %v1403
    %3855 = vmatpush1.bf16.msra.mxu0 %v1402
    %3856 = vmatprep.subr.bf16.mxu0 %v1411
    %3857 = vmatpush1.bf16.msra.mxu0 %v1410
    %3858 = vmatprep.subr.bf16.mxu0 %v1419
    %3859 = vmatpush1.bf16.msra.mxu0 %v1418
    %3860 = vmatprep.subr.bf16.mxu0 %v1427
    %3861 = vmatpush1.bf16.msra.mxu0 %v1426
    %3862 = vmatprep.subr.bf16.mxu0 %v1435
    %3863 = vmatpush1.bf16.msra.mxu0 %v1434
    %3864 = vmatprep.subr.bf16.mxu0 %v1443
    %3865 = vmatpush1.bf16.msra.mxu0 %v1442
    %3866 = vmatprep.subr.bf16.mxu0 %v1451
    %3867 = vmatpush1.bf16.msra.mxu0 %v1450
    %3868 = vmatprep.subr.bf16.mxu0 %v1459
    %3869 = vmatpush1.bf16.msra.mxu0 %v1458
    %3870 = vmatprep.subr.bf16.mxu0 %v1467
    %3871 = vmatpush1.bf16.msra.mxu0 %v1466
    %3872 = vmatprep.subr.bf16.mxu0 %v1475
    %3873 = vmatpush1.bf16.msra.mxu0 %v1474
    %3874 = vmatprep.subr.bf16.mxu0 %v1483
    %3875 = vmatpush1.bf16.msra.mxu0 %v1482
    %3876 = vmatprep.subr.bf16.mxu0 %v1491
    %3877 = vmatpush1.bf16.msra.mxu0 %v1490
    %3878 = vmatprep.subr.bf16.mxu0 %v1499
    %3879 = vmatpush1.bf16.msra.mxu0 %v1498
    %3880 = vmatprep.subr.bf16.mxu0 %v1507
    %3881 = vmatpush1.bf16.msra.mxu0 %v1506
    %3882 = vmatprep.subr.bf16.mxu0 %v1515
    %3883 = vmatpush1.bf16.msra.mxu0 %v1514
    %3884 = vmatprep.mubr.bf16.mxu0 %v3728
    %3885 = vmatmul.mubr.bf16.gmra.mrb[0].mxu0 %v3727
    %v3886 = vpop.f32.mrb[0].mxu0
    %v3887 = vadd.f32 %v3846, %v3886
    %v3888 = vpop.f32.mrb[0].mxu0
    %v3889 = vadd.f32 %v3848, %v3888
    %v3890 = vpop.f32.mrb[0].mxu0
    %v3891 = vpop.f32.mrb[0].mxu0
    %3892 = vdwg.mxu0
    %3893 = vmatprep.subr.bf16.mxu0 %v1269
    %3894 = vmatpush1.bf16.msra.mxu0 %v1268
    %3895 = vmatprep.subr.bf16.mxu0 %v1277
    %3896 = vmatpush1.bf16.msra.mxu0 %v1276
    %3897 = vmatprep.subr.bf16.mxu0 %v1285
    %3898 = vmatpush1.bf16.msra.mxu0 %v1284
    %3899 = vmatprep.subr.bf16.mxu0 %v1293
    %3900 = vmatpush1.bf16.msra.mxu0 %v1292
    %3901 = vmatprep.subr.bf16.mxu0 %v1301
    %3902 = vmatpush1.bf16.msra.mxu0 %v1300
    %3903 = vmatprep.subr.bf16.mxu0 %v1309
    %3904 = vmatpush1.bf16.msra.mxu0 %v1308
    %3905 = vmatprep.subr.bf16.mxu0 %v1317
    %3906 = vmatpush1.bf16.msra.mxu0 %v1316
    %3907 = vmatprep.subr.bf16.mxu0 %v1325
    %3908 = vmatpush1.bf16.msra.mxu0 %v1324
    %3909 = vmatprep.subr.bf16.mxu0 %v1333
    %3910 = vmatpush1.bf16.msra.mxu0 %v1332
    %3911 = vmatprep.subr.bf16.mxu0 %v1341
    %3912 = vmatpush1.bf16.msra.mxu0 %v1340
    %3913 = vmatprep.subr.bf16.mxu0 %v1349
    %3914 = vmatpush1.bf16.msra.mxu0 %v1348
    %3915 = vmatprep.subr.bf16.mxu0 %v1357
    %3916 = vmatpush1.bf16.msra.mxu0 %v1356
    %3917 = vmatprep.subr.bf16.mxu0 %v1365
    %3918 = vmatpush1.bf16.msra.mxu0 %v1364
    %3919 = vmatprep.subr.bf16.mxu0 %v1373
    %3920 = vmatpush1.bf16.msra.mxu0 %v1372
    %3921 = vmatprep.subr.bf16.mxu0 %v1381
    %3922 = vmatpush1.bf16.msra.mxu0 %v1380
    %3923 = vmatprep.subr.bf16.mxu0 %v1389
    %3924 = vmatpush1.bf16.msra.mxu0 %v1388
    %3925 = vmatprep.mubr.bf16.mxu0 %v3726
    %3926 = vmatmul.mubr.bf16.gmra.mrb[0].mxu0 %v3725
    %v3927 = vpop.f32.mrb[0].mxu0
    %v3928 = vadd.f32 0.0, %v3927
    %v3929 = vpop.f32.mrb[0].mxu0
    %v3930 = vadd.f32 0.0, %v3929
    %v3931 = vpop.f32.mrb[0].mxu0
    %v3932 = vpop.f32.mrb[0].mxu0
    %3933 = vdwg.mxu0
    %3934 = vmatprep.subr.bf16.mxu0 %v1397
    %3935 = vmatpush1.bf16.msra.mxu0 %v1396
    %3936 = vmatprep.subr.bf16.mxu0 %v1405
    %3937 = vmatpush1.bf16.msra.mxu0 %v1404
    %3938 = vmatprep.subr.bf16.mxu0 %v1413
    %3939 = vmatpush1.bf16.msra.mxu0 %v1412
    %3940 = vmatprep.subr.bf16.mxu0 %v1421
    %3941 = vmatpush1.bf16.msra.mxu0 %v1420
    %3942 = vmatprep.subr.bf16.mxu0 %v1429
    %3943 = vmatpush1.bf16.msra.mxu0 %v1428
    %3944 = vmatprep.subr.bf16.mxu0 %v1437
    %3945 = vmatpush1.bf16.msra.mxu0 %v1436
    %3946 = vmatprep.subr.bf16.mxu0 %v1445
    %3947 = vmatpush1.bf16.msra.mxu0 %v1444
    %3948 = vmatprep.subr.bf16.mxu0 %v1453
    %3949 = vmatpush1.bf16.msra.mxu0 %v1452
    %3950 = vmatprep.subr.bf16.mxu0 %v1461
    %3951 = vmatpush1.bf16.msra.mxu0 %v1460
    %3952 = vmatprep.subr.bf16.mxu0 %v1469
    %3953 = vmatpush1.bf16.msra.mxu0 %v1468
    %3954 = vmatprep.subr.bf16.mxu0 %v1477
    %3955 = vmatpush1.bf16.msra.mxu0 %v1476
    %3956 = vmatprep.subr.bf16.mxu0 %v1485
    %3957 = vmatpush1.bf16.msra.mxu0 %v1484
    %3958 = vmatprep.subr.bf16.mxu0 %v1493
    %3959 = vmatpush1.bf16.msra.mxu0 %v1492
    %3960 = vmatprep.subr.bf16.mxu0 %v1501
    %3961 = vmatpush1.bf16.msra.mxu0 %v1500
    %3962 = vmatprep.subr.bf16.mxu0 %v1509
    %3963 = vmatpush1.bf16.msra.mxu0 %v1508
    %3964 = vmatprep.subr.bf16.mxu0 %v1517
    %3965 = vmatpush1.bf16.msra.mxu0 %v1516
    %3966 = vmatprep.mubr.bf16.mxu0 %v3728
    %3967 = vmatmul.mubr.bf16.gmra.mrb[0].mxu0 %v3727
    %v3968 = vpop.f32.mrb[0].mxu0
    %v3969 = vadd.f32 %v3928, %v3968
    %v3970 = vpop.f32.mrb[0].mxu0
    %v3971 = vadd.f32 %v3930, %v3970
    %v3972 = vpop.f32.mrb[0].mxu0
    %v3973 = vpop.f32.mrb[0].mxu0
    %3974 = vdwg.mxu0
    %3975 = vmatprep.subr.bf16.mxu0 %v1271
    %3976 = vmatpush1.bf16.msra.mxu0 %v1270
    %3977 = vmatprep.subr.bf16.mxu0 %v1279
    %3978 = vmatpush1.bf16.msra.mxu0 %v1278
    %3979 = vmatprep.subr.bf16.mxu0 %v1287
    %3980 = vmatpush1.bf16.msra.mxu0 %v1286
    %3981 = vmatprep.subr.bf16.mxu0 %v1295
    %3982 = vmatpush1.bf16.msra.mxu0 %v1294
    %3983 = vmatprep.subr.bf16.mxu0 %v1303
    %3984 = vmatpush1.bf16.msra.mxu0 %v1302
    %3985 = vmatprep.subr.bf16.mxu0 %v1311
    %3986 = vmatpush1.bf16.msra.mxu0 %v1310
    %3987 = vmatprep.subr.bf16.mxu0 %v1319
    %3988 = vmatpush1.bf16.msra.mxu0 %v1318
    %3989 = vmatprep.subr.bf16.mxu0 %v1327
    %3990 = vmatpush1.bf16.msra.mxu0 %v1326
    %3991 = vmatprep.subr.bf16.mxu0 %v1335
    %3992 = vmatpush1.bf16.msra.mxu0 %v1334
    %3993 = vmatprep.subr.bf16.mxu0 %v1343
    %3994 = vmatpush1.bf16.msra.mxu0 %v1342
    %3995 = vmatprep.subr.bf16.mxu0 %v1351
    %3996 = vmatpush1.bf16.msra.mxu0 %v1350
    %3997 = vmatprep.subr.bf16.mxu0 %v1359
    %3998 = vmatpush1.bf16.msra.mxu0 %v1358
    %3999 = vmatprep.subr.bf16.mxu0 %v1367
    %4000 = vmatpush1.bf16.msra.mxu0 %v1366
    %4001 = vmatprep.subr.bf16.mxu0 %v1375
    %4002 = vmatpush1.bf16.msra.mxu0 %v1374
    %4003 = vmatprep.subr.bf16.mxu0 %v1383
    %4004 = vmatpush1.bf16.msra.mxu0 %v1382
    %4005 = vmatprep.subr.bf16.mxu0 %v1391
    %4006 = vmatpush1.bf16.msra.mxu0 %v1390
    %4007 = vmatprep.mubr.bf16.mxu0 %v3726
    %4008 = vmatmul.mubr.bf16.gmra.mrb[0].mxu0 %v3725
    %v4009 = vpop.f32.mrb[0].mxu0
    %v4010 = vadd.f32 0.0, %v4009
    %v4011 = vpop.f32.mrb[0].mxu0
    %v4012 = vadd.f32 0.0, %v4011
    %v4013 = vpop.f32.mrb[0].mxu0
    %v4014 = vpop.f32.mrb[0].mxu0
    %4015 = vdwg.mxu0
    %4016 = vmatprep.subr.bf16.mxu0 %v1399
    %4017 = vmatpush1.bf16.msra.mxu0 %v1398
    %4018 = vmatprep.subr.bf16.mxu0 %v1407
    %4019 = vmatpush1.bf16.msra.mxu0 %v1406
    %4020 = vmatprep.subr.bf16.mxu0 %v1415
    %4021 = vmatpush1.bf16.msra.mxu0 %v1414
    %4022 = vmatprep.subr.bf16.mxu0 %v1423
    %4023 = vmatpush1.bf16.msra.mxu0 %v1422
    %4024 = vmatprep.subr.bf16.mxu0 %v1431
    %4025 = vmatpush1.bf16.msra.mxu0 %v1430
    %4026 = vmatprep.subr.bf16.mxu0 %v1439
    %4027 = vmatpush1.bf16.msra.mxu0 %v1438
    %4028 = vmatprep.subr.bf16.mxu0 %v1447
    %4029 = vmatpush1.bf16.msra.mxu0 %v1446
    %4030 = vmatprep.subr.bf16.mxu0 %v1455
    %4031 = vmatpush1.bf16.msra.mxu0 %v1454
    %4032 = vmatprep.subr.bf16.mxu0 %v1463
    %4033 = vmatpush1.bf16.msra.mxu0 %v1462
    %4034 = vmatprep.subr.bf16.mxu0 %v1471
    %4035 = vmatpush1.bf16.msra.mxu0 %v1470
    %4036 = vmatprep.subr.bf16.mxu0 %v1479
    %4037 = vmatpush1.bf16.msra.mxu0 %v1478
    %4038 = vmatprep.subr.bf16.mxu0 %v1487
    %4039 = vmatpush1.bf16.msra.mxu0 %v1486
    %4040 = vmatprep.subr.bf16.mxu0 %v1495
    %4041 = vmatpush1.bf16.msra.mxu0 %v1494
    %4042 = vmatprep.subr.bf16.mxu0 %v1503
    %4043 = vmatpush1.bf16.msra.mxu0 %v1502
    %4044 = vmatprep.subr.bf16.mxu0 %v1511
    %4045 = vmatpush1.bf16.msra.mxu0 %v1510
    %4046 = vmatprep.subr.bf16.mxu0 %v1519
    %4047 = vmatpush1.bf16.msra.mxu0 %v1518
    %4048 = vmatprep.mubr.bf16.mxu0 %v3728
    %4049 = vmatmul.mubr.bf16.gmra.mrb[0].mxu0 %v3727
    %v4050 = vpop.f32.mrb[0].mxu0
    %v4051 = vadd.f32 %v4010, %v4050
    %v4052 = vpop.f32.mrb[0].mxu0
    %v4053 = vadd.f32 %v4012, %v4052
    %v4054 = vpop.f32.mrb[0].mxu0
    %v4055 = vpop.f32.mrb[0].mxu0
    %4056 = vdwg.mxu0
    %v4057 = vadd.f32 %v3713, %v3805
    %v4058 = vadd.f32 %v3714, %v3807
    %v4059 = vadd.f32 %v3715, %v3887
    %v4060 = vadd.f32 %v3716, %v3889
    %v4061 = vadd.f32 %v3717, %v3969
    %v4062 = vadd.f32 %v3718, %v3971
    %v4063 = vadd.f32 %v3719, %v4051
    %v4064 = vadd.f32 %v3720, %v4053
    %v4065 = vxor.u32 %v4057, 2147483648
    %v4066 = vxor.u32 %v4058, 2147483648
    %v4067 = vxor.u32 %v4059, 2147483648
    %v4068 = vxor.u32 %v4060, 2147483648
    %v4069 = vxor.u32 %v4061, 2147483648
    %v4070 = vxor.u32 %v4062, 2147483648
    %v4071 = vmul.f32 %v4065, 1.442695
    %v4072 = vpow.pop %v4071
    %v4073 = vmul.f32 %v4066, 1.442695
    %v4074 = vpow.pop %v4073
    %v4075 = vmul.f32 %v4067, 1.442695
    %v4076 = vpow.pop %v4075
    %v4077 = vmul.f32 %v4068, 1.442695
    %v4078 = vpow.pop %v4077
    %v4079 = vmul.f32 %v4069, 1.442695
    %v4080 = vpow.pop %v4079
    %v4081 = vmul.f32 %v4070, 1.442695
    %v4082 = vpow.pop %v4081
    %v4083 = vadd.f32 %v4072, 1.0
    %v4084 = vadd.f32 %v4074, 1.0
    %v4085 = vadd.f32 %v4076, 1.0
    %v4086 = vadd.f32 %v4078, 1.0
    %v4087 = vadd.f32 %v4080, 1.0
    %v4088 = vadd.f32 %v4082, 1.0
    %v4089 = vrcp.pop %v4083
    %v4090 = vmul.f32 1.0, %v4089
    %v4091 = vrcp.pop %v4084
    %v4092 = vmul.f32 1.0, %v4091
    %v4093 = vrcp.pop %v4085
    %v4094 = vmul.f32 1.0, %v4093
    %v4095 = vrcp.pop %v4086
    %v4096 = vmul.f32 1.0, %v4095
    %v4097 = vrcp.pop %v4087
    %v4098 = vmul.f32 1.0, %v4097
    %v4099 = vrcp.pop %v4088
    %v4100 = vmul.f32 1.0, %v4099
    %v4101 = vtanh.pop %v4063
    %v4102 = vtanh.pop %v4064
    %v4103 = vmul.f32 %v4094, %v3675
    %v4104 = vmul.f32 %v4096, %v3676
    %v4105 = vmul.f32 %v4090, %v4101
    %v4106 = vmul.f32 %v4092, %v4102
    %v4107 = vadd.f32 %v4103, %v4105
    %v4108 = vadd.f32 %v4104, %v4106
    %v4109 = vtanh.pop %v4107
    %v4110 = vtanh.pop %v4108
    %v4111 = vmul.f32 %v4098, %v4109
    %v4112 = vmul.f32 %v4100, %v4110
    %v4113 = vrot.slane %v939, 6
    %v4114 = vrot.slane %v941, 6
    %v4115 = vrot.slane %v980, 6
    %v4116 = vrot.slane %v982, 6
    %v4117 = vrot.slane %v1021, 6
    %v4118 = vrot.slane %v1023, 6
    %v4119 = vrot.slane %v1062, 6
    %v4120 = vrot.slane %v1064, 6
    %v4129 = vsel %vm1544, %v4113, %v1103
    %v4130 = vsel %vm1544, %v4114, %v1105
    %v4131 = vsel %vm1544, %v4115, %v1144
    %v4132 = vsel %vm1544, %v4116, %v1146
    %v4133 = vsel %vm1544, %v4117, %v1185
    %v4134 = vsel %vm1544, %v4118, %v1187
    %v4135 = vsel %vm1544, %v4119, %v1226
    %v4136 = vsel %vm1544, %v4120, %v1228
    %v4137 = vmul.f32 %v4111, %v1256
    %v4138 = vmul.f32 %v4112, %v1257
    %v4139 = vmul.f32 %v4111, %v1258
    %v4140 = vmul.f32 %v4112, %v1259
    %v4141 = vpack.c.bf16 %v4137, %v4137
    %v4142 = vpack.c.bf16 %v4138, %v4138
    %v4143 = vpack.c.bf16 %v4139, %v4139
    %v4144 = vpack.c.bf16 %v4140, %v4140
    %4145 = vmatprep.subr.bf16.mxu0 %v1265
    %4146 = vmatpush1.bf16.msra.mxu0 %v1264
    %4147 = vmatprep.subr.bf16.mxu0 %v1273
    %4148 = vmatpush1.bf16.msra.mxu0 %v1272
    %4149 = vmatprep.subr.bf16.mxu0 %v1281
    %4150 = vmatpush1.bf16.msra.mxu0 %v1280
    %4151 = vmatprep.subr.bf16.mxu0 %v1289
    %4152 = vmatpush1.bf16.msra.mxu0 %v1288
    %4153 = vmatprep.subr.bf16.mxu0 %v1297
    %4154 = vmatpush1.bf16.msra.mxu0 %v1296
    %4155 = vmatprep.subr.bf16.mxu0 %v1305
    %4156 = vmatpush1.bf16.msra.mxu0 %v1304
    %4157 = vmatprep.subr.bf16.mxu0 %v1313
    %4158 = vmatpush1.bf16.msra.mxu0 %v1312
    %4159 = vmatprep.subr.bf16.mxu0 %v1321
    %4160 = vmatpush1.bf16.msra.mxu0 %v1320
    %4161 = vmatprep.subr.bf16.mxu0 %v1329
    %4162 = vmatpush1.bf16.msra.mxu0 %v1328
    %4163 = vmatprep.subr.bf16.mxu0 %v1337
    %4164 = vmatpush1.bf16.msra.mxu0 %v1336
    %4165 = vmatprep.subr.bf16.mxu0 %v1345
    %4166 = vmatpush1.bf16.msra.mxu0 %v1344
    %4167 = vmatprep.subr.bf16.mxu0 %v1353
    %4168 = vmatpush1.bf16.msra.mxu0 %v1352
    %4169 = vmatprep.subr.bf16.mxu0 %v1361
    %4170 = vmatpush1.bf16.msra.mxu0 %v1360
    %4171 = vmatprep.subr.bf16.mxu0 %v1369
    %4172 = vmatpush1.bf16.msra.mxu0 %v1368
    %4173 = vmatprep.subr.bf16.mxu0 %v1377
    %4174 = vmatpush1.bf16.msra.mxu0 %v1376
    %4175 = vmatprep.subr.bf16.mxu0 %v1385
    %4176 = vmatpush1.bf16.msra.mxu0 %v1384
    %4177 = vmatprep.mubr.bf16.mxu0 %v4142
    %4178 = vmatmul.mubr.bf16.gmra.mrb[0].mxu0 %v4141
    %v4179 = vpop.f32.mrb[0].mxu0
    %v4180 = vadd.f32 0.0, %v4179
    %v4181 = vpop.f32.mrb[0].mxu0
    %v4182 = vadd.f32 0.0, %v4181
    %v4183 = vpop.f32.mrb[0].mxu0
    %v4184 = vpop.f32.mrb[0].mxu0
    %4185 = vdwg.mxu0
    %4186 = vmatprep.subr.bf16.mxu0 %v1393
    %4187 = vmatpush1.bf16.msra.mxu0 %v1392
    %4188 = vmatprep.subr.bf16.mxu0 %v1401
    %4189 = vmatpush1.bf16.msra.mxu0 %v1400
    %4190 = vmatprep.subr.bf16.mxu0 %v1409
    %4191 = vmatpush1.bf16.msra.mxu0 %v1408
    %4192 = vmatprep.subr.bf16.mxu0 %v1417
    %4193 = vmatpush1.bf16.msra.mxu0 %v1416
    %4194 = vmatprep.subr.bf16.mxu0 %v1425
    %4195 = vmatpush1.bf16.msra.mxu0 %v1424
    %4196 = vmatprep.subr.bf16.mxu0 %v1433
    %4197 = vmatpush1.bf16.msra.mxu0 %v1432
    %4198 = vmatprep.subr.bf16.mxu0 %v1441
    %4199 = vmatpush1.bf16.msra.mxu0 %v1440
    %4200 = vmatprep.subr.bf16.mxu0 %v1449
    %4201 = vmatpush1.bf16.msra.mxu0 %v1448
    %4202 = vmatprep.subr.bf16.mxu0 %v1457
    %4203 = vmatpush1.bf16.msra.mxu0 %v1456
    %4204 = vmatprep.subr.bf16.mxu0 %v1465
    %4205 = vmatpush1.bf16.msra.mxu0 %v1464
    %4206 = vmatprep.subr.bf16.mxu0 %v1473
    %4207 = vmatpush1.bf16.msra.mxu0 %v1472
    %4208 = vmatprep.subr.bf16.mxu0 %v1481
    %4209 = vmatpush1.bf16.msra.mxu0 %v1480
    %4210 = vmatprep.subr.bf16.mxu0 %v1489
    %4211 = vmatpush1.bf16.msra.mxu0 %v1488
    %4212 = vmatprep.subr.bf16.mxu0 %v1497
    %4213 = vmatpush1.bf16.msra.mxu0 %v1496
    %4214 = vmatprep.subr.bf16.mxu0 %v1505
    %4215 = vmatpush1.bf16.msra.mxu0 %v1504
    %4216 = vmatprep.subr.bf16.mxu0 %v1513
    %4217 = vmatpush1.bf16.msra.mxu0 %v1512
    %4218 = vmatprep.mubr.bf16.mxu0 %v4144
    %4219 = vmatmul.mubr.bf16.gmra.mrb[0].mxu0 %v4143
    %v4220 = vpop.f32.mrb[0].mxu0
    %v4221 = vadd.f32 %v4180, %v4220
    %v4222 = vpop.f32.mrb[0].mxu0
    %v4223 = vadd.f32 %v4182, %v4222
    %v4224 = vpop.f32.mrb[0].mxu0
    %v4225 = vpop.f32.mrb[0].mxu0
    %4226 = vdwg.mxu0
    %4227 = vmatprep.subr.bf16.mxu0 %v1267
    %4228 = vmatpush1.bf16.msra.mxu0 %v1266
    %4229 = vmatprep.subr.bf16.mxu0 %v1275
    %4230 = vmatpush1.bf16.msra.mxu0 %v1274
    %4231 = vmatprep.subr.bf16.mxu0 %v1283
    %4232 = vmatpush1.bf16.msra.mxu0 %v1282
    %4233 = vmatprep.subr.bf16.mxu0 %v1291
    %4234 = vmatpush1.bf16.msra.mxu0 %v1290
    %4235 = vmatprep.subr.bf16.mxu0 %v1299
    %4236 = vmatpush1.bf16.msra.mxu0 %v1298
    %4237 = vmatprep.subr.bf16.mxu0 %v1307
    %4238 = vmatpush1.bf16.msra.mxu0 %v1306
    %4239 = vmatprep.subr.bf16.mxu0 %v1315
    %4240 = vmatpush1.bf16.msra.mxu0 %v1314
    %4241 = vmatprep.subr.bf16.mxu0 %v1323
    %4242 = vmatpush1.bf16.msra.mxu0 %v1322
    %4243 = vmatprep.subr.bf16.mxu0 %v1331
    %4244 = vmatpush1.bf16.msra.mxu0 %v1330
    %4245 = vmatprep.subr.bf16.mxu0 %v1339
    %4246 = vmatpush1.bf16.msra.mxu0 %v1338
    %4247 = vmatprep.subr.bf16.mxu0 %v1347
    %4248 = vmatpush1.bf16.msra.mxu0 %v1346
    %4249 = vmatprep.subr.bf16.mxu0 %v1355
    %4250 = vmatpush1.bf16.msra.mxu0 %v1354
    %4251 = vmatprep.subr.bf16.mxu0 %v1363
    %4252 = vmatpush1.bf16.msra.mxu0 %v1362
    %4253 = vmatprep.subr.bf16.mxu0 %v1371
    %4254 = vmatpush1.bf16.msra.mxu0 %v1370
    %4255 = vmatprep.subr.bf16.mxu0 %v1379
    %4256 = vmatpush1.bf16.msra.mxu0 %v1378
    %4257 = vmatprep.subr.bf16.mxu0 %v1387
    %4258 = vmatpush1.bf16.msra.mxu0 %v1386
    %4259 = vmatprep.mubr.bf16.mxu0 %v4142
    %4260 = vmatmul.mubr.bf16.gmra.mrb[0].mxu0 %v4141
    %v4261 = vpop.f32.mrb[0].mxu0
    %v4262 = vadd.f32 0.0, %v4261
    %v4263 = vpop.f32.mrb[0].mxu0
    %v4264 = vadd.f32 0.0, %v4263
    %v4265 = vpop.f32.mrb[0].mxu0
    %v4266 = vpop.f32.mrb[0].mxu0
    %4267 = vdwg.mxu0
    %4268 = vmatprep.subr.bf16.mxu0 %v1395
    %4269 = vmatpush1.bf16.msra.mxu0 %v1394
    %4270 = vmatprep.subr.bf16.mxu0 %v1403
    %4271 = vmatpush1.bf16.msra.mxu0 %v1402
    %4272 = vmatprep.subr.bf16.mxu0 %v1411
    %4273 = vmatpush1.bf16.msra.mxu0 %v1410
    %4274 = vmatprep.subr.bf16.mxu0 %v1419
    %4275 = vmatpush1.bf16.msra.mxu0 %v1418
    %4276 = vmatprep.subr.bf16.mxu0 %v1427
    %4277 = vmatpush1.bf16.msra.mxu0 %v1426
    %4278 = vmatprep.subr.bf16.mxu0 %v1435
    %4279 = vmatpush1.bf16.msra.mxu0 %v1434
    %4280 = vmatprep.subr.bf16.mxu0 %v1443
    %4281 = vmatpush1.bf16.msra.mxu0 %v1442
    %4282 = vmatprep.subr.bf16.mxu0 %v1451
    %4283 = vmatpush1.bf16.msra.mxu0 %v1450
    %4284 = vmatprep.subr.bf16.mxu0 %v1459
    %4285 = vmatpush1.bf16.msra.mxu0 %v1458
    %4286 = vmatprep.subr.bf16.mxu0 %v1467
    %4287 = vmatpush1.bf16.msra.mxu0 %v1466
    %4288 = vmatprep.subr.bf16.mxu0 %v1475
    %4289 = vmatpush1.bf16.msra.mxu0 %v1474
    %4290 = vmatprep.subr.bf16.mxu0 %v1483
    %4291 = vmatpush1.bf16.msra.mxu0 %v1482
    %4292 = vmatprep.subr.bf16.mxu0 %v1491
    %4293 = vmatpush1.bf16.msra.mxu0 %v1490
    %4294 = vmatprep.subr.bf16.mxu0 %v1499
    %4295 = vmatpush1.bf16.msra.mxu0 %v1498
    %4296 = vmatprep.subr.bf16.mxu0 %v1507
    %4297 = vmatpush1.bf16.msra.mxu0 %v1506
    %4298 = vmatprep.subr.bf16.mxu0 %v1515
    %4299 = vmatpush1.bf16.msra.mxu0 %v1514
    %4300 = vmatprep.mubr.bf16.mxu0 %v4144
    %4301 = vmatmul.mubr.bf16.gmra.mrb[0].mxu0 %v4143
    %v4302 = vpop.f32.mrb[0].mxu0
    %v4303 = vadd.f32 %v4262, %v4302
    %v4304 = vpop.f32.mrb[0].mxu0
    %v4305 = vadd.f32 %v4264, %v4304
    %v4306 = vpop.f32.mrb[0].mxu0
    %v4307 = vpop.f32.mrb[0].mxu0
    %4308 = vdwg.mxu0
    %4309 = vmatprep.subr.bf16.mxu0 %v1269
    %4310 = vmatpush1.bf16.msra.mxu0 %v1268
    %4311 = vmatprep.subr.bf16.mxu0 %v1277
    %4312 = vmatpush1.bf16.msra.mxu0 %v1276
    %4313 = vmatprep.subr.bf16.mxu0 %v1285
    %4314 = vmatpush1.bf16.msra.mxu0 %v1284
    %4315 = vmatprep.subr.bf16.mxu0 %v1293
    %4316 = vmatpush1.bf16.msra.mxu0 %v1292
    %4317 = vmatprep.subr.bf16.mxu0 %v1301
    %4318 = vmatpush1.bf16.msra.mxu0 %v1300
    %4319 = vmatprep.subr.bf16.mxu0 %v1309
    %4320 = vmatpush1.bf16.msra.mxu0 %v1308
    %4321 = vmatprep.subr.bf16.mxu0 %v1317
    %4322 = vmatpush1.bf16.msra.mxu0 %v1316
    %4323 = vmatprep.subr.bf16.mxu0 %v1325
    %4324 = vmatpush1.bf16.msra.mxu0 %v1324
    %4325 = vmatprep.subr.bf16.mxu0 %v1333
    %4326 = vmatpush1.bf16.msra.mxu0 %v1332
    %4327 = vmatprep.subr.bf16.mxu0 %v1341
    %4328 = vmatpush1.bf16.msra.mxu0 %v1340
    %4329 = vmatprep.subr.bf16.mxu0 %v1349
    %4330 = vmatpush1.bf16.msra.mxu0 %v1348
    %4331 = vmatprep.subr.bf16.mxu0 %v1357
    %4332 = vmatpush1.bf16.msra.mxu0 %v1356
    %4333 = vmatprep.subr.bf16.mxu0 %v1365
    %4334 = vmatpush1.bf16.msra.mxu0 %v1364
    %4335 = vmatprep.subr.bf16.mxu0 %v1373
    %4336 = vmatpush1.bf16.msra.mxu0 %v1372
    %4337 = vmatprep.subr.bf16.mxu0 %v1381
    %4338 = vmatpush1.bf16.msra.mxu0 %v1380
    %4339 = vmatprep.subr.bf16.mxu0 %v1389
    %4340 = vmatpush1.bf16.msra.mxu0 %v1388
    %4341 = vmatprep.mubr.bf16.mxu0 %v4142
    %4342 = vmatmul.mubr.bf16.gmra.mrb[0].mxu0 %v4141
    %v4343 = vpop.f32.mrb[0].mxu0
    %v4344 = vadd.f32 0.0, %v4343
    %v4345 = vpop.f32.mrb[0].mxu0
    %v4346 = vadd.f32 0.0, %v4345
    %v4347 = vpop.f32.mrb[0].mxu0
    %v4348 = vpop.f32.mrb[0].mxu0
    %4349 = vdwg.mxu0
    %4350 = vmatprep.subr.bf16.mxu0 %v1397
    %4351 = vmatpush1.bf16.msra.mxu0 %v1396
    %4352 = vmatprep.subr.bf16.mxu0 %v1405
    %4353 = vmatpush1.bf16.msra.mxu0 %v1404
    %4354 = vmatprep.subr.bf16.mxu0 %v1413
    %4355 = vmatpush1.bf16.msra.mxu0 %v1412
    %4356 = vmatprep.subr.bf16.mxu0 %v1421
    %4357 = vmatpush1.bf16.msra.mxu0 %v1420
    %4358 = vmatprep.subr.bf16.mxu0 %v1429
    %4359 = vmatpush1.bf16.msra.mxu0 %v1428
    %4360 = vmatprep.subr.bf16.mxu0 %v1437
    %4361 = vmatpush1.bf16.msra.mxu0 %v1436
    %4362 = vmatprep.subr.bf16.mxu0 %v1445
    %4363 = vmatpush1.bf16.msra.mxu0 %v1444
    %4364 = vmatprep.subr.bf16.mxu0 %v1453
    %4365 = vmatpush1.bf16.msra.mxu0 %v1452
    %4366 = vmatprep.subr.bf16.mxu0 %v1461
    %4367 = vmatpush1.bf16.msra.mxu0 %v1460
    %4368 = vmatprep.subr.bf16.mxu0 %v1469
    %4369 = vmatpush1.bf16.msra.mxu0 %v1468
    %4370 = vmatprep.subr.bf16.mxu0 %v1477
    %4371 = vmatpush1.bf16.msra.mxu0 %v1476
    %4372 = vmatprep.subr.bf16.mxu0 %v1485
    %4373 = vmatpush1.bf16.msra.mxu0 %v1484
    %4374 = vmatprep.subr.bf16.mxu0 %v1493
    %4375 = vmatpush1.bf16.msra.mxu0 %v1492
    %4376 = vmatprep.subr.bf16.mxu0 %v1501
    %4377 = vmatpush1.bf16.msra.mxu0 %v1500
    %4378 = vmatprep.subr.bf16.mxu0 %v1509
    %4379 = vmatpush1.bf16.msra.mxu0 %v1508
    %4380 = vmatprep.subr.bf16.mxu0 %v1517
    %4381 = vmatpush1.bf16.msra.mxu0 %v1516
    %4382 = vmatprep.mubr.bf16.mxu0 %v4144
    %4383 = vmatmul.mubr.bf16.gmra.mrb[0].mxu0 %v4143
    %v4384 = vpop.f32.mrb[0].mxu0
    %v4385 = vadd.f32 %v4344, %v4384
    %v4386 = vpop.f32.mrb[0].mxu0
    %v4387 = vadd.f32 %v4346, %v4386
    %v4388 = vpop.f32.mrb[0].mxu0
    %v4389 = vpop.f32.mrb[0].mxu0
    %4390 = vdwg.mxu0
    %4391 = vmatprep.subr.bf16.mxu0 %v1271
    %4392 = vmatpush1.bf16.msra.mxu0 %v1270
    %4393 = vmatprep.subr.bf16.mxu0 %v1279
    %4394 = vmatpush1.bf16.msra.mxu0 %v1278
    %4395 = vmatprep.subr.bf16.mxu0 %v1287
    %4396 = vmatpush1.bf16.msra.mxu0 %v1286
    %4397 = vmatprep.subr.bf16.mxu0 %v1295
    %4398 = vmatpush1.bf16.msra.mxu0 %v1294
    %4399 = vmatprep.subr.bf16.mxu0 %v1303
    %4400 = vmatpush1.bf16.msra.mxu0 %v1302
    %4401 = vmatprep.subr.bf16.mxu0 %v1311
    %4402 = vmatpush1.bf16.msra.mxu0 %v1310
    %4403 = vmatprep.subr.bf16.mxu0 %v1319
    %4404 = vmatpush1.bf16.msra.mxu0 %v1318
    %4405 = vmatprep.subr.bf16.mxu0 %v1327
    %4406 = vmatpush1.bf16.msra.mxu0 %v1326
    %4407 = vmatprep.subr.bf16.mxu0 %v1335
    %4408 = vmatpush1.bf16.msra.mxu0 %v1334
    %4409 = vmatprep.subr.bf16.mxu0 %v1343
    %4410 = vmatpush1.bf16.msra.mxu0 %v1342
    %4411 = vmatprep.subr.bf16.mxu0 %v1351
    %4412 = vmatpush1.bf16.msra.mxu0 %v1350
    %4413 = vmatprep.subr.bf16.mxu0 %v1359
    %4414 = vmatpush1.bf16.msra.mxu0 %v1358
    %4415 = vmatprep.subr.bf16.mxu0 %v1367
    %4416 = vmatpush1.bf16.msra.mxu0 %v1366
    %4417 = vmatprep.subr.bf16.mxu0 %v1375
    %4418 = vmatpush1.bf16.msra.mxu0 %v1374
    %4419 = vmatprep.subr.bf16.mxu0 %v1383
    %4420 = vmatpush1.bf16.msra.mxu0 %v1382
    %4421 = vmatprep.subr.bf16.mxu0 %v1391
    %4422 = vmatpush1.bf16.msra.mxu0 %v1390
    %4423 = vmatprep.mubr.bf16.mxu0 %v4142
    %4424 = vmatmul.mubr.bf16.gmra.mrb[0].mxu0 %v4141
    %v4425 = vpop.f32.mrb[0].mxu0
    %v4426 = vadd.f32 0.0, %v4425
    %v4427 = vpop.f32.mrb[0].mxu0
    %v4428 = vadd.f32 0.0, %v4427
    %v4429 = vpop.f32.mrb[0].mxu0
    %v4430 = vpop.f32.mrb[0].mxu0
    %4431 = vdwg.mxu0
    %4432 = vmatprep.subr.bf16.mxu0 %v1399
    %4433 = vmatpush1.bf16.msra.mxu0 %v1398
    %4434 = vmatprep.subr.bf16.mxu0 %v1407
    %4435 = vmatpush1.bf16.msra.mxu0 %v1406
    %4436 = vmatprep.subr.bf16.mxu0 %v1415
    %4437 = vmatpush1.bf16.msra.mxu0 %v1414
    %4438 = vmatprep.subr.bf16.mxu0 %v1423
    %4439 = vmatpush1.bf16.msra.mxu0 %v1422
    %4440 = vmatprep.subr.bf16.mxu0 %v1431
    %4441 = vmatpush1.bf16.msra.mxu0 %v1430
    %4442 = vmatprep.subr.bf16.mxu0 %v1439
    %4443 = vmatpush1.bf16.msra.mxu0 %v1438
    %4444 = vmatprep.subr.bf16.mxu0 %v1447
    %4445 = vmatpush1.bf16.msra.mxu0 %v1446
    %4446 = vmatprep.subr.bf16.mxu0 %v1455
    %4447 = vmatpush1.bf16.msra.mxu0 %v1454
    %4448 = vmatprep.subr.bf16.mxu0 %v1463
    %4449 = vmatpush1.bf16.msra.mxu0 %v1462
    %4450 = vmatprep.subr.bf16.mxu0 %v1471
    %4451 = vmatpush1.bf16.msra.mxu0 %v1470
    %4452 = vmatprep.subr.bf16.mxu0 %v1479
    %4453 = vmatpush1.bf16.msra.mxu0 %v1478
    %4454 = vmatprep.subr.bf16.mxu0 %v1487
    %4455 = vmatpush1.bf16.msra.mxu0 %v1486
    %4456 = vmatprep.subr.bf16.mxu0 %v1495
    %4457 = vmatpush1.bf16.msra.mxu0 %v1494
    %4458 = vmatprep.subr.bf16.mxu0 %v1503
    %4459 = vmatpush1.bf16.msra.mxu0 %v1502
    %4460 = vmatprep.subr.bf16.mxu0 %v1511
    %4461 = vmatpush1.bf16.msra.mxu0 %v1510
    %4462 = vmatprep.subr.bf16.mxu0 %v1519
    %4463 = vmatpush1.bf16.msra.mxu0 %v1518
    %4464 = vmatprep.mubr.bf16.mxu0 %v4144
    %4465 = vmatmul.mubr.bf16.gmra.mrb[0].mxu0 %v4143
    %v4466 = vpop.f32.mrb[0].mxu0
    %v4467 = vadd.f32 %v4426, %v4466
    %v4468 = vpop.f32.mrb[0].mxu0
    %v4469 = vadd.f32 %v4428, %v4468
    %v4470 = vpop.f32.mrb[0].mxu0
    %v4471 = vpop.f32.mrb[0].mxu0
    %4472 = vdwg.mxu0
    %v4473 = vadd.f32 %v4129, %v4221
    %v4474 = vadd.f32 %v4130, %v4223
    %v4475 = vadd.f32 %v4131, %v4303
    %v4476 = vadd.f32 %v4132, %v4305
    %v4477 = vadd.f32 %v4133, %v4385
    %v4478 = vadd.f32 %v4134, %v4387
    %v4479 = vadd.f32 %v4135, %v4467
    %v4480 = vadd.f32 %v4136, %v4469
    %v4481 = vxor.u32 %v4473, 2147483648
    %v4482 = vxor.u32 %v4474, 2147483648
    %v4483 = vxor.u32 %v4475, 2147483648
    %v4484 = vxor.u32 %v4476, 2147483648
    %v4485 = vxor.u32 %v4477, 2147483648
    %v4486 = vxor.u32 %v4478, 2147483648
    %v4487 = vmul.f32 %v4481, 1.442695
    %v4488 = vpow.pop %v4487
    %v4489 = vmul.f32 %v4482, 1.442695
    %v4490 = vpow.pop %v4489
    %v4491 = vmul.f32 %v4483, 1.442695
    %v4492 = vpow.pop %v4491
    %v4493 = vmul.f32 %v4484, 1.442695
    %v4494 = vpow.pop %v4493
    %v4495 = vmul.f32 %v4485, 1.442695
    %v4496 = vpow.pop %v4495
    %v4497 = vmul.f32 %v4486, 1.442695
    %v4498 = vpow.pop %v4497
    %v4499 = vadd.f32 %v4488, 1.0
    %v4500 = vadd.f32 %v4490, 1.0
    %v4501 = vadd.f32 %v4492, 1.0
    %v4502 = vadd.f32 %v4494, 1.0
    %v4503 = vadd.f32 %v4496, 1.0
    %v4504 = vadd.f32 %v4498, 1.0
    %v4505 = vrcp.pop %v4499
    %v4506 = vmul.f32 1.0, %v4505
    %v4507 = vrcp.pop %v4500
    %v4508 = vmul.f32 1.0, %v4507
    %v4509 = vrcp.pop %v4501
    %v4510 = vmul.f32 1.0, %v4509
    %v4511 = vrcp.pop %v4502
    %v4512 = vmul.f32 1.0, %v4511
    %v4513 = vrcp.pop %v4503
    %v4514 = vmul.f32 1.0, %v4513
    %v4515 = vrcp.pop %v4504
    %v4516 = vmul.f32 1.0, %v4515
    %v4517 = vtanh.pop %v4479
    %v4518 = vtanh.pop %v4480
    %v4519 = vmul.f32 %v4510, %v4107
    %v4520 = vmul.f32 %v4512, %v4108
    %v4521 = vmul.f32 %v4506, %v4517
    %v4522 = vmul.f32 %v4508, %v4518
    %v4523 = vadd.f32 %v4519, %v4521
    %v4524 = vadd.f32 %v4520, %v4522
    %v4525 = vtanh.pop %v4523
    %v4526 = vtanh.pop %v4524
    %v4527 = vmul.f32 %v4514, %v4525
    %v4528 = vmul.f32 %v4516, %v4526
    %v4529 = vrot.slane %v939, 7
    %v4530 = vrot.slane %v941, 7
    %v4531 = vrot.slane %v980, 7
    %v4532 = vrot.slane %v982, 7
    %v4533 = vrot.slane %v1021, 7
    %v4534 = vrot.slane %v1023, 7
    %v4535 = vrot.slane %v1062, 7
    %v4536 = vrot.slane %v1064, 7
    %v4545 = vrot.slane %v1103, 7
    %v4546 = vrot.slane %v1105, 7
    %v4547 = vrot.slane %v1144, 7
    %v4548 = vrot.slane %v1146, 7
    %v4549 = vrot.slane %v1185, 7
    %v4550 = vrot.slane %v1187, 7
    %v4551 = vrot.slane %v1226, 7
    %v4552 = vrot.slane %v1228, 7
    %v4561 = vsel %vm1544, %v4529, %v4545
    %v4562 = vsel %vm1544, %v4530, %v4546
    %v4563 = vsel %vm1544, %v4531, %v4547
    %v4564 = vsel %vm1544, %v4532, %v4548
    %v4565 = vsel %vm1544, %v4533, %v4549
    %v4566 = vsel %vm1544, %v4534, %v4550
    %v4567 = vsel %vm1544, %v4535, %v4551
    %v4568 = vsel %vm1544, %v4536, %v4552
    %v4569 = vmul.f32 %v4527, %v1256
    %v4570 = vmul.f32 %v4528, %v1257
    %v4571 = vmul.f32 %v4527, %v1258
    %v4572 = vmul.f32 %v4528, %v1259
    %v4573 = vpack.c.bf16 %v4569, %v4569
    %v4574 = vpack.c.bf16 %v4570, %v4570
    %v4575 = vpack.c.bf16 %v4571, %v4571
    %v4576 = vpack.c.bf16 %v4572, %v4572
    %4577 = vmatprep.subr.bf16.mxu0 %v1265
    %4578 = vmatpush1.bf16.msra.mxu0 %v1264
    %4579 = vmatprep.subr.bf16.mxu0 %v1273
    %4580 = vmatpush1.bf16.msra.mxu0 %v1272
    %4581 = vmatprep.subr.bf16.mxu0 %v1281
    %4582 = vmatpush1.bf16.msra.mxu0 %v1280
    %4583 = vmatprep.subr.bf16.mxu0 %v1289
    %4584 = vmatpush1.bf16.msra.mxu0 %v1288
    %4585 = vmatprep.subr.bf16.mxu0 %v1297
    %4586 = vmatpush1.bf16.msra.mxu0 %v1296
    %4587 = vmatprep.subr.bf16.mxu0 %v1305
    %4588 = vmatpush1.bf16.msra.mxu0 %v1304
    %4589 = vmatprep.subr.bf16.mxu0 %v1313
    %4590 = vmatpush1.bf16.msra.mxu0 %v1312
    %4591 = vmatprep.subr.bf16.mxu0 %v1321
    %4592 = vmatpush1.bf16.msra.mxu0 %v1320
    %4593 = vmatprep.subr.bf16.mxu0 %v1329
    %4594 = vmatpush1.bf16.msra.mxu0 %v1328
    %4595 = vmatprep.subr.bf16.mxu0 %v1337
    %4596 = vmatpush1.bf16.msra.mxu0 %v1336
    %4597 = vmatprep.subr.bf16.mxu0 %v1345
    %4598 = vmatpush1.bf16.msra.mxu0 %v1344
    %4599 = vmatprep.subr.bf16.mxu0 %v1353
    %4600 = vmatpush1.bf16.msra.mxu0 %v1352
    %4601 = vmatprep.subr.bf16.mxu0 %v1361
    %4602 = vmatpush1.bf16.msra.mxu0 %v1360
    %4603 = vmatprep.subr.bf16.mxu0 %v1369
    %4604 = vmatpush1.bf16.msra.mxu0 %v1368
    %4605 = vmatprep.subr.bf16.mxu0 %v1377
    %4606 = vmatpush1.bf16.msra.mxu0 %v1376
    %4607 = vmatprep.subr.bf16.mxu0 %v1385
    %4608 = vmatpush1.bf16.msra.mxu0 %v1384
    %4609 = vmatprep.mubr.bf16.mxu0 %v4574
    %4610 = vmatmul.mubr.bf16.gmra.mrb[0].mxu0 %v4573
    %v4611 = vpop.f32.mrb[0].mxu0
    %v4612 = vadd.f32 0.0, %v4611
    %v4613 = vpop.f32.mrb[0].mxu0
    %v4614 = vadd.f32 0.0, %v4613
    %v4615 = vpop.f32.mrb[0].mxu0
    %v4616 = vpop.f32.mrb[0].mxu0
    %4617 = vdwg.mxu0
    %4618 = vmatprep.subr.bf16.mxu0 %v1393
    %4619 = vmatpush1.bf16.msra.mxu0 %v1392
    %4620 = vmatprep.subr.bf16.mxu0 %v1401
    %4621 = vmatpush1.bf16.msra.mxu0 %v1400
    %4622 = vmatprep.subr.bf16.mxu0 %v1409
    %4623 = vmatpush1.bf16.msra.mxu0 %v1408
    %4624 = vmatprep.subr.bf16.mxu0 %v1417
    %4625 = vmatpush1.bf16.msra.mxu0 %v1416
    %4626 = vmatprep.subr.bf16.mxu0 %v1425
    %4627 = vmatpush1.bf16.msra.mxu0 %v1424
    %4628 = vmatprep.subr.bf16.mxu0 %v1433
    %4629 = vmatpush1.bf16.msra.mxu0 %v1432
    %4630 = vmatprep.subr.bf16.mxu0 %v1441
    %4631 = vmatpush1.bf16.msra.mxu0 %v1440
    %4632 = vmatprep.subr.bf16.mxu0 %v1449
    %4633 = vmatpush1.bf16.msra.mxu0 %v1448
    %4634 = vmatprep.subr.bf16.mxu0 %v1457
    %4635 = vmatpush1.bf16.msra.mxu0 %v1456
    %4636 = vmatprep.subr.bf16.mxu0 %v1465
    %4637 = vmatpush1.bf16.msra.mxu0 %v1464
    %4638 = vmatprep.subr.bf16.mxu0 %v1473
    %4639 = vmatpush1.bf16.msra.mxu0 %v1472
    %4640 = vmatprep.subr.bf16.mxu0 %v1481
    %4641 = vmatpush1.bf16.msra.mxu0 %v1480
    %4642 = vmatprep.subr.bf16.mxu0 %v1489
    %4643 = vmatpush1.bf16.msra.mxu0 %v1488
    %4644 = vmatprep.subr.bf16.mxu0 %v1497
    %4645 = vmatpush1.bf16.msra.mxu0 %v1496
    %4646 = vmatprep.subr.bf16.mxu0 %v1505
    %4647 = vmatpush1.bf16.msra.mxu0 %v1504
    %4648 = vmatprep.subr.bf16.mxu0 %v1513
    %4649 = vmatpush1.bf16.msra.mxu0 %v1512
    %4650 = vmatprep.mubr.bf16.mxu0 %v4576
    %4651 = vmatmul.mubr.bf16.gmra.mrb[0].mxu0 %v4575
    %v4652 = vpop.f32.mrb[0].mxu0
    %v4653 = vadd.f32 %v4612, %v4652
    %v4654 = vpop.f32.mrb[0].mxu0
    %v4655 = vadd.f32 %v4614, %v4654
    %v4656 = vpop.f32.mrb[0].mxu0
    %v4657 = vpop.f32.mrb[0].mxu0
    %4658 = vdwg.mxu0
    %4659 = vmatprep.subr.bf16.mxu0 %v1267
    %4660 = vmatpush1.bf16.msra.mxu0 %v1266
    %4661 = vmatprep.subr.bf16.mxu0 %v1275
    %4662 = vmatpush1.bf16.msra.mxu0 %v1274
    %4663 = vmatprep.subr.bf16.mxu0 %v1283
    %4664 = vmatpush1.bf16.msra.mxu0 %v1282
    %4665 = vmatprep.subr.bf16.mxu0 %v1291
    %4666 = vmatpush1.bf16.msra.mxu0 %v1290
    %4667 = vmatprep.subr.bf16.mxu0 %v1299
    %4668 = vmatpush1.bf16.msra.mxu0 %v1298
    %4669 = vmatprep.subr.bf16.mxu0 %v1307
    %4670 = vmatpush1.bf16.msra.mxu0 %v1306
    %4671 = vmatprep.subr.bf16.mxu0 %v1315
    %4672 = vmatpush1.bf16.msra.mxu0 %v1314
    %4673 = vmatprep.subr.bf16.mxu0 %v1323
    %4674 = vmatpush1.bf16.msra.mxu0 %v1322
    %4675 = vmatprep.subr.bf16.mxu0 %v1331
    %4676 = vmatpush1.bf16.msra.mxu0 %v1330
    %4677 = vmatprep.subr.bf16.mxu0 %v1339
    %4678 = vmatpush1.bf16.msra.mxu0 %v1338
    %4679 = vmatprep.subr.bf16.mxu0 %v1347
    %4680 = vmatpush1.bf16.msra.mxu0 %v1346
    %4681 = vmatprep.subr.bf16.mxu0 %v1355
    %4682 = vmatpush1.bf16.msra.mxu0 %v1354
    %4683 = vmatprep.subr.bf16.mxu0 %v1363
    %4684 = vmatpush1.bf16.msra.mxu0 %v1362
    %4685 = vmatprep.subr.bf16.mxu0 %v1371
    %4686 = vmatpush1.bf16.msra.mxu0 %v1370
    %4687 = vmatprep.subr.bf16.mxu0 %v1379
    %4688 = vmatpush1.bf16.msra.mxu0 %v1378
    %4689 = vmatprep.subr.bf16.mxu0 %v1387
    %4690 = vmatpush1.bf16.msra.mxu0 %v1386
    %4691 = vmatprep.mubr.bf16.mxu0 %v4574
    %4692 = vmatmul.mubr.bf16.gmra.mrb[0].mxu0 %v4573
    %v4693 = vpop.f32.mrb[0].mxu0
    %v4694 = vadd.f32 0.0, %v4693
    %v4695 = vpop.f32.mrb[0].mxu0
    %v4696 = vadd.f32 0.0, %v4695
    %v4697 = vpop.f32.mrb[0].mxu0
    %v4698 = vpop.f32.mrb[0].mxu0
    %4699 = vdwg.mxu0
    %4700 = vmatprep.subr.bf16.mxu0 %v1395
    %4701 = vmatpush1.bf16.msra.mxu0 %v1394
    %4702 = vmatprep.subr.bf16.mxu0 %v1403
    %4703 = vmatpush1.bf16.msra.mxu0 %v1402
    %4704 = vmatprep.subr.bf16.mxu0 %v1411
    %4705 = vmatpush1.bf16.msra.mxu0 %v1410
    %4706 = vmatprep.subr.bf16.mxu0 %v1419
    %4707 = vmatpush1.bf16.msra.mxu0 %v1418
    %4708 = vmatprep.subr.bf16.mxu0 %v1427
    %4709 = vmatpush1.bf16.msra.mxu0 %v1426
    %4710 = vmatprep.subr.bf16.mxu0 %v1435
    %4711 = vmatpush1.bf16.msra.mxu0 %v1434
    %4712 = vmatprep.subr.bf16.mxu0 %v1443
    %4713 = vmatpush1.bf16.msra.mxu0 %v1442
    %4714 = vmatprep.subr.bf16.mxu0 %v1451
    %4715 = vmatpush1.bf16.msra.mxu0 %v1450
    %4716 = vmatprep.subr.bf16.mxu0 %v1459
    %4717 = vmatpush1.bf16.msra.mxu0 %v1458
    %4718 = vmatprep.subr.bf16.mxu0 %v1467
    %4719 = vmatpush1.bf16.msra.mxu0 %v1466
    %4720 = vmatprep.subr.bf16.mxu0 %v1475
    %4721 = vmatpush1.bf16.msra.mxu0 %v1474
    %4722 = vmatprep.subr.bf16.mxu0 %v1483
    %4723 = vmatpush1.bf16.msra.mxu0 %v1482
    %4724 = vmatprep.subr.bf16.mxu0 %v1491
    %4725 = vmatpush1.bf16.msra.mxu0 %v1490
    %4726 = vmatprep.subr.bf16.mxu0 %v1499
    %4727 = vmatpush1.bf16.msra.mxu0 %v1498
    %4728 = vmatprep.subr.bf16.mxu0 %v1507
    %4729 = vmatpush1.bf16.msra.mxu0 %v1506
    %4730 = vmatprep.subr.bf16.mxu0 %v1515
    %4731 = vmatpush1.bf16.msra.mxu0 %v1514
    %4732 = vmatprep.mubr.bf16.mxu0 %v4576
    %4733 = vmatmul.mubr.bf16.gmra.mrb[0].mxu0 %v4575
    %v4734 = vpop.f32.mrb[0].mxu0
    %v4735 = vadd.f32 %v4694, %v4734
    %v4736 = vpop.f32.mrb[0].mxu0
    %v4737 = vadd.f32 %v4696, %v4736
    %v4738 = vpop.f32.mrb[0].mxu0
    %v4739 = vpop.f32.mrb[0].mxu0
    %4740 = vdwg.mxu0
    %4741 = vmatprep.subr.bf16.mxu0 %v1269
    %4742 = vmatpush1.bf16.msra.mxu0 %v1268
    %4743 = vmatprep.subr.bf16.mxu0 %v1277
    %4744 = vmatpush1.bf16.msra.mxu0 %v1276
    %4745 = vmatprep.subr.bf16.mxu0 %v1285
    %4746 = vmatpush1.bf16.msra.mxu0 %v1284
    %4747 = vmatprep.subr.bf16.mxu0 %v1293
    %4748 = vmatpush1.bf16.msra.mxu0 %v1292
    %4749 = vmatprep.subr.bf16.mxu0 %v1301
    %4750 = vmatpush1.bf16.msra.mxu0 %v1300
    %4751 = vmatprep.subr.bf16.mxu0 %v1309
    %4752 = vmatpush1.bf16.msra.mxu0 %v1308
    %4753 = vmatprep.subr.bf16.mxu0 %v1317
    %4754 = vmatpush1.bf16.msra.mxu0 %v1316
    %4755 = vmatprep.subr.bf16.mxu0 %v1325
    %4756 = vmatpush1.bf16.msra.mxu0 %v1324
    %4757 = vmatprep.subr.bf16.mxu0 %v1333
    %4758 = vmatpush1.bf16.msra.mxu0 %v1332
    %4759 = vmatprep.subr.bf16.mxu0 %v1341
    %4760 = vmatpush1.bf16.msra.mxu0 %v1340
    %4761 = vmatprep.subr.bf16.mxu0 %v1349
    %4762 = vmatpush1.bf16.msra.mxu0 %v1348
    %4763 = vmatprep.subr.bf16.mxu0 %v1357
    %4764 = vmatpush1.bf16.msra.mxu0 %v1356
    %4765 = vmatprep.subr.bf16.mxu0 %v1365
    %4766 = vmatpush1.bf16.msra.mxu0 %v1364
    %4767 = vmatprep.subr.bf16.mxu0 %v1373
    %4768 = vmatpush1.bf16.msra.mxu0 %v1372
    %4769 = vmatprep.subr.bf16.mxu0 %v1381
    %4770 = vmatpush1.bf16.msra.mxu0 %v1380
    %4771 = vmatprep.subr.bf16.mxu0 %v1389
    %4772 = vmatpush1.bf16.msra.mxu0 %v1388
    %4773 = vmatprep.mubr.bf16.mxu0 %v4574
    %4774 = vmatmul.mubr.bf16.gmra.mrb[0].mxu0 %v4573
    %v4775 = vpop.f32.mrb[0].mxu0
    %v4776 = vadd.f32 0.0, %v4775
    %v4777 = vpop.f32.mrb[0].mxu0
    %v4778 = vadd.f32 0.0, %v4777
    %v4779 = vpop.f32.mrb[0].mxu0
    %v4780 = vpop.f32.mrb[0].mxu0
    %4781 = vdwg.mxu0
    %4782 = vmatprep.subr.bf16.mxu0 %v1397
    %4783 = vmatpush1.bf16.msra.mxu0 %v1396
    %4784 = vmatprep.subr.bf16.mxu0 %v1405
    %4785 = vmatpush1.bf16.msra.mxu0 %v1404
    %4786 = vmatprep.subr.bf16.mxu0 %v1413
    %4787 = vmatpush1.bf16.msra.mxu0 %v1412
    %4788 = vmatprep.subr.bf16.mxu0 %v1421
    %4789 = vmatpush1.bf16.msra.mxu0 %v1420
    %4790 = vmatprep.subr.bf16.mxu0 %v1429
    %4791 = vmatpush1.bf16.msra.mxu0 %v1428
    %4792 = vmatprep.subr.bf16.mxu0 %v1437
    %4793 = vmatpush1.bf16.msra.mxu0 %v1436
    %4794 = vmatprep.subr.bf16.mxu0 %v1445
    %4795 = vmatpush1.bf16.msra.mxu0 %v1444
    %4796 = vmatprep.subr.bf16.mxu0 %v1453
    %4797 = vmatpush1.bf16.msra.mxu0 %v1452
    %4798 = vmatprep.subr.bf16.mxu0 %v1461
    %4799 = vmatpush1.bf16.msra.mxu0 %v1460
    %4800 = vmatprep.subr.bf16.mxu0 %v1469
    %4801 = vmatpush1.bf16.msra.mxu0 %v1468
    %4802 = vmatprep.subr.bf16.mxu0 %v1477
    %4803 = vmatpush1.bf16.msra.mxu0 %v1476
    %4804 = vmatprep.subr.bf16.mxu0 %v1485
    %4805 = vmatpush1.bf16.msra.mxu0 %v1484
    %4806 = vmatprep.subr.bf16.mxu0 %v1493
    %4807 = vmatpush1.bf16.msra.mxu0 %v1492
    %4808 = vmatprep.subr.bf16.mxu0 %v1501
    %4809 = vmatpush1.bf16.msra.mxu0 %v1500
    %4810 = vmatprep.subr.bf16.mxu0 %v1509
    %4811 = vmatpush1.bf16.msra.mxu0 %v1508
    %4812 = vmatprep.subr.bf16.mxu0 %v1517
    %4813 = vmatpush1.bf16.msra.mxu0 %v1516
    %4814 = vmatprep.mubr.bf16.mxu0 %v4576
    %4815 = vmatmul.mubr.bf16.gmra.mrb[0].mxu0 %v4575
    %v4816 = vpop.f32.mrb[0].mxu0
    %v4817 = vadd.f32 %v4776, %v4816
    %v4818 = vpop.f32.mrb[0].mxu0
    %v4819 = vadd.f32 %v4778, %v4818
    %v4820 = vpop.f32.mrb[0].mxu0
    %v4821 = vpop.f32.mrb[0].mxu0
    %4822 = vdwg.mxu0
    %4823 = vmatprep.subr.bf16.mxu0 %v1271
    %4824 = vmatpush1.bf16.msra.mxu0 %v1270
    %4825 = vmatprep.subr.bf16.mxu0 %v1279
    %4826 = vmatpush1.bf16.msra.mxu0 %v1278
    %4827 = vmatprep.subr.bf16.mxu0 %v1287
    %4828 = vmatpush1.bf16.msra.mxu0 %v1286
    %4829 = vmatprep.subr.bf16.mxu0 %v1295
    %4830 = vmatpush1.bf16.msra.mxu0 %v1294
    %4831 = vmatprep.subr.bf16.mxu0 %v1303
    %4832 = vmatpush1.bf16.msra.mxu0 %v1302
    %4833 = vmatprep.subr.bf16.mxu0 %v1311
    %4834 = vmatpush1.bf16.msra.mxu0 %v1310
    %4835 = vmatprep.subr.bf16.mxu0 %v1319
    %4836 = vmatpush1.bf16.msra.mxu0 %v1318
    %4837 = vmatprep.subr.bf16.mxu0 %v1327
    %4838 = vmatpush1.bf16.msra.mxu0 %v1326
    %4839 = vmatprep.subr.bf16.mxu0 %v1335
    %4840 = vmatpush1.bf16.msra.mxu0 %v1334
    %4841 = vmatprep.subr.bf16.mxu0 %v1343
    %4842 = vmatpush1.bf16.msra.mxu0 %v1342
    %4843 = vmatprep.subr.bf16.mxu0 %v1351
    %4844 = vmatpush1.bf16.msra.mxu0 %v1350
    %4845 = vmatprep.subr.bf16.mxu0 %v1359
    %4846 = vmatpush1.bf16.msra.mxu0 %v1358
    %4847 = vmatprep.subr.bf16.mxu0 %v1367
    %4848 = vmatpush1.bf16.msra.mxu0 %v1366
    %4849 = vmatprep.subr.bf16.mxu0 %v1375
    %4850 = vmatpush1.bf16.msra.mxu0 %v1374
    %4851 = vmatprep.subr.bf16.mxu0 %v1383
    %4852 = vmatpush1.bf16.msra.mxu0 %v1382
    %4853 = vmatprep.subr.bf16.mxu0 %v1391
    %4854 = vmatpush1.bf16.msra.mxu0 %v1390
    %4855 = vmatprep.mubr.bf16.mxu0 %v4574
    %4856 = vmatmul.mubr.bf16.gmra.mrb[0].mxu0 %v4573
    %v4857 = vpop.f32.mrb[0].mxu0
    %v4858 = vadd.f32 0.0, %v4857
    %v4859 = vpop.f32.mrb[0].mxu0
    %v4860 = vadd.f32 0.0, %v4859
    %v4861 = vpop.f32.mrb[0].mxu0
    %v4862 = vpop.f32.mrb[0].mxu0
    %4863 = vdwg.mxu0
    %4864 = vmatprep.subr.bf16.mxu0 %v1399
    %4865 = vmatpush1.bf16.msra.mxu0 %v1398
    %4866 = vmatprep.subr.bf16.mxu0 %v1407
    %4867 = vmatpush1.bf16.msra.mxu0 %v1406
    %4868 = vmatprep.subr.bf16.mxu0 %v1415
    %4869 = vmatpush1.bf16.msra.mxu0 %v1414
    %4870 = vmatprep.subr.bf16.mxu0 %v1423
    %4871 = vmatpush1.bf16.msra.mxu0 %v1422
    %4872 = vmatprep.subr.bf16.mxu0 %v1431
    %4873 = vmatpush1.bf16.msra.mxu0 %v1430
    %4874 = vmatprep.subr.bf16.mxu0 %v1439
    %4875 = vmatpush1.bf16.msra.mxu0 %v1438
    %4876 = vmatprep.subr.bf16.mxu0 %v1447
    %4877 = vmatpush1.bf16.msra.mxu0 %v1446
    %4878 = vmatprep.subr.bf16.mxu0 %v1455
    %4879 = vmatpush1.bf16.msra.mxu0 %v1454
    %4880 = vmatprep.subr.bf16.mxu0 %v1463
    %4881 = vmatpush1.bf16.msra.mxu0 %v1462
    %4882 = vmatprep.subr.bf16.mxu0 %v1471
    %4883 = vmatpush1.bf16.msra.mxu0 %v1470
    %4884 = vmatprep.subr.bf16.mxu0 %v1479
    %4885 = vmatpush1.bf16.msra.mxu0 %v1478
    %4886 = vmatprep.subr.bf16.mxu0 %v1487
    %4887 = vmatpush1.bf16.msra.mxu0 %v1486
    %4888 = vmatprep.subr.bf16.mxu0 %v1495
    %4889 = vmatpush1.bf16.msra.mxu0 %v1494
    %4890 = vmatprep.subr.bf16.mxu0 %v1503
    %4891 = vmatpush1.bf16.msra.mxu0 %v1502
    %4892 = vmatprep.subr.bf16.mxu0 %v1511
    %4893 = vmatpush1.bf16.msra.mxu0 %v1510
    %4894 = vmatprep.subr.bf16.mxu0 %v1519
    %4895 = vmatpush1.bf16.msra.mxu0 %v1518
    %4896 = vmatprep.mubr.bf16.mxu0 %v4576
    %4897 = vmatmul.mubr.bf16.gmra.mrb[0].mxu0 %v4575
    %v4898 = vpop.f32.mrb[0].mxu0
    %v4899 = vadd.f32 %v4858, %v4898
    %v4900 = vpop.f32.mrb[0].mxu0
    %v4901 = vadd.f32 %v4860, %v4900
    %v4902 = vpop.f32.mrb[0].mxu0
    %v4903 = vpop.f32.mrb[0].mxu0
    %4904 = vdwg.mxu0
    %v4905 = vadd.f32 %v4561, %v4653
    %v4906 = vadd.f32 %v4562, %v4655
    %v4907 = vadd.f32 %v4563, %v4735
    %v4908 = vadd.f32 %v4564, %v4737
    %v4909 = vadd.f32 %v4565, %v4817
    %v4910 = vadd.f32 %v4566, %v4819
    %v4911 = vadd.f32 %v4567, %v4899
    %v4912 = vadd.f32 %v4568, %v4901
    %v4913 = vxor.u32 %v4905, 2147483648
    %v4914 = vxor.u32 %v4906, 2147483648
    %v4915 = vxor.u32 %v4907, 2147483648
    %v4916 = vxor.u32 %v4908, 2147483648
    %v4917 = vxor.u32 %v4909, 2147483648
    %v4918 = vxor.u32 %v4910, 2147483648
    %v4919 = vmul.f32 %v4913, 1.442695
    %v4920 = vpow.pop %v4919
    %v4921 = vmul.f32 %v4914, 1.442695
    %v4922 = vpow.pop %v4921
    %v4923 = vmul.f32 %v4915, 1.442695
    %v4924 = vpow.pop %v4923
    %v4925 = vmul.f32 %v4916, 1.442695
    %v4926 = vpow.pop %v4925
    %v4927 = vmul.f32 %v4917, 1.442695
    %v4928 = vpow.pop %v4927
    %v4929 = vmul.f32 %v4918, 1.442695
    %v4930 = vpow.pop %v4929
    %v4931 = vadd.f32 %v4920, 1.0
    %v4932 = vadd.f32 %v4922, 1.0
    %v4933 = vadd.f32 %v4924, 1.0
    %v4934 = vadd.f32 %v4926, 1.0
    %v4935 = vadd.f32 %v4928, 1.0
    %v4936 = vadd.f32 %v4930, 1.0
    %v4937 = vrcp.pop %v4931
    %v4938 = vmul.f32 1.0, %v4937
    %v4939 = vrcp.pop %v4932
    %v4940 = vmul.f32 1.0, %v4939
    %v4941 = vrcp.pop %v4933
    %v4942 = vmul.f32 1.0, %v4941
    %v4943 = vrcp.pop %v4934
    %v4944 = vmul.f32 1.0, %v4943
    %v4945 = vrcp.pop %v4935
    %v4946 = vmul.f32 1.0, %v4945
    %v4947 = vrcp.pop %v4936
    %v4948 = vmul.f32 1.0, %v4947
    %v4949 = vtanh.pop %v4911
    %v4950 = vtanh.pop %v4912
    %v4951 = vmul.f32 %v4942, %v4523
    %v4952 = vmul.f32 %v4944, %v4524
    %v4953 = vmul.f32 %v4938, %v4949
    %v4954 = vmul.f32 %v4940, %v4950
    %v4955 = vadd.f32 %v4951, %v4953
    %v4956 = vadd.f32 %v4952, %v4954
    %v4957 = vtanh.pop %v4955
    %v4958 = vtanh.pop %v4956
    %v4959 = vmul.f32 %v4946, %v4957
    %v4960 = vmul.f32 %v4948, %v4958
    %v4963 = vrot.slane %v2383, 7
    %v4964 = vrot.slane %v2384, 7
    %v4969 = vrot.slane %v2815, 6
    %v4970 = vrot.slane %v2816, 6
    %v4975 = vrot.slane %v3247, 5
    %v4976 = vrot.slane %v3248, 5
    %v4981 = vrot.slane %v3679, 4
    %v4982 = vrot.slane %v3680, 4
    %v4987 = vrot.slane %v4111, 3
    %v4988 = vrot.slane %v4112, 3
    %v4993 = vrot.slane %v4527, 2
    %v4994 = vrot.slane %v4528, 2
    %v4999 = vrot.slane %v4959, 1
    %v5000 = vrot.slane %v4960, 1
    %v5003 = vsel %vm1544, %v1943, %v4963
    %v5004 = vsel %vm1544, %v1944, %v4964
    %vm5005 = vcmask 1041408
    %v5006 = vsel %vm5005, %v5003, %v4969
    %v5007 = vsel %vm5005, %v5004, %v4970
    %vm5008 = vcmask 1042432
    %v5009 = vsel %vm5008, %v5006, %v4975
    %v5010 = vsel %vm5008, %v5007, %v4976
    %vm5011 = vcmask 1043456
    %v5012 = vsel %vm5011, %v5009, %v4981
    %v5013 = vsel %vm5011, %v5010, %v4982
    %vm5014 = vcmask 1044480
    %v5015 = vsel %vm5014, %v5012, %v4987
    %v5016 = vsel %vm5014, %v5013, %v4988
    %vm5017 = vcmask 1045504
    %v5018 = vsel %vm5017, %v5015, %v4993
    %v5019 = vsel %vm5017, %v5016, %v4994
    %vm5020 = vcmask 1046528
    %v5021 = vsel %vm5020, %v5018, %v4999
    %v5022 = vsel %vm5020, %v5019, %v5000
    %v5023 = vrot.slane %v4111, 7
    %v5024 = vrot.slane %v4112, 7
    %v5027 = vrot.slane %v3679, 6
    %v5028 = vrot.slane %v3680, 6
    %v5031 = vrot.slane %v2815, 4
    %v5032 = vrot.slane %v2816, 4
    %v5035 = vrot.slane %v2383, 3
    %v5036 = vrot.slane %v2384, 3
    %v5041 = vrot.slane %v1943, 2
    %v5042 = vrot.slane %v1944, 2
    %v5045 = vsel %vm1544, %v4999, %v4527
    %v5046 = vsel %vm1544, %v5000, %v4528
    %v5047 = vsel %vm5005, %v5045, %v5023
    %v5048 = vsel %vm5005, %v5046, %v5024
    %v5049 = vsel %vm5008, %v5047, %v5027
    %v5050 = vsel %vm5008, %v5048, %v5028
    %v5051 = vsel %vm5011, %v5049, %v4975
    %v5052 = vsel %vm5011, %v5050, %v4976
    %v5053 = vsel %vm5014, %v5051, %v5031
    %v5054 = vsel %vm5014, %v5052, %v5032
    %v5055 = vsel %vm5017, %v5053, %v5035
    %v5056 = vsel %vm5017, %v5054, %v5036
    %v5057 = vsel %vm5020, %v5055, %v5041
    %v5058 = vsel %vm5020, %v5056, %v5042
    %5059 = vst [vmem:[%s12] sm:$0xff] %v5021
    %5060 = vst [vmem:[%s12 + $0x8] sm:$0xff] %v5022
    %5061 = vst [vmem:[%s12 + $0x10] sm:$0xff] %v5057
    %5062 = vst [vmem:[%s12 + $0x18] sm:$0xff] %v5058
    // Predicated region
    $region50: #{semilabel_forward.1} parent=1 // pred_check
      _
    $region51: #{semilabel_forward.1} parent=1 // pred_check_branch
      %5064 = sbr.rel (0) target = $region53
    $region52: #{semilabel_forward.1} parent=1 // pred_region
      _
    $region53: #{semilabel_forward.1} parent=1 // pred_fallthru
      _
    // Predicated region
    $region54: #{semilabel_forward.1} parent=1 // pred_check
      _
    $region55: #{semilabel_forward.1} parent=1 // pred_check_branch
      %5066 = sbr.rel (0) target = $region57
    $region56: #{semilabel_forward.1} parent=1 // pred_region
      _
    $region57: #{semilabel_forward.1} parent=1 // pred_fallthru
      _
    %5067 = vsyncpa [#allocation7], 1
    %5068 = vsyncpa [#allocation9], 1
  %5069 = vsyncmov [#allocation4]
  %s5070 = vpop.sfrf %5069
  %p5071 = scmp.eq.s32.totalorder %s5070, 0
  %p5072 = pneg %p5071
  %5074 = shalt.err (%p5072)
  %5075 = vsyncmov [#allocation5]
  %s5076 = vpop.sfrf %5075
  %p5077 = scmp.eq.s32.totalorder %s5076, 0
  %p5078 = pneg %p5077
  %5080 = shalt.err (%p5078)

</llo_original>
